<compile_context>
chip_gen: v7x
topology: tpu7x:2x2x1
jax: 0.10.0
libtpu: 0.0.40
codegen_flags: <defaults>
</compile_context>

<pallas_src>
import functools
import math

import jax
import jax.numpy as jnp
from jax.experimental import pallas as pl
from jax.experimental.pallas import tpu as pltpu

LEAKY_SLOPE = 0.01   # nn.LeakyReLU default negative_slope
BN_EPS = 1e-5        # nn.BatchNorm2d default eps


def _round_up(x, m):
    return (x + m - 1) // m * m


def _pad2d(x, rows, cols, dtype=None):
    """Cast (optional) and zero-pad a 2-D array; no-op if already that shape."""
    if dtype is not None and x.dtype != dtype:
        x = x.astype(dtype)
    r, c = x.shape
    if r == rows and c == cols:
        return x
    return jnp.pad(x, ((0, rows - r), (0, cols - c)))


# ---------------------------------------------------------------------------
# Pallas kernels
# ---------------------------------------------------------------------------
def _fused_matmul_kernel(has_residual, activation, *refs):
    """acc = x @ w over the K grid axis; epilogue: *scale + bias (+res)(+act)."""
    if has_residual:
        x_ref, w_ref, s_ref, b_ref, r_ref, o_ref, acc_ref = refs
    else:
        x_ref, w_ref, s_ref, b_ref, o_ref, acc_ref = refs
        r_ref = None

    k = pl.program_id(2)

    @pl.when(k == 0)
    def _():
        acc_ref[...] = jnp.zeros_like(acc_ref)

    acc_ref[...] += jnp.dot(x_ref[...], w_ref[...],
                            preferred_element_type=jnp.float32)

    @pl.when(k == pl.num_programs(2) - 1)
    def _():
        y = acc_ref[...] * s_ref[...] + b_ref[...]
        if r_ref is not None:
            y = y + r_ref[...].astype(jnp.float32)
        if activation == "relu":
            y = jnp.maximum(y, 0.0)
        elif activation == "leaky":
            y = jnp.where(y >= 0.0, y, LEAKY_SLOPE * y)
        o_ref[...] = y.astype(o_ref.dtype)


def _max_reduce_kernel(x_ref, o_ref):
    # x: (k*k, tr, 128) stacked window taps -> elementwise max over the taps
    o_ref[...] = jnp.max(x_ref[...], axis=0)


def _head_kernel(x_ref, w1_ref, b1_ref, w2_ref, b2_ref, w3_ref, b3_ref, o_ref):
    """Fused: global average pool + fc1 + LeakyReLU + fc2 + LeakyReLU + fc3."""
    feat = jnp.mean(x_ref[...].astype(jnp.float32), axis=1)        # (Bp, C)
    y = jnp.dot(feat.astype(jnp.bfloat16), w1_ref[...],
                preferred_element_type=jnp.float32) + b1_ref[...]
    y = jnp.where(y >= 0.0, y, LEAKY_SLOPE * y)
    y = jnp.dot(y.astype(jnp.bfloat16), w2_ref[...],
                preferred_element_type=jnp.float32) + b2_ref[...]
    y = jnp.where(y >= 0.0, y, LEAKY_SLOPE * y)
    y = jnp.dot(y.astype(jnp.bfloat16), w3_ref[...],
                preferred_element_type=jnp.float32) + b3_ref[...]
    o_ref[...] = y


# ---------------------------------------------------------------------------
# Pallas wrappers
# ---------------------------------------------------------------------------
def fused_matmul(x, w_p, scale_p, bias_p, n_out, residual=None,
                 activation="none", out_dtype=jnp.bfloat16):
    """(M,K) @ (Kp,Np) pre-padded bf16 weights, per-column scale/bias,
    optional residual, activation.  Returns (M, n_out)."""
    M, K = x.shape
    Kp, Np = w_p.shape
    assert Kp >= K

    # M tiling (bf16 sublane tile is 16 -> round Mp to a multiple of 16)
    if M >= 256:
        Mp, tm = _round_up(M, 256), 256
    elif M >= 128:
        Mp, tm = _round_up(M, 128), 128
    else:
        Mp = _round_up(M, 16)
        tm = Mp
    tn = 256 if Np % 256 == 0 else 128
    tk = 256 if Kp % 256 == 0 else 128

    xp = _pad2d(x, Mp, Kp, jnp.bfloat16)

    has_residual = residual is not None
    inputs = [xp, w_p, scale_p, bias_p]
    in_specs = [
        pl.BlockSpec((tm, tk), lambda i, j, k: (i, k)),
        pl.BlockSpec((tk, tn), lambda i, j, k: (k, j)),
        pl.BlockSpec((1, tn), lambda i, j, k: (0, j)),
        pl.BlockSpec((1, tn), lambda i, j, k: (0, j)),
    ]
    if has_residual:
        rp = _pad2d(residual, Mp, Np, jnp.bfloat16)
        inputs.append(rp)
        in_specs.append(pl.BlockSpec((tm, tn), lambda i, j, k: (i, j)))

    out = pl.pallas_call(
        functools.partial(_fused_matmul_kernel, has_residual, activation),
        out_shape=jax.ShapeDtypeStruct((Mp, Np), out_dtype),
        grid_spec=pltpu.PrefetchScalarGridSpec(
            num_scalar_prefetch=0,
            grid=(Mp // tm, Np // tn, Kp // tk),
            in_specs=in_specs,
            out_specs=pl.BlockSpec((tm, tn), lambda i, j, k: (i, j)),
            scratch_shapes=[pltpu.VMEM((tm, tn), jnp.float32)],
        ),
        compiler_params=pltpu.CompilerParams(
            dimension_semantics=("parallel", "parallel", "arbitrary")),
    )(*inputs)
    return out[:M, :n_out]


def conv2d_bn(x, cp, stride=1, padding=0, residual=None, activation="none"):
    """Conv2d (no bias) + inference BatchNorm (+residual) (+activation).
    x: NHWC bf16/f32.  cp: prepared conv params (padded bf16 (Kp,Np) weight)."""
    x = x.astype(jnp.bfloat16)
    B, H, W, Cin = x.shape
    kh, kw, cout = cp["kh"], cp["kw"], cp["cout"]
    assert Cin == cp["cin"]
    Ho = (H + 2 * padding - kh) // stride + 1
    Wo = (W + 2 * padding - kw) // stride + 1

    if kh == 1 and kw == 1 and padding == 0:
        # 1x1 conv: no im2col needed, just (strided) channel flatten.
        xs = x if stride == 1 else x[:, ::stride, ::stride, :]
        xcol = xs.reshape(B * Ho * Wo, Cin)
    else:
        # TODO(synk): fold im2col into the matmul kernel (tap axis as part of
        # the K reduction with index_map into the padded NHWC activation) to
        # avoid materializing the K-expanded patch matrix in HBM.
        xpad = x
        if padding > 0:
            xpad = jnp.pad(x, ((0, 0), (padding, padding),
                               (padding, padding), (0, 0)))
        patches = [xpad[:, ih:ih + stride * Ho:stride,
                        iw:iw + stride * Wo:stride, :]
                   for ih in range(kh) for iw in range(kw)]
        xcol = jnp.concatenate(patches, axis=-1).reshape(B * Ho * Wo,
                                                         kh * kw * Cin)

    res2d = None
    if residual is not None:
        res2d = residual.reshape(B * Ho * Wo, cout)

    y = fused_matmul(xcol, cp["w"], cp["scale"], cp["bias"], cout,
                     residual=res2d, activation=activation,
                     out_dtype=jnp.bfloat16)
    return y.reshape(B, Ho, Wo, cout)


def max_pool2d(x, k=3, s=2, p=1):
    """MaxPool2d via a lane-dense Pallas tap-max reduction."""
    B, H, W, C = x.shape
    Ho = (H + 2 * p - k) // s + 1
    Wo = (W + 2 * p - k) // s + 1
    x = x.astype(jnp.bfloat16)
    # -inf padding is safe: with k=3, s=2, p=1 every window has a real element.
    xpad = jnp.pad(x, ((0, 0), (p, p), (p, p), (0, 0)),
                   constant_values=-jnp.inf)

    L = B * Ho * Wo * C
    taps = [xpad[:, ih:ih + s * Ho:s, iw:iw + s * Wo:s, :].reshape(L)
            for ih in range(k) for iw in range(k)]
    stacked = jnp.stack(taps, axis=0)                       # (k*k, L)

    # Flatten to 128-lane-dense rows so loads/stores are unmasked.
    Lp = _round_up(L, 8 * 128)
    if Lp != L:
        stacked = jnp.pad(stacked, ((0, 0), (0, Lp - L)))
    R = Lp // 128
    stacked = stacked.reshape(k * k, R, 128)

    tr = R
    for cand in (512, 256, 128, 64, 32, 16):
        if R % cand == 0:
            tr = cand
            break

    out = pl.pallas_call(
        _max_reduce_kernel,
        out_shape=jax.ShapeDtypeStruct((R, 128), jnp.bfloat16),
        grid_spec=pltpu.PrefetchScalarGridSpec(
            num_scalar_prefetch=0,
            grid=(R // tr,),
            in_specs=[pl.BlockSpec((k * k, tr, 128), lambda i: (0, i, 0))],
            out_specs=pl.BlockSpec((tr, 128), lambda i: (i, 0)),
        ),
        compiler_params=pltpu.CompilerParams(
            dimension_semantics=("parallel",)),
    )(stacked)
    return out.reshape(-1)[:L].reshape(B, Ho, Wo, C)


def fc_head(x, hp):
    """AdaptiveAvgPool2d(1) + flatten + fc1/LeakyReLU + fc2/LeakyReLU + fc3,
    fused into a single Pallas call (Dropout is identity in eval mode)."""
    B, H, W, C = x.shape
    Bp = _round_up(B, 8)
    xr = x.reshape(B, H * W, C).astype(jnp.bfloat16)
    if Bp != B:
        xr = jnp.pad(xr, ((0, Bp - B), (0, 0), (0, 0)))
    out = pl.pallas_call(
        _head_kernel,
        out_shape=jax.ShapeDtypeStruct((Bp, hp["w3"].shape[1]), jnp.float32),
    )(xr, hp["w1"], hp["b1"], hp["w2"], hp["b2"], hp["w3"], hp["b3"])
    return out[:B, :hp["nclasses"]]


# ---------------------------------------------------------------------------
# Parameter init & weight preparation (all weight-side work hoisted here)
# ---------------------------------------------------------------------------
def _make_bn(c):
    # gamma=1, beta=0, running_mean=0, running_var=1 (fresh nn.BatchNorm2d, eval)
    scale = jnp.full((c,), 1.0 / math.sqrt(1.0 + BN_EPS), jnp.float32)
    bias = jnp.zeros((c,), jnp.float32)
    return scale, bias


def _prep_conv(w, bn):
    """PyTorch (Cout,Cin,kh,kw) conv weight + folded BN -> padded bf16 matmul."""
    scale, bias = bn
    Cout, Cin, kh, kw = w.shape
    K, N = kh * kw * Cin, Cout
    Kp, Np = _round_up(K, 128), _round_up(N, 128)
    wmat = jnp.transpose(w, (2, 3, 1, 0)).reshape(K, N)     # (kh,kw,Cin,Cout)
    return {
        "w": _pad2d(wmat, Kp, Np, jnp.bfloat16),
        "scale": _pad2d(scale.reshape(1, N), 1, Np, jnp.float32),
        "bias": _pad2d(bias.reshape(1, N), 1, Np, jnp.float32),
        "kh": kh, "kw": kw, "cin": Cin, "cout": Cout,
    }


def _prep_head(fc1, fc2, fc3):
    (w1, b1), (w2, b2), (w3, b3) = fc1, fc2, fc3
    d1, h1 = w1.shape
    d2, h2 = w2.shape
    d3, h3 = w3.shape
    H1p, H2p, H3p = _round_up(h1, 128), _round_up(h2, 128), _round_up(h3, 128)
    return {
        "w1": _pad2d(w1, d1, H1p, jnp.bfloat16),
        "b1": _pad2d(b1.reshape(1, h1), 1, H1p, jnp.float32),
        "w2": _pad2d(w2, H1p, H2p, jnp.bfloat16),
        "b2": _pad2d(b2.reshape(1, h2), 1, H2p, jnp.float32),
        "w3": _pad2d(w3, H2p, H3p, jnp.bfloat16),
        "b3": _pad2d(b3.reshape(1, h3), 1, H3p, jnp.float32),
        "nclasses": h3,
    }


def init_params(key, input_size, output_size, num_classes):
    keys = iter(jax.random.split(key, 64))

    def conv_w(cout, cin, k):
        fan_in, fan_out = cin * k * k, cout * k * k
        bound = math.sqrt(6.0 / (fan_in + fan_out))
        return jax.random.uniform(next(keys), (cout, cin, k, k),
                                  jnp.float32, -bound, bound)

    def linear_wb(din, dout):
        bound = math.sqrt(6.0 / (din + dout))
        w = jax.random.uniform(next(keys), (din, dout), jnp.float32,
                               -bound, bound)
        return w, jnp.zeros((dout,), jnp.float32)

    C = output_size
    # (in_channels, mid_channels, stride, is_downsample) — mirrors miniResnet
    cfg = [
        (input_size, C, 1, True),
        (C * 4, C, 1, False), (C * 4, C, 1, False),
        (C * 4, C * 2, 2, True), (C * 8, C * 2, 1, False), (C * 8, C * 2, 1, False),
        (C * 8, C * 4, 2, True), (C * 16, C * 4, 1, False), (C * 16, C * 4, 1, False),
    ]

    blocks = []
    for cin, cmid, _stride, ds in cfg:
        p = {
            "c1": _prep_conv(conv_w(cmid, cin, 1), _make_bn(cmid)),
            "c2": _prep_conv(conv_w(cmid, cmid, 3), _make_bn(cmid)),
            "c3": _prep_conv(conv_w(cmid * 4, cmid, 1), _make_bn(cmid * 4)),
        }
        if ds:
            p["cd"] = _prep_conv(conv_w(cmid * 4, cin, 1), _make_bn(cmid * 4))
        blocks.append(p)

    params = {
        "stem": _prep_conv(conv_w(input_size, 3, 7), _make_bn(input_size)),
        "blocks": blocks,
        "head": _prep_head(linear_wb(C * 16, 512), linear_wb(512, 256),
                           linear_wb(256, num_classes)),
    }
    block_cfg = [(stride, ds) for _, _, stride, ds in cfg]
    return params, block_cfg


# ---------------------------------------------------------------------------
# Forward pass
# ---------------------------------------------------------------------------
def res_block(x, p, stride, is_downsample):
    # Conv1x1->BN, Conv3x3(stride)->BN, Conv1x1->BN (no intermediate ReLU);
    # final conv+BN fused with residual add and ReLU in the kernel epilogue.
    y = conv2d_bn(x, p["c1"], stride=1, padding=0)
    y = conv2d_bn(y, p["c2"], stride=stride, padding=1)
    if is_downsample:
        residual = conv2d_bn(x, p["cd"], stride=stride, padding=0)
    else:
        residual = x
    y = conv2d_bn(y, p["c3"], stride=1, padding=0,
                  residual=residual, activation="relu")
    return y


def mini_resnet_forward(x_nchw, params, block_cfg):
    # TODO(synk): eval-mode only — Dropout is identity and BatchNorm uses
    # running statistics; train-mode semantics are not implemented.
    x = jnp.transpose(x_nchw, (0, 2, 3, 1))        # NCHW -> NHWC
    x = conv2d_bn(x, params["stem"], stride=2, padding=3, activation="relu")
    x = max_pool2d(x, k=3, s=2, p=1)
    for p, (stride, ds) in zip(params["blocks"], block_cfg):
        x = res_block(x, p, stride, ds)
    return fc_head(x, params["head"])              # (B, num_classes)


# ---------------------------------------------------------------------------
if __name__ == "__main__":
    key = jax.random.PRNGKey(0)
    pkey, xkey = jax.random.split(key)

    # Small configuration consistent with the module: input_size=output_size=8,
    # flat_shape = output_size*16 = 128 (so Linear(flat_shape, 512) matches),
    # num_classes=120 (default).
    input_size = output_size = 8
    num_classes = 120
    params, block_cfg = init_params(pkey, input_size, output_size, num_classes)

    # PyTorch-style NCHW input: batch=2, 3 channels, 32x32 spatial.
    x = jax.random.normal(xkey, (2, 3, 32, 32), jnp.float32)

    fwd = jax.jit(lambda xx: mini_resnet_forward(xx, params, block_cfg))
    out = fwd(x)
    out = jax.block_until_ready(out)

    assert out.shape == (2, num_classes), out.shape
    assert bool(jnp.all(jnp.isfinite(out)))
    print("KERNEL_OK")
</pallas_src>

<mosaic_0001>
module attributes {stable_mosaic.version = 11 : i64} {
  func.func @_fused_matmul_kernel(%arg0: i32, %arg1: i32, %arg2: i32, %arg3: memref<256x256xbf16, #tpu.memory_space<vmem>>, %arg4: memref<256x128xbf16, #tpu.memory_space<vmem>>, %arg5: memref<1x128xf32, #tpu.memory_space<vmem>>, %arg6: memref<1x128xf32, #tpu.memory_space<vmem>>, %arg7: memref<256x128xbf16, #tpu.memory_space<vmem>>, %arg8: memref<256x128xf32, #tpu.memory_space<vmem>>) attributes {dimension_semantics = [#tpu.dimension_semantics<parallel>, #tpu.dimension_semantics<parallel>, #tpu.dimension_semantics<arbitrary>], iteration_bounds = array<i64: 2, 1, 1>, scalar_prefetch = 0 : i64, scratch_operands = 1 : i64, tpu.core_type = #tpu.core_type<tc>, window_params = [{transform_indices = @transform_0, window_bounds = array<i64: 256, 256>}, {transform_indices = @transform_1, window_bounds = array<i64: 256, 128>}, {transform_indices = @transform_2, window_bounds = array<i64: 1, 128>}, {transform_indices = @transform_3, window_bounds = array<i64: 1, 128>}, {transform_indices = @transform_4, window_bounds = array<i64: 256, 128>}]} {
    %c0_i32 = arith.constant 0 : i32
    %0 = arith.cmpi eq, %arg2, %c0_i32 : i32
    %1 = arith.extui %0 : i1 to i32
    %c0_i32_0 = arith.constant 0 : i32
    %2 = arith.cmpi ne, %1, %c0_i32_0 : i32
    scf.if %2 {
      %cst_10 = arith.constant 0.000000e+00 : f32
      %12 = vector.broadcast %cst_10 : f32 to vector<256x128xf32>
      %c0_11 = arith.constant 0 : index
      %c0_12 = arith.constant 0 : index
      %13 = vector.load %arg8[%c0_11, %c0_12] : memref<256x128xf32, #tpu.memory_space<vmem>>, vector<256x128xf32>
      tpu.vector_store %arg8[%c0_11, %c0_12], %12 {strides = array<i32>} : memref<256x128xf32, #tpu.memory_space<vmem>>, vector<256x128xf32>,
    } else {
    }
    %c0 = arith.constant 0 : index
    %c0_1 = arith.constant 0 : index
    %3 = vector.load %arg8[%c0, %c0_1] : memref<256x128xf32, #tpu.memory_space<vmem>>, vector<256x128xf32>
    %c0_2 = arith.constant 0 : index
    %c0_3 = arith.constant 0 : index
    %4 = vector.load %arg3[%c0_2, %c0_3] : memref<256x256xbf16, #tpu.memory_space<vmem>>, vector<256x256xbf16>
    %c0_4 = arith.constant 0 : index
    %c0_5 = arith.constant 0 : index
    %5 = vector.load %arg4[%c0_4, %c0_5] : memref<256x128xbf16, #tpu.memory_space<vmem>>, vector<256x128xbf16>
    %cst = arith.constant dense<0.000000e+00> : vector<256x128xf32>
    %6 = tpu.matmul %4, %5, %cst {dimension_numbers = #tpu.dot_dimension_numbers<[1], [0], [0], [1], [0, 0, 1, 1], [], []>} : vector<256x256xbf16>, vector<256x128xbf16>, vector<256x128xf32> -> vector<256x128xf32>
    %7 = arith.addf %3, %6 : vector<256x128xf32>
    %c0_6 = arith.constant 0 : index
    %c0_7 = arith.constant 0 : index
    %8 = vector.load %arg8[%c0_6, %c0_7] : memref<256x128xf32, #tpu.memory_space<vmem>>, vector<256x128xf32>
    tpu.vector_store %arg8[%c0_6, %c0_7], %7 {strides = array<i32>} : memref<256x128xf32, #tpu.memory_space<vmem>>, vector<256x128xf32>,
    %c0_i32_8 = arith.constant 0 : i32
    %9 = arith.cmpi eq, %arg2, %c0_i32_8 : i32
    %10 = arith.extui %9 : i1 to i32
    %c0_i32_9 = arith.constant 0 : i32
    %11 = arith.cmpi ne, %10, %c0_i32_9 : i32
    scf.if %11 {
      %c0_10 = arith.constant 0 : index
      %c0_11 = arith.constant 0 : index
      %12 = vector.load %arg8[%c0_10, %c0_11] : memref<256x128xf32, #tpu.memory_space<vmem>>, vector<256x128xf32>
      %c0_12 = arith.constant 0 : index
      %c0_13 = arith.constant 0 : index
      %13 = vector.load %arg5[%c0_12, %c0_13] : memref<1x128xf32, #tpu.memory_space<vmem>>, vector<1x128xf32>
      %14 = vector.broadcast %13 : vector<1x128xf32> to vector<256x128xf32>
      %15 = arith.mulf %12, %14 : vector<256x128xf32>
      %c0_14 = arith.constant 0 : index
      %c0_15 = arith.constant 0 : index
      %16 = vector.load %arg6[%c0_14, %c0_15] : memref<1x128xf32, #tpu.memory_space<vmem>>, vector<1x128xf32>
      %17 = vector.broadcast %16 : vector<1x128xf32> to vector<256x128xf32>
      %18 = arith.addf %15, %17 : vector<256x128xf32>
      %cst_16 = arith.constant 0.000000e+00 : f32
      %19 = vector.broadcast %cst_16 : f32 to vector<256x128xf32>
      %20 = arith.maximumf %18, %19 : vector<256x128xf32>
      %21 = arith.truncf %20 : vector<256x128xf32> to vector<256x128xbf16>
      %c0_17 = arith.constant 0 : index
      %c0_18 = arith.constant 0 : index
      %22 = vector.load %arg7[%c0_17, %c0_18] : memref<256x128xbf16, #tpu.memory_space<vmem>>, vector<256x128xbf16>
      tpu.vector_store %arg7[%c0_17, %c0_18], %21 {strides = array<i32>} : memref<256x128xbf16, #tpu.memory_space<vmem>>, vector<256x128xbf16>,
    } else {
    }
    return
  }
  func.func @transform_0(%arg0: i32, %arg1: i32, %arg2: i32) -> (i32, i32) {
    %c0_i32 = arith.constant 0 : i32
    return %arg0, %arg2 : i32, i32
  }
  func.func @transform_1(%arg0: i32, %arg1: i32, %arg2: i32) -> (i32, i32) {
    %c0_i32 = arith.constant 0 : i32
    return %arg2, %arg1 : i32, i32
  }
  func.func @transform_2(%arg0: i32, %arg1: i32, %arg2: i32) -> (i32, i32) {
    %c0_i32 = arith.constant 0 : i32
    %c0_i32_0 = arith.constant 0 : i32
    return %c0_i32, %arg1 : i32, i32
  }
  func.func @transform_3(%arg0: i32, %arg1: i32, %arg2: i32) -> (i32, i32) {
    %c0_i32 = arith.constant 0 : i32
    %c0_i32_0 = arith.constant 0 : i32
    return %c0_i32, %arg1 : i32, i32
  }
  func.func @transform_4(%arg0: i32, %arg1: i32, %arg2: i32) -> (i32, i32) {
    %c0_i32 = arith.constant 0 : i32
    return %arg0, %arg1 : i32, i32
  }
}

module attributes {stable_mosaic.version = 11 : i64} {
  func.func @_max_reduce_kernel(%arg0: i32, %arg1: memref<9x8x128xbf16, #tpu.memory_space<vmem>>, %arg2: memref<8x128xbf16, #tpu.memory_space<vmem>>) attributes {dimension_semantics = [#tpu.dimension_semantics<parallel>], iteration_bounds = array<i64: 1>, scalar_prefetch = 0 : i64, scratch_operands = 0 : i64, tpu.core_type = #tpu.core_type<tc>, window_params = [{transform_indices = @transform_0, window_bounds = array<i64: 9, 8, 128>}, {transform_indices = @transform_1, window_bounds = array<i64: 8, 128>}]} {
    %c0 = arith.constant 0 : index
    %c0_0 = arith.constant 0 : index
    %c0_1 = arith.constant 0 : index
    %0 = vector.load %arg1[%c0, %c0_0, %c0_1] : memref<9x8x128xbf16, #tpu.memory_space<vmem>>, vector<9x8x128xbf16>
    %cst = arith.constant dense<0xFF80> : vector<8x128xbf16>
    %1 = vector.multi_reduction <maximumf>, %0, %cst [0] : vector<9x8x128xbf16> to vector<8x128xbf16>
    %c0_2 = arith.constant 0 : index
    %c0_3 = arith.constant 0 : index
    %2 = vector.load %arg2[%c0_2, %c0_3] : memref<8x128xbf16, #tpu.memory_space<vmem>>, vector<8x128xbf16>
    tpu.vector_store %arg2[%c0_2, %c0_3], %1 {strides = array<i32>} : memref<8x128xbf16, #tpu.memory_space<vmem>>, vector<8x128xbf16>,
    return
  }
  func.func @transform_0(%arg0: i32) -> (i32, i32, i32) {
    %c0_i32 = arith.constant 0 : i32
    %c0_i32_0 = arith.constant 0 : i32
    %c0_i32_1 = arith.constant 0 : i32
    return %c0_i32, %arg0, %c0_i32_0 : i32, i32, i32
  }
  func.func @transform_1(%arg0: i32) -> (i32, i32) {
    %c0_i32 = arith.constant 0 : i32
    %c0_i32_0 = arith.constant 0 : i32
    return %arg0, %c0_i32 : i32, i32
  }
}

module attributes {stable_mosaic.version = 11 : i64} {
  func.func @_fused_matmul_kernel(%arg0: i32, %arg1: i32, %arg2: i32, %arg3: memref<128x128xbf16, #tpu.memory_space<vmem>>, %arg4: memref<128x128xbf16, #tpu.memory_space<vmem>>, %arg5: memref<1x128xf32, #tpu.memory_space<vmem>>, %arg6: memref<1x128xf32, #tpu.memory_space<vmem>>, %arg7: memref<128x128xbf16, #tpu.memory_space<vmem>>, %arg8: memref<128x128xf32, #tpu.memory_space<vmem>>) attributes {dimension_semantics = [#tpu.dimension_semantics<parallel>, #tpu.dimension_semantics<parallel>, #tpu.dimension_semantics<arbitrary>], iteration_bounds = array<i64: 1, 1, 1>, scalar_prefetch = 0 : i64, scratch_operands = 1 : i64, tpu.core_type = #tpu.core_type<tc>, window_params = [{transform_indices = @transform_0, window_bounds = array<i64: 128, 128>}, {transform_indices = @transform_1, window_bounds = array<i64: 128, 128>}, {transform_indices = @transform_2, window_bounds = array<i64: 1, 128>}, {transform_indices = @transform_3, window_bounds = array<i64: 1, 128>}, {transform_indices = @transform_4, window_bounds = array<i64: 128, 128>}]} {
    %c0_i32 = arith.constant 0 : i32
    %0 = arith.cmpi eq, %arg2, %c0_i32 : i32
    %1 = arith.extui %0 : i1 to i32
    %c0_i32_0 = arith.constant 0 : i32
    %2 = arith.cmpi ne, %1, %c0_i32_0 : i32
    scf.if %2 {
      %cst_10 = arith.constant 0.000000e+00 : f32
      %12 = vector.broadcast %cst_10 : f32 to vector<128x128xf32>
      %c0_11 = arith.constant 0 : index
      %c0_12 = arith.constant 0 : index
      %13 = vector.load %arg8[%c0_11, %c0_12] : memref<128x128xf32, #tpu.memory_space<vmem>>, vector<128x128xf32>
      tpu.vector_store %arg8[%c0_11, %c0_12], %12 {strides = array<i32>} : memref<128x128xf32, #tpu.memory_space<vmem>>, vector<128x128xf32>,
    } else {
    }
    %c0 = arith.constant 0 : index
    %c0_1 = arith.constant 0 : index
    %3 = vector.load %arg8[%c0, %c0_1] : memref<128x128xf32, #tpu.memory_space<vmem>>, vector<128x128xf32>
    %c0_2 = arith.constant 0 : index
    %c0_3 = arith.constant 0 : index
    %4 = vector.load %arg3[%c0_2, %c0_3] : memref<128x128xbf16, #tpu.memory_space<vmem>>, vector<128x128xbf16>
    %c0_4 = arith.constant 0 : index
    %c0_5 = arith.constant 0 : index
    %5 = vector.load %arg4[%c0_4, %c0_5] : memref<128x128xbf16, #tpu.memory_space<vmem>>, vector<128x128xbf16>
    %cst = arith.constant dense<0.000000e+00> : vector<128x128xf32>
    %6 = tpu.matmul %4, %5, %cst {dimension_numbers = #tpu.dot_dimension_numbers<[1], [0], [0], [1], [0, 0, 1, 1], [], []>} : vector<128x128xbf16>, vector<128x128xbf16>, vector<128x128xf32> -> vector<128x128xf32>
    %7 = arith.addf %3, %6 : vector<128x128xf32>
    %c0_6 = arith.constant 0 : index
    %c0_7 = arith.constant 0 : index
    %8 = vector.load %arg8[%c0_6, %c0_7] : memref<128x128xf32, #tpu.memory_space<vmem>>, vector<128x128xf32>
    tpu.vector_store %arg8[%c0_6, %c0_7], %7 {strides = array<i32>} : memref<128x128xf32, #tpu.memory_space<vmem>>, vector<128x128xf32>,
    %c0_i32_8 = arith.constant 0 : i32
    %9 = arith.cmpi eq, %arg2, %c0_i32_8 : i32
    %10 = arith.extui %9 : i1 to i32
    %c0_i32_9 = arith.constant 0 : i32
    %11 = arith.cmpi ne, %10, %c0_i32_9 : i32
    scf.if %11 {
      %c0_10 = arith.constant 0 : index
      %c0_11 = arith.constant 0 : index
      %12 = vector.load %arg8[%c0_10, %c0_11] : memref<128x128xf32, #tpu.memory_space<vmem>>, vector<128x128xf32>
      %c0_12 = arith.constant 0 : index
      %c0_13 = arith.constant 0 : index
      %13 = vector.load %arg5[%c0_12, %c0_13] : memref<1x128xf32, #tpu.memory_space<vmem>>, vector<1x128xf32>
      %14 = vector.broadcast %13 : vector<1x128xf32> to vector<128x128xf32>
      %15 = arith.mulf %12, %14 : vector<128x128xf32>
      %c0_14 = arith.constant 0 : index
      %c0_15 = arith.constant 0 : index
      %16 = vector.load %arg6[%c0_14, %c0_15] : memref<1x128xf32, #tpu.memory_space<vmem>>, vector<1x128xf32>
      %17 = vector.broadcast %16 : vector<1x128xf32> to vector<128x128xf32>
      %18 = arith.addf %15, %17 : vector<128x128xf32>
      %19 = arith.truncf %18 : vector<128x128xf32> to vector<128x128xbf16>
      %c0_16 = arith.constant 0 : index
      %c0_17 = arith.constant 0 : index
      %20 = vector.load %arg7[%c0_16, %c0_17] : memref<128x128xbf16, #tpu.memory_space<vmem>>, vector<128x128xbf16>
      tpu.vector_store %arg7[%c0_16, %c0_17], %19 {strides = array<i32>} : memref<128x128xbf16, #tpu.memory_space<vmem>>, vector<128x128xbf16>,
    } else {
    }
    return
  }
  func.func @transform_0(%arg0: i32, %arg1: i32, %arg2: i32) -> (i32, i32) {
    %c0_i32 = arith.constant 0 : i32
    return %arg0, %arg2 : i32, i32
  }
  func.func @transform_1(%arg0: i32, %arg1: i32, %arg2: i32) -> (i32, i32) {
    %c0_i32 = arith.constant 0 : i32
    return %arg2, %arg1 : i32, i32
  }
  func.func @transform_2(%arg0: i32, %arg1: i32, %arg2: i32) -> (i32, i32) {
    %c0_i32 = arith.constant 0 : i32
    %c0_i32_0 = arith.constant 0 : i32
    return %c0_i32, %arg1 : i32, i32
  }
  func.func @transform_3(%arg0: i32, %arg1: i32, %arg2: i32) -> (i32, i32) {
    %c0_i32 = arith.constant 0 : i32
    %c0_i32_0 = arith.constant 0 : i32
    return %c0_i32, %arg1 : i32, i32
  }
  func.func @transform_4(%arg0: i32, %arg1: i32, %arg2: i32) -> (i32, i32) {
    %c0_i32 = arith.constant 0 : i32
    return %arg0, %arg1 : i32, i32
  }
}

module attributes {stable_mosaic.version = 11 : i64} {
  func.func @_fused_matmul_kernel(%arg0: i32, %arg1: i32, %arg2: i32, %arg3: memref<128x128xbf16, #tpu.memory_space<vmem>>, %arg4: memref<128x128xbf16, #tpu.memory_space<vmem>>, %arg5: memref<1x128xf32, #tpu.memory_space<vmem>>, %arg6: memref<1x128xf32, #tpu.memory_space<vmem>>, %arg7: memref<128x128xbf16, #tpu.memory_space<vmem>>, %arg8: memref<128x128xbf16, #tpu.memory_space<vmem>>, %arg9: memref<128x128xf32, #tpu.memory_space<vmem>>) attributes {dimension_semantics = [#tpu.dimension_semantics<parallel>, #tpu.dimension_semantics<parallel>, #tpu.dimension_semantics<arbitrary>], iteration_bounds = array<i64: 1, 1, 1>, scalar_prefetch = 0 : i64, scratch_operands = 1 : i64, tpu.core_type = #tpu.core_type<tc>, window_params = [{transform_indices = @transform_0, window_bounds = array<i64: 128, 128>}, {transform_indices = @transform_1, window_bounds = array<i64: 128, 128>}, {transform_indices = @transform_2, window_bounds = array<i64: 1, 128>}, {transform_indices = @transform_3, window_bounds = array<i64: 1, 128>}, {transform_indices = @transform_4, window_bounds = array<i64: 128, 128>}, {transform_indices = @transform_5, window_bounds = array<i64: 128, 128>}]} {
    %c0_i32 = arith.constant 0 : i32
    %0 = arith.cmpi eq, %arg2, %c0_i32 : i32
    %1 = arith.extui %0 : i1 to i32
    %c0_i32_0 = arith.constant 0 : i32
    %2 = arith.cmpi ne, %1, %c0_i32_0 : i32
    scf.if %2 {
      %cst_10 = arith.constant 0.000000e+00 : f32
      %12 = vector.broadcast %cst_10 : f32 to vector<128x128xf32>
      %c0_11 = arith.constant 0 : index
      %c0_12 = arith.constant 0 : index
      %13 = vector.load %arg9[%c0_11, %c0_12] : memref<128x128xf32, #tpu.memory_space<vmem>>, vector<128x128xf32>
      tpu.vector_store %arg9[%c0_11, %c0_12], %12 {strides = array<i32>} : memref<128x128xf32, #tpu.memory_space<vmem>>, vector<128x128xf32>,
    } else {
    }
    %c0 = arith.constant 0 : index
    %c0_1 = arith.constant 0 : index
    %3 = vector.load %arg9[%c0, %c0_1] : memref<128x128xf32, #tpu.memory_space<vmem>>, vector<128x128xf32>
    %c0_2 = arith.constant 0 : index
    %c0_3 = arith.constant 0 : index
    %4 = vector.load %arg3[%c0_2, %c0_3] : memref<128x128xbf16, #tpu.memory_space<vmem>>, vector<128x128xbf16>
    %c0_4 = arith.constant 0 : index
    %c0_5 = arith.constant 0 : index
    %5 = vector.load %arg4[%c0_4, %c0_5] : memref<128x128xbf16, #tpu.memory_space<vmem>>, vector<128x128xbf16>
    %cst = arith.constant dense<0.000000e+00> : vector<128x128xf32>
    %6 = tpu.matmul %4, %5, %cst {dimension_numbers = #tpu.dot_dimension_numbers<[1], [0], [0], [1], [0, 0, 1, 1], [], []>} : vector<128x128xbf16>, vector<128x128xbf16>, vector<128x128xf32> -> vector<128x128xf32>
    %7 = arith.addf %3, %6 : vector<128x128xf32>
    %c0_6 = arith.constant 0 : index
    %c0_7 = arith.constant 0 : index
    %8 = vector.load %arg9[%c0_6, %c0_7] : memref<128x128xf32, #tpu.memory_space<vmem>>, vector<128x128xf32>
    tpu.vector_store %arg9[%c0_6, %c0_7], %7 {strides = array<i32>} : memref<128x128xf32, #tpu.memory_space<vmem>>, vector<128x128xf32>,
    %c0_i32_8 = arith.constant 0 : i32
    %9 = arith.cmpi eq, %arg2, %c0_i32_8 : i32
    %10 = arith.extui %9 : i1 to i32
    %c0_i32_9 = arith.constant 0 : i32
    %11 = arith.cmpi ne, %10, %c0_i32_9 : i32
    scf.if %11 {
      %c0_10 = arith.constant 0 : index
      %c0_11 = arith.constant 0 : index
      %12 = vector.load %arg9[%c0_10, %c0_11] : memref<128x128xf32, #tpu.memory_space<vmem>>, vector<128x128xf32>
      %c0_12 = arith.constant 0 : index
      %c0_13 = arith.constant 0 : index
      %13 = vector.load %arg5[%c0_12, %c0_13] : memref<1x128xf32, #tpu.memory_space<vmem>>, vector<1x128xf32>
      %14 = vector.broadcast %13 : vector<1x128xf32> to vector<128x128xf32>
      %15 = arith.mulf %12, %14 : vector<128x128xf32>
      %c0_14 = arith.constant 0 : index
      %c0_15 = arith.constant 0 : index
      %16 = vector.load %arg6[%c0_14, %c0_15] : memref<1x128xf32, #tpu.memory_space<vmem>>, vector<1x128xf32>
      %17 = vector.broadcast %16 : vector<1x128xf32> to vector<128x128xf32>
      %18 = arith.addf %15, %17 : vector<128x128xf32>
      %c0_16 = arith.constant 0 : index
      %c0_17 = arith.constant 0 : index
      %19 = vector.load %arg7[%c0_16, %c0_17] : memref<128x128xbf16, #tpu.memory_space<vmem>>, vector<128x128xbf16>
      %20 = arith.extf %19 : vector<128x128xbf16> to vector<128x128xf32>
      %21 = arith.addf %18, %20 : vector<128x128xf32>
      %cst_18 = arith.constant 0.000000e+00 : f32
      %22 = vector.broadcast %cst_18 : f32 to vector<128x128xf32>
      %23 = arith.maximumf %21, %22 : vector<128x128xf32>
      %24 = arith.truncf %23 : vector<128x128xf32> to vector<128x128xbf16>
      %c0_19 = arith.constant 0 : index
      %c0_20 = arith.constant 0 : index
      %25 = vector.load %arg8[%c0_19, %c0_20] : memref<128x128xbf16, #tpu.memory_space<vmem>>, vector<128x128xbf16>
      tpu.vector_store %arg8[%c0_19, %c0_20], %24 {strides = array<i32>} : memref<128x128xbf16, #tpu.memory_space<vmem>>, vector<128x128xbf16>,
    } else {
    }
    return
  }
  func.func @transform_0(%arg0: i32, %arg1: i32, %arg2: i32) -> (i32, i32) {
    %c0_i32 = arith.constant 0 : i32
    return %arg0, %arg2 : i32, i32
  }
  func.func @transform_1(%arg0: i32, %arg1: i32, %arg2: i32) -> (i32, i32) {
    %c0_i32 = arith.constant 0 : i32
    return %arg2, %arg1 : i32, i32
  }
  func.func @transform_2(%arg0: i32, %arg1: i32, %arg2: i32) -> (i32, i32) {
    %c0_i32 = arith.constant 0 : i32
    %c0_i32_0 = arith.constant 0 : i32
    return %c0_i32, %arg1 : i32, i32
  }
  func.func @transform_3(%arg0: i32, %arg1: i32, %arg2: i32) -> (i32, i32) {
    %c0_i32 = arith.constant 0 : i32
    %c0_i32_0 = arith.constant 0 : i32
    return %c0_i32, %arg1 : i32, i32
  }
  func.func @transform_4(%arg0: i32, %arg1: i32, %arg2: i32) -> (i32, i32) {
    %c0_i32 = arith.constant 0 : i32
    return %arg0, %arg1 : i32, i32
  }
  func.func @transform_5(%arg0: i32, %arg1: i32, %arg2: i32) -> (i32, i32) {
    %c0_i32 = arith.constant 0 : i32
    return %arg0, %arg1 : i32, i32
  }
}

module attributes {stable_mosaic.version = 11 : i64} {
  func.func @_fused_matmul_kernel(%arg0: i32, %arg1: i32, %arg2: i32, %arg3: memref<32x256xbf16, #tpu.memory_space<vmem>>, %arg4: memref<256x128xbf16, #tpu.memory_space<vmem>>, %arg5: memref<1x128xf32, #tpu.memory_space<vmem>>, %arg6: memref<1x128xf32, #tpu.memory_space<vmem>>, %arg7: memref<32x128xbf16, #tpu.memory_space<vmem>>, %arg8: memref<32x128xf32, #tpu.memory_space<vmem>>) attributes {dimension_semantics = [#tpu.dimension_semantics<parallel>, #tpu.dimension_semantics<parallel>, #tpu.dimension_semantics<arbitrary>], iteration_bounds = array<i64: 1, 1, 1>, scalar_prefetch = 0 : i64, scratch_operands = 1 : i64, tpu.core_type = #tpu.core_type<tc>, window_params = [{transform_indices = @transform_0, window_bounds = array<i64: 32, 256>}, {transform_indices = @transform_1, window_bounds = array<i64: 256, 128>}, {transform_indices = @transform_2, window_bounds = array<i64: 1, 128>}, {transform_indices = @transform_3, window_bounds = array<i64: 1, 128>}, {transform_indices = @transform_4, window_bounds = array<i64: 32, 128>}]} {
    %c0_i32 = arith.constant 0 : i32
    %0 = arith.cmpi eq, %arg2, %c0_i32 : i32
    %1 = arith.extui %0 : i1 to i32
    %c0_i32_0 = arith.constant 0 : i32
    %2 = arith.cmpi ne, %1, %c0_i32_0 : i32
    scf.if %2 {
      %cst_10 = arith.constant 0.000000e+00 : f32
      %12 = vector.broadcast %cst_10 : f32 to vector<32x128xf32>
      %c0_11 = arith.constant 0 : index
      %c0_12 = arith.constant 0 : index
      %13 = vector.load %arg8[%c0_11, %c0_12] : memref<32x128xf32, #tpu.memory_space<vmem>>, vector<32x128xf32>
      tpu.vector_store %arg8[%c0_11, %c0_12], %12 {strides = array<i32>} : memref<32x128xf32, #tpu.memory_space<vmem>>, vector<32x128xf32>,
    } else {
    }
    %c0 = arith.constant 0 : index
    %c0_1 = arith.constant 0 : index
    %3 = vector.load %arg8[%c0, %c0_1] : memref<32x128xf32, #tpu.memory_space<vmem>>, vector<32x128xf32>
    %c0_2 = arith.constant 0 : index
    %c0_3 = arith.constant 0 : index
    %4 = vector.load %arg3[%c0_2, %c0_3] : memref<32x256xbf16, #tpu.memory_space<vmem>>, vector<32x256xbf16>
    %c0_4 = arith.constant 0 : index
    %c0_5 = arith.constant 0 : index
    %5 = vector.load %arg4[%c0_4, %c0_5] : memref<256x128xbf16, #tpu.memory_space<vmem>>, vector<256x128xbf16>
    %cst = arith.constant dense<0.000000e+00> : vector<32x128xf32>
    %6 = tpu.matmul %4, %5, %cst {dimension_numbers = #tpu.dot_dimension_numbers<[1], [0], [0], [1], [0, 0, 1, 1], [], []>} : vector<32x256xbf16>, vector<256x128xbf16>, vector<32x128xf32> -> vector<32x128xf32>
    %7 = arith.addf %3, %6 : vector<32x128xf32>
    %c0_6 = arith.constant 0 : index
    %c0_7 = arith.constant 0 : index
    %8 = vector.load %arg8[%c0_6, %c0_7] : memref<32x128xf32, #tpu.memory_space<vmem>>, vector<32x128xf32>
    tpu.vector_store %arg8[%c0_6, %c0_7], %7 {strides = array<i32>} : memref<32x128xf32, #tpu.memory_space<vmem>>, vector<32x128xf32>,
    %c0_i32_8 = arith.constant 0 : i32
    %9 = arith.cmpi eq, %arg2, %c0_i32_8 : i32
    %10 = arith.extui %9 : i1 to i32
    %c0_i32_9 = arith.constant 0 : i32
    %11 = arith.cmpi ne, %10, %c0_i32_9 : i32
    scf.if %11 {
      %c0_10 = arith.constant 0 : index
      %c0_11 = arith.constant 0 : index
      %12 = vector.load %arg8[%c0_10, %c0_11] : memref<32x128xf32, #tpu.memory_space<vmem>>, vector<32x128xf32>
      %c0_12 = arith.constant 0 : index
      %c0_13 = arith.constant 0 : index
      %13 = vector.load %arg5[%c0_12, %c0_13] : memref<1x128xf32, #tpu.memory_space<vmem>>, vector<1x128xf32>
      %14 = vector.broadcast %13 : vector<1x128xf32> to vector<32x128xf32>
      %15 = arith.mulf %12, %14 : vector<32x128xf32>
      %c0_14 = arith.constant 0 : index
      %c0_15 = arith.constant 0 : index
      %16 = vector.load %arg6[%c0_14, %c0_15] : memref<1x128xf32, #tpu.memory_space<vmem>>, vector<1x128xf32>
      %17 = vector.broadcast %16 : vector<1x128xf32> to vector<32x128xf32>
      %18 = arith.addf %15, %17 : vector<32x128xf32>
      %19 = arith.truncf %18 : vector<32x128xf32> to vector<32x128xbf16>
      %c0_16 = arith.constant 0 : index
      %c0_17 = arith.constant 0 : index
      %20 = vector.load %arg7[%c0_16, %c0_17] : memref<32x128xbf16, #tpu.memory_space<vmem>>, vector<32x128xbf16>
      tpu.vector_store %arg7[%c0_16, %c0_17], %19 {strides = array<i32>} : memref<32x128xbf16, #tpu.memory_space<vmem>>, vector<32x128xbf16>,
    } else {
    }
    return
  }
  func.func @transform_0(%arg0: i32, %arg1: i32, %arg2: i32) -> (i32, i32) {
    %c0_i32 = arith.constant 0 : i32
    return %arg0, %arg2 : i32, i32
  }
  func.func @transform_1(%arg0: i32, %arg1: i32, %arg2: i32) -> (i32, i32) {
    %c0_i32 = arith.constant 0 : i32
    return %arg2, %arg1 : i32, i32
  }
  func.func @transform_2(%arg0: i32, %arg1: i32, %arg2: i32) -> (i32, i32) {
    %c0_i32 = arith.constant 0 : i32
    %c0_i32_0 = arith.constant 0 : i32
    return %c0_i32, %arg1 : i32, i32
  }
  func.func @transform_3(%arg0: i32, %arg1: i32, %arg2: i32) -> (i32, i32) {
    %c0_i32 = arith.constant 0 : i32
    %c0_i32_0 = arith.constant 0 : i32
    return %c0_i32, %arg1 : i32, i32
  }
  func.func @transform_4(%arg0: i32, %arg1: i32, %arg2: i32) -> (i32, i32) {
    %c0_i32 = arith.constant 0 : i32
    return %arg0, %arg1 : i32, i32
  }
}

module attributes {stable_mosaic.version = 11 : i64} {
  func.func @_fused_matmul_kernel(%arg0: i32, %arg1: i32, %arg2: i32, %arg3: memref<32x128xbf16, #tpu.memory_space<vmem>>, %arg4: memref<128x128xbf16, #tpu.memory_space<vmem>>, %arg5: memref<1x128xf32, #tpu.memory_space<vmem>>, %arg6: memref<1x128xf32, #tpu.memory_space<vmem>>, %arg7: memref<32x128xbf16, #tpu.memory_space<vmem>>, %arg8: memref<32x128xbf16, #tpu.memory_space<vmem>>, %arg9: memref<32x128xf32, #tpu.memory_space<vmem>>) attributes {dimension_semantics = [#tpu.dimension_semantics<parallel>, #tpu.dimension_semantics<parallel>, #tpu.dimension_semantics<arbitrary>], iteration_bounds = array<i64: 1, 1, 1>, scalar_prefetch = 0 : i64, scratch_operands = 1 : i64, tpu.core_type = #tpu.core_type<tc>, window_params = [{transform_indices = @transform_0, window_bounds = array<i64: 32, 128>}, {transform_indices = @transform_1, window_bounds = array<i64: 128, 128>}, {transform_indices = @transform_2, window_bounds = array<i64: 1, 128>}, {transform_indices = @transform_3, window_bounds = array<i64: 1, 128>}, {transform_indices = @transform_4, window_bounds = array<i64: 32, 128>}, {transform_indices = @transform_5, window_bounds = array<i64: 32, 128>}]} {
    %c0_i32 = arith.constant 0 : i32
    %0 = arith.cmpi eq, %arg2, %c0_i32 : i32
    %1 = arith.extui %0 : i1 to i32
    %c0_i32_0 = arith.constant 0 : i32
    %2 = arith.cmpi ne, %1, %c0_i32_0 : i32
    scf.if %2 {
      %cst_10 = arith.constant 0.000000e+00 : f32
      %12 = vector.broadcast %cst_10 : f32 to vector<32x128xf32>
      %c0_11 = arith.constant 0 : index
      %c0_12 = arith.constant 0 : index
      %13 = vector.load %arg9[%c0_11, %c0_12] : memref<32x128xf32, #tpu.memory_space<vmem>>, vector<32x128xf32>
      tpu.vector_store %arg9[%c0_11, %c0_12], %12 {strides = array<i32>} : memref<32x128xf32, #tpu.memory_space<vmem>>, vector<32x128xf32>,
    } else {
    }
    %c0 = arith.constant 0 : index
    %c0_1 = arith.constant 0 : index
    %3 = vector.load %arg9[%c0, %c0_1] : memref<32x128xf32, #tpu.memory_space<vmem>>, vector<32x128xf32>
    %c0_2 = arith.constant 0 : index
    %c0_3 = arith.constant 0 : index
    %4 = vector.load %arg3[%c0_2, %c0_3] : memref<32x128xbf16, #tpu.memory_space<vmem>>, vector<32x128xbf16>
    %c0_4 = arith.constant 0 : index
    %c0_5 = arith.constant 0 : index
    %5 = vector.load %arg4[%c0_4, %c0_5] : memref<128x128xbf16, #tpu.memory_space<vmem>>, vector<128x128xbf16>
    %cst = arith.constant dense<0.000000e+00> : vector<32x128xf32>
    %6 = tpu.matmul %4, %5, %cst {dimension_numbers = #tpu.dot_dimension_numbers<[1], [0], [0], [1], [0, 0, 1, 1], [], []>} : vector<32x128xbf16>, vector<128x128xbf16>, vector<32x128xf32> -> vector<32x128xf32>
    %7 = arith.addf %3, %6 : vector<32x128xf32>
    %c0_6 = arith.constant 0 : index
    %c0_7 = arith.constant 0 : index
    %8 = vector.load %arg9[%c0_6, %c0_7] : memref<32x128xf32, #tpu.memory_space<vmem>>, vector<32x128xf32>
    tpu.vector_store %arg9[%c0_6, %c0_7], %7 {strides = array<i32>} : memref<32x128xf32, #tpu.memory_space<vmem>>, vector<32x128xf32>,
    %c0_i32_8 = arith.constant 0 : i32
    %9 = arith.cmpi eq, %arg2, %c0_i32_8 : i32
    %10 = arith.extui %9 : i1 to i32
    %c0_i32_9 = arith.constant 0 : i32
    %11 = arith.cmpi ne, %10, %c0_i32_9 : i32
    scf.if %11 {
      %c0_10 = arith.constant 0 : index
      %c0_11 = arith.constant 0 : index
      %12 = vector.load %arg9[%c0_10, %c0_11] : memref<32x128xf32, #tpu.memory_space<vmem>>, vector<32x128xf32>
      %c0_12 = arith.constant 0 : index
      %c0_13 = arith.constant 0 : index
      %13 = vector.load %arg5[%c0_12, %c0_13] : memref<1x128xf32, #tpu.memory_space<vmem>>, vector<1x128xf32>
      %14 = vector.broadcast %13 : vector<1x128xf32> to vector<32x128xf32>
      %15 = arith.mulf %12, %14 : vector<32x128xf32>
      %c0_14 = arith.constant 0 : index
      %c0_15 = arith.constant 0 : index
      %16 = vector.load %arg6[%c0_14, %c0_15] : memref<1x128xf32, #tpu.memory_space<vmem>>, vector<1x128xf32>
      %17 = vector.broadcast %16 : vector<1x128xf32> to vector<32x128xf32>
      %18 = arith.addf %15, %17 : vector<32x128xf32>
      %c0_16 = arith.constant 0 : index
      %c0_17 = arith.constant 0 : index
      %19 = vector.load %arg7[%c0_16, %c0_17] : memref<32x128xbf16, #tpu.memory_space<vmem>>, vector<32x128xbf16>
      %20 = arith.extf %19 : vector<32x128xbf16> to vector<32x128xf32>
      %21 = arith.addf %18, %20 : vector<32x128xf32>
      %cst_18 = arith.constant 0.000000e+00 : f32
      %22 = vector.broadcast %cst_18 : f32 to vector<32x128xf32>
      %23 = arith.maximumf %21, %22 : vector<32x128xf32>
      %24 = arith.truncf %23 : vector<32x128xf32> to vector<32x128xbf16>
      %c0_19 = arith.constant 0 : index
      %c0_20 = arith.constant 0 : index
      %25 = vector.load %arg8[%c0_19, %c0_20] : memref<32x128xbf16, #tpu.memory_space<vmem>>, vector<32x128xbf16>
      tpu.vector_store %arg8[%c0_19, %c0_20], %24 {strides = array<i32>} : memref<32x128xbf16, #tpu.memory_space<vmem>>, vector<32x128xbf16>,
    } else {
    }
    return
  }
  func.func @transform_0(%arg0: i32, %arg1: i32, %arg2: i32) -> (i32, i32) {
    %c0_i32 = arith.constant 0 : i32
    return %arg0, %arg2 : i32, i32
  }
  func.func @transform_1(%arg0: i32, %arg1: i32, %arg2: i32) -> (i32, i32) {
    %c0_i32 = arith.constant 0 : i32
    return %arg2, %arg1 : i32, i32
  }
  func.func @transform_2(%arg0: i32, %arg1: i32, %arg2: i32) -> (i32, i32) {
    %c0_i32 = arith.constant 0 : i32
    %c0_i32_0 = arith.constant 0 : i32
    return %c0_i32, %arg1 : i32, i32
  }
  func.func @transform_3(%arg0: i32, %arg1: i32, %arg2: i32) -> (i32, i32) {
    %c0_i32 = arith.constant 0 : i32
    %c0_i32_0 = arith.constant 0 : i32
    return %c0_i32, %arg1 : i32, i32
  }
  func.func @transform_4(%arg0: i32, %arg1: i32, %arg2: i32) -> (i32, i32) {
    %c0_i32 = arith.constant 0 : i32
    return %arg0, %arg1 : i32, i32
  }
  func.func @transform_5(%arg0: i32, %arg1: i32, %arg2: i32) -> (i32, i32) {
    %c0_i32 = arith.constant 0 : i32
    return %arg0, %arg1 : i32, i32
  }
}

module attributes {stable_mosaic.version = 11 : i64} {
  func.func @_fused_matmul_kernel(%arg0: i32, %arg1: i32, %arg2: i32, %arg3: memref<32x128xbf16, #tpu.memory_space<vmem>>, %arg4: memref<128x128xbf16, #tpu.memory_space<vmem>>, %arg5: memref<1x128xf32, #tpu.memory_space<vmem>>, %arg6: memref<1x128xf32, #tpu.memory_space<vmem>>, %arg7: memref<32x128xbf16, #tpu.memory_space<vmem>>, %arg8: memref<32x128xf32, #tpu.memory_space<vmem>>) attributes {dimension_semantics = [#tpu.dimension_semantics<parallel>, #tpu.dimension_semantics<parallel>, #tpu.dimension_semantics<arbitrary>], iteration_bounds = array<i64: 1, 1, 1>, scalar_prefetch = 0 : i64, scratch_operands = 1 : i64, tpu.core_type = #tpu.core_type<tc>, window_params = [{transform_indices = @transform_0, window_bounds = array<i64: 32, 128>}, {transform_indices = @transform_1, window_bounds = array<i64: 128, 128>}, {transform_indices = @transform_2, window_bounds = array<i64: 1, 128>}, {transform_indices = @transform_3, window_bounds = array<i64: 1, 128>}, {transform_indices = @transform_4, window_bounds = array<i64: 32, 128>}]} {
    %c0_i32 = arith.constant 0 : i32
    %0 = arith.cmpi eq, %arg2, %c0_i32 : i32
    %1 = arith.extui %0 : i1 to i32
    %c0_i32_0 = arith.constant 0 : i32
    %2 = arith.cmpi ne, %1, %c0_i32_0 : i32
    scf.if %2 {
      %cst_10 = arith.constant 0.000000e+00 : f32
      %12 = vector.broadcast %cst_10 : f32 to vector<32x128xf32>
      %c0_11 = arith.constant 0 : index
      %c0_12 = arith.constant 0 : index
      %13 = vector.load %arg8[%c0_11, %c0_12] : memref<32x128xf32, #tpu.memory_space<vmem>>, vector<32x128xf32>
      tpu.vector_store %arg8[%c0_11, %c0_12], %12 {strides = array<i32>} : memref<32x128xf32, #tpu.memory_space<vmem>>, vector<32x128xf32>,
    } else {
    }
    %c0 = arith.constant 0 : index
    %c0_1 = arith.constant 0 : index
    %3 = vector.load %arg8[%c0, %c0_1] : memref<32x128xf32, #tpu.memory_space<vmem>>, vector<32x128xf32>
    %c0_2 = arith.constant 0 : index
    %c0_3 = arith.constant 0 : index
    %4 = vector.load %arg3[%c0_2, %c0_3] : memref<32x128xbf16, #tpu.memory_space<vmem>>, vector<32x128xbf16>
    %c0_4 = arith.constant 0 : index
    %c0_5 = arith.constant 0 : index
    %5 = vector.load %arg4[%c0_4, %c0_5] : memref<128x128xbf16, #tpu.memory_space<vmem>>, vector<128x128xbf16>
    %cst = arith.constant dense<0.000000e+00> : vector<32x128xf32>
    %6 = tpu.matmul %4, %5, %cst {dimension_numbers = #tpu.dot_dimension_numbers<[1], [0], [0], [1], [0, 0, 1, 1], [], []>} : vector<32x128xbf16>, vector<128x128xbf16>, vector<32x128xf32> -> vector<32x128xf32>
    %7 = arith.addf %3, %6 : vector<32x128xf32>
    %c0_6 = arith.constant 0 : index
    %c0_7 = arith.constant 0 : index
    %8 = vector.load %arg8[%c0_6, %c0_7] : memref<32x128xf32, #tpu.memory_space<vmem>>, vector<32x128xf32>
    tpu.vector_store %arg8[%c0_6, %c0_7], %7 {strides = array<i32>} : memref<32x128xf32, #tpu.memory_space<vmem>>, vector<32x128xf32>,
    %c0_i32_8 = arith.constant 0 : i32
    %9 = arith.cmpi eq, %arg2, %c0_i32_8 : i32
    %10 = arith.extui %9 : i1 to i32
    %c0_i32_9 = arith.constant 0 : i32
    %11 = arith.cmpi ne, %10, %c0_i32_9 : i32
    scf.if %11 {
      %c0_10 = arith.constant 0 : index
      %c0_11 = arith.constant 0 : index
      %12 = vector.load %arg8[%c0_10, %c0_11] : memref<32x128xf32, #tpu.memory_space<vmem>>, vector<32x128xf32>
      %c0_12 = arith.constant 0 : index
      %c0_13 = arith.constant 0 : index
      %13 = vector.load %arg5[%c0_12, %c0_13] : memref<1x128xf32, #tpu.memory_space<vmem>>, vector<1x128xf32>
      %14 = vector.broadcast %13 : vector<1x128xf32> to vector<32x128xf32>
      %15 = arith.mulf %12, %14 : vector<32x128xf32>
      %c0_14 = arith.constant 0 : index
      %c0_15 = arith.constant 0 : index
      %16 = vector.load %arg6[%c0_14, %c0_15] : memref<1x128xf32, #tpu.memory_space<vmem>>, vector<1x128xf32>
      %17 = vector.broadcast %16 : vector<1x128xf32> to vector<32x128xf32>
      %18 = arith.addf %15, %17 : vector<32x128xf32>
      %19 = arith.truncf %18 : vector<32x128xf32> to vector<32x128xbf16>
      %c0_16 = arith.constant 0 : index
      %c0_17 = arith.constant 0 : index
      %20 = vector.load %arg7[%c0_16, %c0_17] : memref<32x128xbf16, #tpu.memory_space<vmem>>, vector<32x128xbf16>
      tpu.vector_store %arg7[%c0_16, %c0_17], %19 {strides = array<i32>} : memref<32x128xbf16, #tpu.memory_space<vmem>>, vector<32x128xbf16>,
    } else {
    }
    return
  }
  func.func @transform_0(%arg0: i32, %arg1: i32, %arg2: i32) -> (i32, i32) {
    %c0_i32 = arith.constant 0 : i32
    return %arg0, %arg2 : i32, i32
  }
  func.func @transform_1(%arg0: i32, %arg1: i32, %arg2: i32) -> (i32, i32) {
    %c0_i32 = arith.constant 0 : i32
    return %arg2, %arg1 : i32, i32
  }
  func.func @transform_2(%arg0: i32, %arg1: i32, %arg2: i32) -> (i32, i32) {
    %c0_i32 = arith.constant 0 : i32
    %c0_i32_0 = arith.constant 0 : i32
    return %c0_i32, %arg1 : i32, i32
  }
  func.func @transform_3(%arg0: i32, %arg1: i32, %arg2: i32) -> (i32, i32) {
    %c0_i32 = arith.constant 0 : i32
    %c0_i32_0 = arith.constant 0 : i32
    return %c0_i32, %arg1 : i32, i32
  }
  func.func @transform_4(%arg0: i32, %arg1: i32, %arg2: i32) -> (i32, i32) {
    %c0_i32 = arith.constant 0 : i32
    return %arg0, %arg1 : i32, i32
  }
}

module attributes {stable_mosaic.version = 11 : i64} {
  func.func @_fused_matmul_kernel(%arg0: i32, %arg1: i32, %arg2: i32, %arg3: memref<16x128xbf16, #tpu.memory_space<vmem>>, %arg4: memref<128x128xbf16, #tpu.memory_space<vmem>>, %arg5: memref<1x128xf32, #tpu.memory_space<vmem>>, %arg6: memref<1x128xf32, #tpu.memory_space<vmem>>, %arg7: memref<16x128xbf16, #tpu.memory_space<vmem>>, %arg8: memref<16x128xf32, #tpu.memory_space<vmem>>) attributes {dimension_semantics = [#tpu.dimension_semantics<parallel>, #tpu.dimension_semantics<parallel>, #tpu.dimension_semantics<arbitrary>], iteration_bounds = array<i64: 1, 1, 3>, scalar_prefetch = 0 : i64, scratch_operands = 1 : i64, tpu.core_type = #tpu.core_type<tc>, window_params = [{transform_indices = @transform_0, window_bounds = array<i64: 16, 128>}, {transform_indices = @transform_1, window_bounds = array<i64: 128, 128>}, {transform_indices = @transform_2, window_bounds = array<i64: 1, 128>}, {transform_indices = @transform_3, window_bounds = array<i64: 1, 128>}, {transform_indices = @transform_4, window_bounds = array<i64: 16, 128>}]} {
    %c0_i32 = arith.constant 0 : i32
    %0 = arith.cmpi eq, %arg2, %c0_i32 : i32
    %1 = arith.extui %0 : i1 to i32
    %c0_i32_0 = arith.constant 0 : i32
    %2 = arith.cmpi ne, %1, %c0_i32_0 : i32
    scf.if %2 {
      %cst_9 = arith.constant 0.000000e+00 : f32
      %12 = vector.broadcast %cst_9 : f32 to vector<16x128xf32>
      %c0_10 = arith.constant 0 : index
      %c0_11 = arith.constant 0 : index
      %13 = vector.load %arg8[%c0_10, %c0_11] : memref<16x128xf32, #tpu.memory_space<vmem>>, vector<16x128xf32>
      tpu.vector_store %arg8[%c0_10, %c0_11], %12 {strides = array<i32>} : memref<16x128xf32, #tpu.memory_space<vmem>>, vector<16x128xf32>,
    } else {
    }
    %c0 = arith.constant 0 : index
    %c0_1 = arith.constant 0 : index
    %3 = vector.load %arg8[%c0, %c0_1] : memref<16x128xf32, #tpu.memory_space<vmem>>, vector<16x128xf32>
    %c0_2 = arith.constant 0 : index
    %c0_3 = arith.constant 0 : index
    %4 = vector.load %arg3[%c0_2, %c0_3] : memref<16x128xbf16, #tpu.memory_space<vmem>>, vector<16x128xbf16>
    %c0_4 = arith.constant 0 : index
    %c0_5 = arith.constant 0 : index
    %5 = vector.load %arg4[%c0_4, %c0_5] : memref<128x128xbf16, #tpu.memory_space<vmem>>, vector<128x128xbf16>
    %cst = arith.constant dense<0.000000e+00> : vector<16x128xf32>
    %6 = tpu.matmul %4, %5, %cst {dimension_numbers = #tpu.dot_dimension_numbers<[1], [0], [0], [1], [0, 0, 1, 1], [], []>} : vector<16x128xbf16>, vector<128x128xbf16>, vector<16x128xf32> -> vector<16x128xf32>
    %7 = arith.addf %3, %6 : vector<16x128xf32>
    %c0_6 = arith.constant 0 : index
    %c0_7 = arith.constant 0 : index
    %8 = vector.load %arg8[%c0_6, %c0_7] : memref<16x128xf32, #tpu.memory_space<vmem>>, vector<16x128xf32>
    tpu.vector_store %arg8[%c0_6, %c0_7], %7 {strides = array<i32>} : memref<16x128xf32, #tpu.memory_space<vmem>>, vector<16x128xf32>,
    %c2_i32 = arith.constant 2 : i32
    %9 = arith.cmpi eq, %arg2, %c2_i32 : i32
    %10 = arith.extui %9 : i1 to i32
    %c0_i32_8 = arith.constant 0 : i32
    %11 = arith.cmpi ne, %10, %c0_i32_8 : i32
    scf.if %11 {
      %c0_9 = arith.constant 0 : index
      %c0_10 = arith.constant 0 : index
      %12 = vector.load %arg8[%c0_9, %c0_10] : memref<16x128xf32, #tpu.memory_space<vmem>>, vector<16x128xf32>
      %c0_11 = arith.constant 0 : index
      %c0_12 = arith.constant 0 : index
      %13 = vector.load %arg5[%c0_11, %c0_12] : memref<1x128xf32, #tpu.memory_space<vmem>>, vector<1x128xf32>
      %14 = vector.broadcast %13 : vector<1x128xf32> to vector<16x128xf32>
      %15 = arith.mulf %12, %14 : vector<16x128xf32>
      %c0_13 = arith.constant 0 : index
      %c0_14 = arith.constant 0 : index
      %16 = vector.load %arg6[%c0_13, %c0_14] : memref<1x128xf32, #tpu.memory_space<vmem>>, vector<1x128xf32>
      %17 = vector.broadcast %16 : vector<1x128xf32> to vector<16x128xf32>
      %18 = arith.addf %15, %17 : vector<16x128xf32>
      %19 = arith.truncf %18 : vector<16x128xf32> to vector<16x128xbf16>
      %c0_15 = arith.constant 0 : index
      %c0_16 = arith.constant 0 : index
      %20 = vector.load %arg7[%c0_15, %c0_16] : memref<16x128xbf16, #tpu.memory_space<vmem>>, vector<16x128xbf16>
      tpu.vector_store %arg7[%c0_15, %c0_16], %19 {strides = array<i32>} : memref<16x128xbf16, #tpu.memory_space<vmem>>, vector<16x128xbf16>,
    } else {
    }
    return
  }
  func.func @transform_0(%arg0: i32, %arg1: i32, %arg2: i32) -> (i32, i32) {
    %c0_i32 = arith.constant 0 : i32
    return %arg0, %arg2 : i32, i32
  }
  func.func @transform_1(%arg0: i32, %arg1: i32, %arg2: i32) -> (i32, i32) {
    %c0_i32 = arith.constant 0 : i32
    return %arg2, %arg1 : i32, i32
  }
  func.func @transform_2(%arg0: i32, %arg1: i32, %arg2: i32) -> (i32, i32) {
    %c0_i32 = arith.constant 0 : i32
    %c0_i32_0 = arith.constant 0 : i32
    return %c0_i32, %arg1 : i32, i32
  }
  func.func @transform_3(%arg0: i32, %arg1: i32, %arg2: i32) -> (i32, i32) {
    %c0_i32 = arith.constant 0 : i32
    %c0_i32_0 = arith.constant 0 : i32
    return %c0_i32, %arg1 : i32, i32
  }
  func.func @transform_4(%arg0: i32, %arg1: i32, %arg2: i32) -> (i32, i32) {
    %c0_i32 = arith.constant 0 : i32
    return %arg0, %arg1 : i32, i32
  }
}

module attributes {stable_mosaic.version = 11 : i64} {
  func.func @_fused_matmul_kernel(%arg0: i32, %arg1: i32, %arg2: i32, %arg3: memref<16x128xbf16, #tpu.memory_space<vmem>>, %arg4: memref<128x128xbf16, #tpu.memory_space<vmem>>, %arg5: memref<1x128xf32, #tpu.memory_space<vmem>>, %arg6: memref<1x128xf32, #tpu.memory_space<vmem>>, %arg7: memref<16x128xbf16, #tpu.memory_space<vmem>>, %arg8: memref<16x128xf32, #tpu.memory_space<vmem>>) attributes {dimension_semantics = [#tpu.dimension_semantics<parallel>, #tpu.dimension_semantics<parallel>, #tpu.dimension_semantics<arbitrary>], iteration_bounds = array<i64: 1, 1, 1>, scalar_prefetch = 0 : i64, scratch_operands = 1 : i64, tpu.core_type = #tpu.core_type<tc>, window_params = [{transform_indices = @transform_0, window_bounds = array<i64: 16, 128>}, {transform_indices = @transform_1, window_bounds = array<i64: 128, 128>}, {transform_indices = @transform_2, window_bounds = array<i64: 1, 128>}, {transform_indices = @transform_3, window_bounds = array<i64: 1, 128>}, {transform_indices = @transform_4, window_bounds = array<i64: 16, 128>}]} {
    %c0_i32 = arith.constant 0 : i32
    %0 = arith.cmpi eq, %arg2, %c0_i32 : i32
    %1 = arith.extui %0 : i1 to i32
    %c0_i32_0 = arith.constant 0 : i32
    %2 = arith.cmpi ne, %1, %c0_i32_0 : i32
    scf.if %2 {
      %cst_10 = arith.constant 0.000000e+00 : f32
      %12 = vector.broadcast %cst_10 : f32 to vector<16x128xf32>
      %c0_11 = arith.constant 0 : index
      %c0_12 = arith.constant 0 : index
      %13 = vector.load %arg8[%c0_11, %c0_12] : memref<16x128xf32, #tpu.memory_space<vmem>>, vector<16x128xf32>
      tpu.vector_store %arg8[%c0_11, %c0_12], %12 {strides = array<i32>} : memref<16x128xf32, #tpu.memory_space<vmem>>, vector<16x128xf32>,
    } else {
    }
    %c0 = arith.constant 0 : index
    %c0_1 = arith.constant 0 : index
    %3 = vector.load %arg8[%c0, %c0_1] : memref<16x128xf32, #tpu.memory_space<vmem>>, vector<16x128xf32>
    %c0_2 = arith.constant 0 : index
    %c0_3 = arith.constant 0 : index
    %4 = vector.load %arg3[%c0_2, %c0_3] : memref<16x128xbf16, #tpu.memory_space<vmem>>, vector<16x128xbf16>
    %c0_4 = arith.constant 0 : index
    %c0_5 = arith.constant 0 : index
    %5 = vector.load %arg4[%c0_4, %c0_5] : memref<128x128xbf16, #tpu.memory_space<vmem>>, vector<128x128xbf16>
    %cst = arith.constant dense<0.000000e+00> : vector<16x128xf32>
    %6 = tpu.matmul %4, %5, %cst {dimension_numbers = #tpu.dot_dimension_numbers<[1], [0], [0], [1], [0, 0, 1, 1], [], []>} : vector<16x128xbf16>, vector<128x128xbf16>, vector<16x128xf32> -> vector<16x128xf32>
    %7 = arith.addf %3, %6 : vector<16x128xf32>
    %c0_6 = arith.constant 0 : index
    %c0_7 = arith.constant 0 : index
    %8 = vector.load %arg8[%c0_6, %c0_7] : memref<16x128xf32, #tpu.memory_space<vmem>>, vector<16x128xf32>
    tpu.vector_store %arg8[%c0_6, %c0_7], %7 {strides = array<i32>} : memref<16x128xf32, #tpu.memory_space<vmem>>, vector<16x128xf32>,
    %c0_i32_8 = arith.constant 0 : i32
    %9 = arith.cmpi eq, %arg2, %c0_i32_8 : i32
    %10 = arith.extui %9 : i1 to i32
    %c0_i32_9 = arith.constant 0 : i32
    %11 = arith.cmpi ne, %10, %c0_i32_9 : i32
    scf.if %11 {
      %c0_10 = arith.constant 0 : index
      %c0_11 = arith.constant 0 : index
      %12 = vector.load %arg8[%c0_10, %c0_11] : memref<16x128xf32, #tpu.memory_space<vmem>>, vector<16x128xf32>
      %c0_12 = arith.constant 0 : index
      %c0_13 = arith.constant 0 : index
      %13 = vector.load %arg5[%c0_12, %c0_13] : memref<1x128xf32, #tpu.memory_space<vmem>>, vector<1x128xf32>
      %14 = vector.broadcast %13 : vector<1x128xf32> to vector<16x128xf32>
      %15 = arith.mulf %12, %14 : vector<16x128xf32>
      %c0_14 = arith.constant 0 : index
      %c0_15 = arith.constant 0 : index
      %16 = vector.load %arg6[%c0_14, %c0_15] : memref<1x128xf32, #tpu.memory_space<vmem>>, vector<1x128xf32>
      %17 = vector.broadcast %16 : vector<1x128xf32> to vector<16x128xf32>
      %18 = arith.addf %15, %17 : vector<16x128xf32>
      %19 = arith.truncf %18 : vector<16x128xf32> to vector<16x128xbf16>
      %c0_16 = arith.constant 0 : index
      %c0_17 = arith.constant 0 : index
      %20 = vector.load %arg7[%c0_16, %c0_17] : memref<16x128xbf16, #tpu.memory_space<vmem>>, vector<16x128xbf16>
      tpu.vector_store %arg7[%c0_16, %c0_17], %19 {strides = array<i32>} : memref<16x128xbf16, #tpu.memory_space<vmem>>, vector<16x128xbf16>,
    } else {
    }
    return
  }
  func.func @transform_0(%arg0: i32, %arg1: i32, %arg2: i32) -> (i32, i32) {
    %c0_i32 = arith.constant 0 : i32
    return %arg0, %arg2 : i32, i32
  }
  func.func @transform_1(%arg0: i32, %arg1: i32, %arg2: i32) -> (i32, i32) {
    %c0_i32 = arith.constant 0 : i32
    return %arg2, %arg1 : i32, i32
  }
  func.func @transform_2(%arg0: i32, %arg1: i32, %arg2: i32) -> (i32, i32) {
    %c0_i32 = arith.constant 0 : i32
    %c0_i32_0 = arith.constant 0 : i32
    return %c0_i32, %arg1 : i32, i32
  }
  func.func @transform_3(%arg0: i32, %arg1: i32, %arg2: i32) -> (i32, i32) {
    %c0_i32 = arith.constant 0 : i32
    %c0_i32_0 = arith.constant 0 : i32
    return %c0_i32, %arg1 : i32, i32
  }
  func.func @transform_4(%arg0: i32, %arg1: i32, %arg2: i32) -> (i32, i32) {
    %c0_i32 = arith.constant 0 : i32
    return %arg0, %arg1 : i32, i32
  }
}

module attributes {stable_mosaic.version = 11 : i64} {
  func.func @_fused_matmul_kernel(%arg0: i32, %arg1: i32, %arg2: i32, %arg3: memref<16x128xbf16, #tpu.memory_space<vmem>>, %arg4: memref<128x128xbf16, #tpu.memory_space<vmem>>, %arg5: memref<1x128xf32, #tpu.memory_space<vmem>>, %arg6: memref<1x128xf32, #tpu.memory_space<vmem>>, %arg7: memref<16x128xbf16, #tpu.memory_space<vmem>>, %arg8: memref<16x128xbf16, #tpu.memory_space<vmem>>, %arg9: memref<16x128xf32, #tpu.memory_space<vmem>>) attributes {dimension_semantics = [#tpu.dimension_semantics<parallel>, #tpu.dimension_semantics<parallel>, #tpu.dimension_semantics<arbitrary>], iteration_bounds = array<i64: 1, 1, 1>, scalar_prefetch = 0 : i64, scratch_operands = 1 : i64, tpu.core_type = #tpu.core_type<tc>, window_params = [{transform_indices = @transform_0, window_bounds = array<i64: 16, 128>}, {transform_indices = @transform_1, window_bounds = array<i64: 128, 128>}, {transform_indices = @transform_2, window_bounds = array<i64: 1, 128>}, {transform_indices = @transform_3, window_bounds = array<i64: 1, 128>}, {transform_indices = @transform_4, window_bounds = array<i64: 16, 128>}, {transform_indices = @transform_5, window_bounds = array<i64: 16, 128>}]} {
    %c0_i32 = arith.constant 0 : i32
    %0 = arith.cmpi eq, %arg2, %c0_i32 : i32
    %1 = arith.extui %0 : i1 to i32
    %c0_i32_0 = arith.constant 0 : i32
    %2 = arith.cmpi ne, %1, %c0_i32_0 : i32
    scf.if %2 {
      %cst_10 = arith.constant 0.000000e+00 : f32
      %12 = vector.broadcast %cst_10 : f32 to vector<16x128xf32>
      %c0_11 = arith.constant 0 : index
      %c0_12 = arith.constant 0 : index
      %13 = vector.load %arg9[%c0_11, %c0_12] : memref<16x128xf32, #tpu.memory_space<vmem>>, vector<16x128xf32>
      tpu.vector_store %arg9[%c0_11, %c0_12], %12 {strides = array<i32>} : memref<16x128xf32, #tpu.memory_space<vmem>>, vector<16x128xf32>,
    } else {
    }
    %c0 = arith.constant 0 : index
    %c0_1 = arith.constant 0 : index
    %3 = vector.load %arg9[%c0, %c0_1] : memref<16x128xf32, #tpu.memory_space<vmem>>, vector<16x128xf32>
    %c0_2 = arith.constant 0 : index
    %c0_3 = arith.constant 0 : index
    %4 = vector.load %arg3[%c0_2, %c0_3] : memref<16x128xbf16, #tpu.memory_space<vmem>>, vector<16x128xbf16>
    %c0_4 = arith.constant 0 : index
    %c0_5 = arith.constant 0 : index
    %5 = vector.load %arg4[%c0_4, %c0_5] : memref<128x128xbf16, #tpu.memory_space<vmem>>, vector<128x128xbf16>
    %cst = arith.constant dense<0.000000e+00> : vector<16x128xf32>
    %6 = tpu.matmul %4, %5, %cst {dimension_numbers = #tpu.dot_dimension_numbers<[1], [0], [0], [1], [0, 0, 1, 1], [], []>} : vector<16x128xbf16>, vector<128x128xbf16>, vector<16x128xf32> -> vector<16x128xf32>
    %7 = arith.addf %3, %6 : vector<16x128xf32>
    %c0_6 = arith.constant 0 : index
    %c0_7 = arith.constant 0 : index
    %8 = vector.load %arg9[%c0_6, %c0_7] : memref<16x128xf32, #tpu.memory_space<vmem>>, vector<16x128xf32>
    tpu.vector_store %arg9[%c0_6, %c0_7], %7 {strides = array<i32>} : memref<16x128xf32, #tpu.memory_space<vmem>>, vector<16x128xf32>,
    %c0_i32_8 = arith.constant 0 : i32
    %9 = arith.cmpi eq, %arg2, %c0_i32_8 : i32
    %10 = arith.extui %9 : i1 to i32
    %c0_i32_9 = arith.constant 0 : i32
    %11 = arith.cmpi ne, %10, %c0_i32_9 : i32
    scf.if %11 {
      %c0_10 = arith.constant 0 : index
      %c0_11 = arith.constant 0 : index
      %12 = vector.load %arg9[%c0_10, %c0_11] : memref<16x128xf32, #tpu.memory_space<vmem>>, vector<16x128xf32>
      %c0_12 = arith.constant 0 : index
      %c0_13 = arith.constant 0 : index
      %13 = vector.load %arg5[%c0_12, %c0_13] : memref<1x128xf32, #tpu.memory_space<vmem>>, vector<1x128xf32>
      %14 = vector.broadcast %13 : vector<1x128xf32> to vector<16x128xf32>
      %15 = arith.mulf %12, %14 : vector<16x128xf32>
      %c0_14 = arith.constant 0 : index
      %c0_15 = arith.constant 0 : index
      %16 = vector.load %arg6[%c0_14, %c0_15] : memref<1x128xf32, #tpu.memory_space<vmem>>, vector<1x128xf32>
      %17 = vector.broadcast %16 : vector<1x128xf32> to vector<16x128xf32>
      %18 = arith.addf %15, %17 : vector<16x128xf32>
      %c0_16 = arith.constant 0 : index
      %c0_17 = arith.constant 0 : index
      %19 = vector.load %arg7[%c0_16, %c0_17] : memref<16x128xbf16, #tpu.memory_space<vmem>>, vector<16x128xbf16>
      %20 = arith.extf %19 : vector<16x128xbf16> to vector<16x128xf32>
      %21 = arith.addf %18, %20 : vector<16x128xf32>
      %cst_18 = arith.constant 0.000000e+00 : f32
      %22 = vector.broadcast %cst_18 : f32 to vector<16x128xf32>
      %23 = arith.maximumf %21, %22 : vector<16x128xf32>
      %24 = arith.truncf %23 : vector<16x128xf32> to vector<16x128xbf16>
      %c0_19 = arith.constant 0 : index
      %c0_20 = arith.constant 0 : index
      %25 = vector.load %arg8[%c0_19, %c0_20] : memref<16x128xbf16, #tpu.memory_space<vmem>>, vector<16x128xbf16>
      tpu.vector_store %arg8[%c0_19, %c0_20], %24 {strides = array<i32>} : memref<16x128xbf16, #tpu.memory_space<vmem>>, vector<16x128xbf16>,
    } else {
    }
    return
  }
  func.func @transform_0(%arg0: i32, %arg1: i32, %arg2: i32) -> (i32, i32) {
    %c0_i32 = arith.constant 0 : i32
    return %arg0, %arg2 : i32, i32
  }
  func.func @transform_1(%arg0: i32, %arg1: i32, %arg2: i32) -> (i32, i32) {
    %c0_i32 = arith.constant 0 : i32
    return %arg2, %arg1 : i32, i32
  }
  func.func @transform_2(%arg0: i32, %arg1: i32, %arg2: i32) -> (i32, i32) {
    %c0_i32 = arith.constant 0 : i32
    %c0_i32_0 = arith.constant 0 : i32
    return %c0_i32, %arg1 : i32, i32
  }
  func.func @transform_3(%arg0: i32, %arg1: i32, %arg2: i32) -> (i32, i32) {
    %c0_i32 = arith.constant 0 : i32
    %c0_i32_0 = arith.constant 0 : i32
    return %c0_i32, %arg1 : i32, i32
  }
  func.func @transform_4(%arg0: i32, %arg1: i32, %arg2: i32) -> (i32, i32) {
    %c0_i32 = arith.constant 0 : i32
    return %arg0, %arg1 : i32, i32
  }
  func.func @transform_5(%arg0: i32, %arg1: i32, %arg2: i32) -> (i32, i32) {
    %c0_i32 = arith.constant 0 : i32
    return %arg0, %arg1 : i32, i32
  }
}

module attributes {stable_mosaic.version = 11 : i64} {
  func.func @_head_kernel(%arg0: memref<8x4x128xbf16, #tpu.memory_space<vmem>>, %arg1: memref<128x512xbf16, #tpu.memory_space<vmem>>, %arg2: memref<1x512xf32, #tpu.memory_space<vmem>>, %arg3: memref<512x256xbf16, #tpu.memory_space<vmem>>, %arg4: memref<1x256xf32, #tpu.memory_space<vmem>>, %arg5: memref<256x128xbf16, #tpu.memory_space<vmem>>, %arg6: memref<1x128xf32, #tpu.memory_space<vmem>>, %arg7: memref<8x128xf32, #tpu.memory_space<vmem>>) attributes {dimension_semantics = [], scalar_prefetch = 0 : i64, scratch_operands = 0 : i64, tpu.core_type = #tpu.core_type<tc>} {
    %c0 = arith.constant 0 : index
    %c0_0 = arith.constant 0 : index
    %c0_1 = arith.constant 0 : index
    %0 = vector.load %arg0[%c0, %c0_0, %c0_1] : memref<8x4x128xbf16, #tpu.memory_space<vmem>>, vector<8x4x128xbf16>
    %1 = arith.extf %0 : vector<8x4x128xbf16> to vector<8x4x128xf32>
    %cst = arith.constant dense<0.000000e+00> : vector<8x128xf32>
    %2 = vector.multi_reduction <add>, %1, %cst [1] : vector<8x4x128xf32> to vector<8x128xf32>
    %cst_2 = arith.constant 4.000000e+00 : f32
    %3 = vector.broadcast %cst_2 : f32 to vector<8x128xf32>
    %4 = arith.divf %2, %3 : vector<8x128xf32>
    %5 = arith.truncf %4 : vector<8x128xf32> to vector<8x128xbf16>
    %c0_3 = arith.constant 0 : index
    %c0_4 = arith.constant 0 : index
    %6 = vector.load %arg1[%c0_3, %c0_4] : memref<128x512xbf16, #tpu.memory_space<vmem>>, vector<128x512xbf16>
    %cst_5 = arith.constant dense<0.000000e+00> : vector<8x512xf32>
    %7 = tpu.matmul %5, %6, %cst_5 {dimension_numbers = #tpu.dot_dimension_numbers<[1], [0], [0], [1], [0, 0, 1, 1], [], []>} : vector<8x128xbf16>, vector<128x512xbf16>, vector<8x512xf32> -> vector<8x512xf32>
    %c0_6 = arith.constant 0 : index
    %c0_7 = arith.constant 0 : index
    %8 = vector.load %arg2[%c0_6, %c0_7] : memref<1x512xf32, #tpu.memory_space<vmem>>, vector<1x512xf32>
    %9 = vector.broadcast %8 : vector<1x512xf32> to vector<8x512xf32>
    %10 = arith.addf %7, %9 : vector<8x512xf32>
    %cst_8 = arith.constant 0.000000e+00 : f32
    %11 = vector.broadcast %cst_8 : f32 to vector<8x512xf32>
    %12 = arith.cmpf oge, %10, %11 : vector<8x512xf32>
    %cst_9 = arith.constant 0.00999999977 : f32
    %13 = vector.broadcast %cst_9 : f32 to vector<8x512xf32>
    %14 = arith.mulf %13, %10 : vector<8x512xf32>
    %15 = arith.select %12, %10, %14 : vector<8x512xi1>, vector<8x512xf32>
    %16 = arith.truncf %15 : vector<8x512xf32> to vector<8x512xbf16>
    %c0_10 = arith.constant 0 : index
    %c0_11 = arith.constant 0 : index
    %17 = vector.load %arg3[%c0_10, %c0_11] : memref<512x256xbf16, #tpu.memory_space<vmem>>, vector<512x256xbf16>
    %cst_12 = arith.constant dense<0.000000e+00> : vector<8x256xf32>
    %18 = tpu.matmul %16, %17, %cst_12 {dimension_numbers = #tpu.dot_dimension_numbers<[1], [0], [0], [1], [0, 0, 1, 1], [], []>} : vector<8x512xbf16>, vector<512x256xbf16>, vector<8x256xf32> -> vector<8x256xf32>
    %c0_13 = arith.constant 0 : index
    %c0_14 = arith.constant 0 : index
    %19 = vector.load %arg4[%c0_13, %c0_14] : memref<1x256xf32, #tpu.memory_space<vmem>>, vector<1x256xf32>
    %20 = vector.broadcast %19 : vector<1x256xf32> to vector<8x256xf32>
    %21 = arith.addf %18, %20 : vector<8x256xf32>
    %cst_15 = arith.constant 0.000000e+00 : f32
    %22 = vector.broadcast %cst_15 : f32 to vector<8x256xf32>
    %23 = arith.cmpf oge, %21, %22 : vector<8x256xf32>
    %cst_16 = arith.constant 0.00999999977 : f32
    %24 = vector.broadcast %cst_16 : f32 to vector<8x256xf32>
    %25 = arith.mulf %24, %21 : vector<8x256xf32>
    %26 = arith.select %23, %21, %25 : vector<8x256xi1>, vector<8x256xf32>
    %27 = arith.truncf %26 : vector<8x256xf32> to vector<8x256xbf16>
    %c0_17 = arith.constant 0 : index
    %c0_18 = arith.constant 0 : index
    %28 = vector.load %arg5[%c0_17, %c0_18] : memref<256x128xbf16, #tpu.memory_space<vmem>>, vector<256x128xbf16>
    %cst_19 = arith.constant dense<0.000000e+00> : vector<8x128xf32>
    %29 = tpu.matmul %27, %28, %cst_19 {dimension_numbers = #tpu.dot_dimension_numbers<[1], [0], [0], [1], [0, 0, 1, 1], [], []>} : vector<8x256xbf16>, vector<256x128xbf16>, vector<8x128xf32> -> vector<8x128xf32>
    %c0_20 = arith.constant 0 : index
    %c0_21 = arith.constant 0 : index
    %30 = vector.load %arg6[%c0_20, %c0_21] : memref<1x128xf32, #tpu.memory_space<vmem>>, vector<1x128xf32>
    %31 = vector.broadcast %30 : vector<1x128xf32> to vector<8x128xf32>
    %32 = arith.addf %29, %31 : vector<8x128xf32>
    %c0_22 = arith.constant 0 : index
    %c0_23 = arith.constant 0 : index
    %33 = vector.load %arg7[%c0_22, %c0_23] : memref<8x128xf32, #tpu.memory_space<vmem>>, vector<8x128xf32>
    tpu.vector_store %arg7[%c0_22, %c0_23], %32 {strides = array<i32>} : memref<8x128xf32, #tpu.memory_space<vmem>>, vector<8x128xf32>,
    return
  }
}

</mosaic_0001>

<llo_original>
// kernel: _lambda_.33
$region0: #{_lambda_.33}
  #allocation0 [shape = 'u32[]', space=smem, size = 0x4, offset = 0x4, fixed_abs, tag = 'smem constant byte address 0x4 - core index']
  #allocation1 [shape = 'u32[144,128]{1,0:T(1,128)}', space=vmem, size = 0x12000, scoped, tag = 'internal scratch']
  #allocation2 [shape = 'f32[256,128]{1,0:T(8,128)}', space=vmem, size = 0x20000, scoped, tag = 'scratch operand']
  %s0 = inlined_call_operand.vmem [shape: bf16[512,256], index: 0, kind: input, shape index: {}]
  %s1 = inlined_call_operand.vmem [shape: bf16[256,128], index: 1, kind: input, shape index: {}]
  %s2 = inlined_call_operand.vmem [shape: f32[1,128], index: 2, kind: input, shape index: {}]
  %s3 = inlined_call_operand.vmem [shape: f32[1,128], index: 3, kind: input, shape index: {}]
  %s4 = inlined_call_operand.vmem [shape: bf16[512,128], index: 4, kind: output, shape index: {}]
  %s5 = sld [smem:[#allocation0]]
  $region57: #{_lambda_.33} parent=0
    _
  %s7 = ssub.s32 1, %s5
  %s8 = scalar_select 0, %s7, %s5
  loop: start=0, step=1, limit=4
  $region2: #{_lambda_.33} parent=0 // loop_pre_header
    _
  $region3: #{_lambda_.33} parent=0 // loop_header
    %s10 = sphi 0, %s14
    %p11 = scmp.ge.s32.totalorder %s10, 4
    %s17 = sphi 0, %s36
    %s18 = sphi 0, %s32
    %s19 = sphi 0, %s28
    %s20 = sphi 0, %s17
    %s21 = sphi 0, %s18
    %s22 = sphi 0, %s19
    %s23 = sphi 0, %s20
    %s24 = sphi 0, %s21
    %s25 = sphi 0, %s22
    %s41 = sphi 0, %s43
    %s44 = sphi 0, %s41
    %s45 = sphi 0, %s44
    %s61 = sphi 0, %s45
    %s69 = sphi 0, %s71
    %s72 = sphi 0, %s69
    %s73 = sphi 0, %s72
    %s89 = sphi 0, %s73
    %s95 = sphi 0, %s97
    %s98 = sphi 0, %s95
    %s99 = sphi 0, %s98
    %s115 = sphi 0, %s99
    %s121 = sphi 0, %s123
    %s124 = sphi 0, %s121
    %s125 = sphi 0, %s124
    %s141 = sphi 0, %s125
    %s149 = sphi 0, %s151
    %s152 = sphi 0, %s149
    %s153 = sphi 0, %s152
    %s169 = sphi 0, %s153
  $region4: #{_lambda_.33} parent=0 // loop_header_branch
    %13 = sbr.rel (%p11) target = $region8
  $region5: #{_lambda_.33} parent=0 // loop_body
    %s15 = ssub.s32 %s10, 1
    %s16 = ssub.s32 %s10, 2
    %s26 = sadd.s32 1, %s19
    %p27 = scmp.ge.s32.totalorder %s26, 1
    %s28 = scalar_select %p27, 0, %s26
    %s29 = sadd.s32 1, %s18
    %s30 = scalar_select %p27, %s29, %s18
    %p31 = scmp.ge.s32.totalorder %s30, 1
    %s32 = scalar_select %p31, 0, %s30
    %s33 = sadd.s32 1, %s17
    %s34 = scalar_select %p31, %s33, %s17
    %p35 = scmp.ge.s32.totalorder %s34, 2
    %s36 = scalar_select %p35, 0, %s34
    %s37 = ssub.s32 %s17, %s36
    %s38 = ssub.s32 %s19, %s28
    %s39 = sor.u32 %s37, %s38
    %p40 = scmp.eq.s32.totalorder %s39, 0
    %s42 = sadd.s32 %s41, 1
    %s43 = scalar_select %p40, %s41, %s42
    %p46 = pneg %p40
    %p47 = scmp.eq.s32.totalorder %s10, 1
    %p48 = por %p46, %p47
    %p49 = scmp.ne.s32.totalorder %s41, %s44
    %p50 = scmp.eq.s32.totalorder %s10, 0
    %p51 = por %p49, %p50
    %p52 = scmp.ne.s32.totalorder %s41, %s44
    %p53 = scmp.eq.s32.totalorder %s15, 1
    %p54 = por %p52, %p53
    %p55 = scmp.ne.s32.totalorder %s44, %s45
    %p56 = scmp.eq.s32.totalorder %s15, 0
    %p57 = por %p55, %p56
    %p58 = scmp.ne.s32.totalorder %s44, %s45
    %p59 = scmp.eq.s32.totalorder %s16, 1
    %p60 = por %p58, %p59
    %p62 = scmp.ne.s32.totalorder %s45, %s61
    %p63 = scmp.eq.s32.totalorder %s16, 0
    %p64 = por %p62, %p63
    %s65 = ssub.s32 %s19, %s28
    %s66 = ssub.s32 %s18, %s32
    %s67 = sor.u32 %s65, %s66
    %p68 = scmp.eq.s32.totalorder %s67, 0
    %s70 = sadd.s32 %s69, 1
    %s71 = scalar_select %p68, %s69, %s70
    %p74 = pneg %p68
    %p75 = scmp.eq.s32.totalorder %s10, 1
    %p76 = por %p74, %p75
    %p77 = scmp.ne.s32.totalorder %s69, %s72
    %p78 = scmp.eq.s32.totalorder %s10, 0
    %p79 = por %p77, %p78
    %p80 = scmp.ne.s32.totalorder %s69, %s72
    %p81 = scmp.eq.s32.totalorder %s15, 1
    %p82 = por %p80, %p81
    %p83 = scmp.ne.s32.totalorder %s72, %s73
    %p84 = scmp.eq.s32.totalorder %s15, 0
    %p85 = por %p83, %p84
    %p86 = scmp.ne.s32.totalorder %s72, %s73
    %p87 = scmp.eq.s32.totalorder %s16, 1
    %p88 = por %p86, %p87
    %p90 = scmp.ne.s32.totalorder %s73, %s89
    %p91 = scmp.eq.s32.totalorder %s16, 0
    %p92 = por %p90, %p91
    %s93 = ssub.s32 %s18, %s32
    %p94 = scmp.eq.s32.totalorder %s93, 0
    %s96 = sadd.s32 %s95, 1
    %s97 = scalar_select %p94, %s95, %s96
    %p100 = pneg %p94
    %p101 = scmp.eq.s32.totalorder %s10, 1
    %p102 = por %p100, %p101
    %p103 = scmp.ne.s32.totalorder %s95, %s98
    %p104 = scmp.eq.s32.totalorder %s10, 0
    %p105 = por %p103, %p104
    %p106 = scmp.ne.s32.totalorder %s95, %s98
    %p107 = scmp.eq.s32.totalorder %s15, 1
    %p108 = por %p106, %p107
    %p109 = scmp.ne.s32.totalorder %s98, %s99
    %p110 = scmp.eq.s32.totalorder %s15, 0
    %p111 = por %p109, %p110
    %p112 = scmp.ne.s32.totalorder %s98, %s99
    %p113 = scmp.eq.s32.totalorder %s16, 1
    %p114 = por %p112, %p113
    %p116 = scmp.ne.s32.totalorder %s99, %s115
    %p117 = scmp.eq.s32.totalorder %s16, 0
    %p118 = por %p116, %p117
    %s119 = ssub.s32 %s18, %s32
    %p120 = scmp.eq.s32.totalorder %s119, 0
    %s122 = sadd.s32 %s121, 1
    %s123 = scalar_select %p120, %s121, %s122
    %p126 = pneg %p120
    %p127 = scmp.eq.s32.totalorder %s10, 1
    %p128 = por %p126, %p127
    %p129 = scmp.ne.s32.totalorder %s121, %s124
    %p130 = scmp.eq.s32.totalorder %s10, 0
    %p131 = por %p129, %p130
    %p132 = scmp.ne.s32.totalorder %s121, %s124
    %p133 = scmp.eq.s32.totalorder %s15, 1
    %p134 = por %p132, %p133
    %p135 = scmp.ne.s32.totalorder %s124, %s125
    %p136 = scmp.eq.s32.totalorder %s15, 0
    %p137 = por %p135, %p136
    %p138 = scmp.ne.s32.totalorder %s124, %s125
    %p139 = scmp.eq.s32.totalorder %s16, 1
    %p140 = por %p138, %p139
    %p142 = scmp.ne.s32.totalorder %s125, %s141
    %p143 = scmp.eq.s32.totalorder %s16, 0
    %p144 = por %p142, %p143
    %s145 = ssub.s32 %s17, %s36
    %s146 = ssub.s32 %s18, %s32
    %s147 = sor.u32 %s145, %s146
    %p148 = scmp.eq.s32.totalorder %s147, 0
    %s150 = sadd.s32 %s149, 1
    %s151 = scalar_select %p148, %s149, %s150
    %p154 = pneg %p148
    %p155 = scmp.eq.s32.totalorder %s10, 1
    %p156 = por %p154, %p155
    %p157 = scmp.ne.s32.totalorder %s149, %s152
    %p158 = scmp.eq.s32.totalorder %s10, 0
    %p159 = por %p157, %p158
    %p160 = scmp.ne.s32.totalorder %s149, %s152
    %p161 = scmp.eq.s32.totalorder %s15, 1
    %p162 = por %p160, %p161
    %p163 = scmp.ne.s32.totalorder %s152, %s153
    %p164 = scmp.eq.s32.totalorder %s15, 0
    %p165 = por %p163, %p164
    %p166 = scmp.ne.s32.totalorder %s152, %s153
    %p167 = scmp.eq.s32.totalorder %s16, 1
    %p168 = por %p166, %p167
    %p170 = scmp.ne.s32.totalorder %s153, %s169
    %p171 = scmp.eq.s32.totalorder %s16, 0
    %p172 = por %p170, %p171
    %p173 = scmp.le.s32.totalorder 1, %s10
    %p174 = scmp.lt.s32.totalorder %s10, 3
    %p175 = pnand %p173, %p174
    %p176 = pneg %p175
    // Predicated region
    $region9: #{_lambda_.33} parent=5 // pred_check
      _
    $region10: #{_lambda_.33} parent=5 // pred_check_branch
      %178 = sbr.rel (%p175) target = $region12
    $region11: #{_lambda_.33} parent=5 // pred_region
      %s179 = ssub.s32 %s10, 1
      // Predicated region
      $region13: #{_lambda_.33} parent=11 // pred_check
        %p180 = pneg %p85
      $region14: #{_lambda_.33} parent=11 // pred_check_branch
        %182 = sbr.rel (%p180) target = $region16
      $region15: #{_lambda_.33} parent=11 // pred_region
        %s183 = smul.u32 32, %s22
        %p184 = scmp.lt.s32.totalorder %s183, 31
        %s185 = scalar_select %p184, %s183, 31
        %p186 = scmp.lt.s32.totalorder %s21, 0
        %s187 = scalar_select %p186, %s21, 0
        %s188 = sadd.s32 %s187, %s185
        %s189 = smul.addr %s188, 4
        %s190 = scalar_lea.vmem %s1, %s189
        %s191 = smul.u32 32, %s22
      $region16: #{_lambda_.33} parent=11 // pred_fallthru
        _
      // Predicated region
      $region17: #{_lambda_.33} parent=11 // pred_check
        %p192 = pneg %p111
      $region18: #{_lambda_.33} parent=11 // pred_check_branch
        %194 = sbr.rel (%p192) target = $region20
      $region19: #{_lambda_.33} parent=11 // pred_region
        %p195 = scmp.lt.s32.totalorder %s21, 0
        %s196 = scalar_select %p195, %s21, 0
        %s197 = scalar_lea.vmem %s2, %s196
      $region20: #{_lambda_.33} parent=11 // pred_fallthru
        _
      // Predicated region
      $region21: #{_lambda_.33} parent=11 // pred_check
        %p198 = pneg %p137
      $region22: #{_lambda_.33} parent=11 // pred_check_branch
        %200 = sbr.rel (%p198) target = $region24
      $region23: #{_lambda_.33} parent=11 // pred_region
        %p201 = scmp.lt.s32.totalorder %s21, 0
        %s202 = scalar_select %p201, %s21, 0
        %s203 = scalar_lea.vmem %s3, %s202
      $region24: #{_lambda_.33} parent=11 // pred_fallthru
        _
    $region12: #{_lambda_.33} parent=5 // pred_fallthru
      _
    %p204 = scmp.lt.s32.totalorder %s10, 2
    // Predicated region
    $region25: #{_lambda_.33} parent=5 // pred_check
      %p205 = pneg %p204
    $region26: #{_lambda_.33} parent=5 // pred_check_branch
      %207 = sbr.rel (%p205) target = $region28
    $region27: #{_lambda_.33} parent=5 // pred_region
      // Predicated region
      $region29: #{_lambda_.33} parent=27 // pred_check
        %p208 = pneg %p51
      $region30: #{_lambda_.33} parent=27 // pred_check_branch
        %210 = sbr.rel (%p208) target = $region32
      $region31: #{_lambda_.33} parent=27 // pred_region
        %s211 = smul.u32 32, %s17
        %s212 = smul.u32 2, %s19
        %p213 = scmp.lt.s32.totalorder %s211, 63
        %s214 = scalar_select %p213, %s211, 63
        %p215 = scmp.lt.s32.totalorder %s212, 1
        %s216 = scalar_select %p215, %s212, 1
        %s217 = smul.addr %s214, 2
        %s218 = sadd.s32 %s216, %s217
        %s219 = smul.addr %s218, 4
        %s220 = scalar_lea.vmem %s0, %s219
        %s221 = smul.u32 32, %s17
        %s222 = smul.u32 2, %s19
      $region32: #{_lambda_.33} parent=27 // pred_fallthru
        _
    $region28: #{_lambda_.33} parent=5 // pred_fallthru
      _
    %p223 = scmp.le.s32.totalorder 1, %s10
    %p224 = scmp.lt.s32.totalorder %s10, 3
    %p225 = pnand %p223, %p224
    %p226 = pneg %p225
    // Predicated region
    $region33: #{_lambda_.33} parent=5 // pred_check
      _
    $region34: #{_lambda_.33} parent=5 // pred_check_branch
      %228 = sbr.rel (%p225) target = $region36
    $region35: #{_lambda_.33} parent=5 // pred_region
      %s229 = ssub.s32 %s10, 1
      %s230 = smul.u32 32, %s20
      %s231 = smul.u32 2, %s22
      %p232 = scmp.lt.s32.totalorder %s230, 63
      %s233 = scalar_select %p232, %s230, 63
      %p234 = scmp.lt.s32.totalorder %s231, 1
      %s235 = scalar_select %p234, %s231, 1
      %s236 = smul.addr %s233, 2
      %s237 = sadd.s32 %s235, %s236
      %s238 = smul.addr %s237, 4
      %s239 = scalar_lea.vmem %s0, %s238
      %p240 = pneg %p57
      %p241 = pneg %p54
      %s242 = smul.u32 32, %s22
      %p243 = scmp.lt.s32.totalorder %s242, 31
      %s244 = scalar_select %p243, %s242, 31
      %p245 = scmp.lt.s32.totalorder %s21, 0
      %s246 = scalar_select %p245, %s21, 0
      %s247 = sadd.s32 %s246, %s244
      %s248 = smul.addr %s247, 4
      %s249 = scalar_lea.vmem %s1, %s248
      %p250 = pneg %p85
      %p251 = pneg %p82
      %p252 = scmp.lt.s32.totalorder %s21, 0
      %s253 = scalar_select %p252, %s21, 0
      %s254 = scalar_lea.vmem %s2, %s253
      %p255 = pneg %p111
      %p256 = pneg %p108
      %p257 = scmp.lt.s32.totalorder %s21, 0
      %s258 = scalar_select %p257, %s21, 0
      %s259 = scalar_lea.vmem %s3, %s258
      %p260 = pneg %p137
      %p261 = pneg %p134
      %p262 = pneg %p165
      %p263 = pneg %p162
      %s264 = smul.u32 32, %s20
      %p265 = scmp.lt.s32.totalorder %s264, 63
      %s266 = scalar_select %p265, %s264, 63
      %p267 = scmp.lt.s32.totalorder %s21, 0
      %s268 = scalar_select %p267, %s21, 0
      %s269 = sadd.s32 %s268, %s266
      %s270 = smul.addr %s269, 4
      %s271 = scalar_lea.vmem %s4, %s270
      %s272 = smul.u32 32, %s20
      %s273 = smul.u32 2, %s22
      %p274 = scmp.lt.s32.totalorder %s272, 63
      %s275 = scalar_select %p274, %s272, 63
      %p276 = scmp.lt.s32.totalorder %s273, 1
      %s277 = scalar_select %p276, %s273, 1
      %s278 = smul.addr %s275, 2
      %s279 = sadd.s32 %s277, %s278
      %s280 = smul.addr %s279, 4
      %s281 = scalar_lea.vmem %s0, %s280
      %s282 = smul.u32 32, %s20
      %s283 = smul.u32 2, %s22
      %s284 = smul.u32 32, %s22
      %p285 = scmp.lt.s32.totalorder %s284, 31
      %s286 = scalar_select %p285, %s284, 31
      %p287 = scmp.lt.s32.totalorder %s21, 0
      %s288 = scalar_select %p287, %s21, 0
      %s289 = sadd.s32 %s288, %s286
      %s290 = smul.addr %s289, 4
      %s291 = scalar_lea.vmem %s1, %s290
      %s292 = smul.u32 32, %s22
      %p293 = scmp.lt.s32.totalorder %s21, 0
      %s294 = scalar_select %p293, %s21, 0
      %s295 = scalar_lea.vmem %s2, %s294
      %p296 = scmp.lt.s32.totalorder %s21, 0
      %s297 = scalar_select %p296, %s21, 0
      %s298 = scalar_lea.vmem %s3, %s297
      %s299 = smul.u32 32, %s20
      %p300 = scmp.lt.s32.totalorder %s299, 63
      %s301 = scalar_select %p300, %s299, 63
      %p302 = scmp.lt.s32.totalorder %s21, 0
      %s303 = scalar_select %p302, %s21, 0
      %s304 = sadd.s32 %s303, %s301
      %s305 = smul.addr %s304, 4
      %s306 = scalar_lea.vmem %s4, %s305
      %s307 = smul.u32 32, %s20
      %p309 = scmp.eq.s32.totalorder %s22, 0
      // Predicated region
      $region37: #{_lambda_.33} parent=35 // pred_check
        %p310 = pneg %p309
      $region38: #{_lambda_.33} parent=35 // pred_check_branch
        %312 = sbr.rel (%p310) target = $region40
      $region39: #{_lambda_.33} parent=35 // pred_region
        %313 = vst [vmem:[#allocation2] sm:$0xff] 0.0
        %314 = vst [vmem:[#allocation2 + $0x8] sm:$0xff] 0.0
        %315 = vst [vmem:[#allocation2 + $0x10] sm:$0xff] 0.0
        %316 = vst [vmem:[#allocation2 + $0x18] sm:$0xff] 0.0
        %317 = vst [vmem:[#allocation2 + $0x20] sm:$0xff] 0.0
        %318 = vst [vmem:[#allocation2 + $0x28] sm:$0xff] 0.0
        %319 = vst [vmem:[#allocation2 + $0x30] sm:$0xff] 0.0
        %320 = vst [vmem:[#allocation2 + $0x38] sm:$0xff] 0.0
        %321 = vst [vmem:[#allocation2 + $0x40] sm:$0xff] 0.0
        %322 = vst [vmem:[#allocation2 + $0x48] sm:$0xff] 0.0
        %323 = vst [vmem:[#allocation2 + $0x50] sm:$0xff] 0.0
        %324 = vst [vmem:[#allocation2 + $0x58] sm:$0xff] 0.0
        %325 = vst [vmem:[#allocation2 + $0x60] sm:$0xff] 0.0
        %326 = vst [vmem:[#allocation2 + $0x68] sm:$0xff] 0.0
        %327 = vst [vmem:[#allocation2 + $0x70] sm:$0xff] 0.0
        %328 = vst [vmem:[#allocation2 + $0x78] sm:$0xff] 0.0
        %329 = vst [vmem:[#allocation2 + $0x80] sm:$0xff] 0.0
        %330 = vst [vmem:[#allocation2 + $0x88] sm:$0xff] 0.0
        %331 = vst [vmem:[#allocation2 + $0x90] sm:$0xff] 0.0
        %332 = vst [vmem:[#allocation2 + $0x98] sm:$0xff] 0.0
        %333 = vst [vmem:[#allocation2 + $0xa0] sm:$0xff] 0.0
        %334 = vst [vmem:[#allocation2 + $0xa8] sm:$0xff] 0.0
        %335 = vst [vmem:[#allocation2 + $0xb0] sm:$0xff] 0.0
        %336 = vst [vmem:[#allocation2 + $0xb8] sm:$0xff] 0.0
        %337 = vst [vmem:[#allocation2 + $0xc0] sm:$0xff] 0.0
        %338 = vst [vmem:[#allocation2 + $0xc8] sm:$0xff] 0.0
        %339 = vst [vmem:[#allocation2 + $0xd0] sm:$0xff] 0.0
        %340 = vst [vmem:[#allocation2 + $0xd8] sm:$0xff] 0.0
        %341 = vst [vmem:[#allocation2 + $0xe0] sm:$0xff] 0.0
        %342 = vst [vmem:[#allocation2 + $0xe8] sm:$0xff] 0.0
        %343 = vst [vmem:[#allocation2 + $0xf0] sm:$0xff] 0.0
        %344 = vst [vmem:[#allocation2 + $0xf8] sm:$0xff] 0.0
      $region40: #{_lambda_.33} parent=35 // pred_fallthru
        _
      %v345 = vld [vmem:[#allocation2] sm:$0xff]
      %v346 = vld [vmem:[#allocation2 + $0x8] sm:$0xff]
      %v347 = vld [vmem:[#allocation2 + $0x10] sm:$0xff]
      %v348 = vld [vmem:[#allocation2 + $0x18] sm:$0xff]
      %v349 = vld [vmem:[#allocation2 + $0x20] sm:$0xff]
      %v350 = vld [vmem:[#allocation2 + $0x28] sm:$0xff]
      %v351 = vld [vmem:[#allocation2 + $0x30] sm:$0xff]
      %v352 = vld [vmem:[#allocation2 + $0x38] sm:$0xff]
      %v353 = vld [vmem:[#allocation2 + $0x40] sm:$0xff]
      %v354 = vld [vmem:[#allocation2 + $0x48] sm:$0xff]
      %v355 = vld [vmem:[#allocation2 + $0x50] sm:$0xff]
      %v356 = vld [vmem:[#allocation2 + $0x58] sm:$0xff]
      %v357 = vld [vmem:[#allocation2 + $0x60] sm:$0xff]
      %v358 = vld [vmem:[#allocation2 + $0x68] sm:$0xff]
      %v359 = vld [vmem:[#allocation2 + $0x70] sm:$0xff]
      %v360 = vld [vmem:[#allocation2 + $0x78] sm:$0xff]
      %v361 = vld [vmem:[#allocation2 + $0x80] sm:$0xff]
      %v362 = vld [vmem:[#allocation2 + $0x88] sm:$0xff]
      %v363 = vld [vmem:[#allocation2 + $0x90] sm:$0xff]
      %v364 = vld [vmem:[#allocation2 + $0x98] sm:$0xff]
      %v365 = vld [vmem:[#allocation2 + $0xa0] sm:$0xff]
      %v366 = vld [vmem:[#allocation2 + $0xa8] sm:$0xff]
      %v367 = vld [vmem:[#allocation2 + $0xb0] sm:$0xff]
      %v368 = vld [vmem:[#allocation2 + $0xb8] sm:$0xff]
      %v369 = vld [vmem:[#allocation2 + $0xc0] sm:$0xff]
      %v370 = vld [vmem:[#allocation2 + $0xc8] sm:$0xff]
      %v371 = vld [vmem:[#allocation2 + $0xd0] sm:$0xff]
      %v372 = vld [vmem:[#allocation2 + $0xd8] sm:$0xff]
      %v373 = vld [vmem:[#allocation2 + $0xe0] sm:$0xff]
      %v374 = vld [vmem:[#allocation2 + $0xe8] sm:$0xff]
      %v375 = vld [vmem:[#allocation2 + $0xf0] sm:$0xff]
      %v376 = vld [vmem:[#allocation2 + $0xf8] sm:$0xff]
      %v377 = vld [vmem:[%s281] sm:$0xff]
      %v378 = vld [vmem:[%s281 + $0x8] sm:$0xff]
      %v379 = vld [vmem:[%s281 + $0x10] sm:$0xff]
      %v380 = vld [vmem:[%s281 + $0x18] sm:$0xff]
      %v381 = vld [vmem:[%s281 + $0x20] sm:$0xff]
      %v382 = vld [vmem:[%s281 + $0x28] sm:$0xff]
      %v383 = vld [vmem:[%s281 + $0x30] sm:$0xff]
      %v384 = vld [vmem:[%s281 + $0x38] sm:$0xff]
      %v385 = vld [vmem:[%s281 + $0x40] sm:$0xff]
      %v386 = vld [vmem:[%s281 + $0x48] sm:$0xff]
      %v387 = vld [vmem:[%s281 + $0x50] sm:$0xff]
      %v388 = vld [vmem:[%s281 + $0x58] sm:$0xff]
      %v389 = vld [vmem:[%s281 + $0x60] sm:$0xff]
      %v390 = vld [vmem:[%s281 + $0x68] sm:$0xff]
      %v391 = vld [vmem:[%s281 + $0x70] sm:$0xff]
      %v392 = vld [vmem:[%s281 + $0x78] sm:$0xff]
      %v393 = vld [vmem:[%s281 + $0x80] sm:$0xff]
      %v394 = vld [vmem:[%s281 + $0x88] sm:$0xff]
      %v395 = vld [vmem:[%s281 + $0x90] sm:$0xff]
      %v396 = vld [vmem:[%s281 + $0x98] sm:$0xff]
      %v397 = vld [vmem:[%s281 + $0xa0] sm:$0xff]
      %v398 = vld [vmem:[%s281 + $0xa8] sm:$0xff]
      %v399 = vld [vmem:[%s281 + $0xb0] sm:$0xff]
      %v400 = vld [vmem:[%s281 + $0xb8] sm:$0xff]
      %v401 = vld [vmem:[%s281 + $0xc0] sm:$0xff]
      %v402 = vld [vmem:[%s281 + $0xc8] sm:$0xff]
      %v403 = vld [vmem:[%s281 + $0xd0] sm:$0xff]
      %v404 = vld [vmem:[%s281 + $0xd8] sm:$0xff]
      %v405 = vld [vmem:[%s281 + $0xe0] sm:$0xff]
      %v406 = vld [vmem:[%s281 + $0xe8] sm:$0xff]
      %v407 = vld [vmem:[%s281 + $0xf0] sm:$0xff]
      %v408 = vld [vmem:[%s281 + $0xf8] sm:$0xff]
      %v409 = vld [vmem:[%s291] sm:$0xf]
      %v410 = vld [vmem:[%s291 + $0x4] sm:$0xf]
      %v411 = vld [vmem:[%s291 + $0x8] sm:$0xf]
      %v412 = vld [vmem:[%s291 + $0xc] sm:$0xf]
      %v413 = vld [vmem:[%s291 + $0x10] sm:$0xf]
      %v414 = vld [vmem:[%s291 + $0x14] sm:$0xf]
      %v415 = vld [vmem:[%s291 + $0x18] sm:$0xf]
      %v416 = vld [vmem:[%s291 + $0x1c] sm:$0xf]
      %v417 = vld [vmem:[%s291 + $0x20] sm:$0xf]
      %v418 = vld [vmem:[%s291 + $0x24] sm:$0xf]
      %v419 = vld [vmem:[%s291 + $0x28] sm:$0xf]
      %v420 = vld [vmem:[%s291 + $0x2c] sm:$0xf]
      %v421 = vld [vmem:[%s291 + $0x30] sm:$0xf]
      %v422 = vld [vmem:[%s291 + $0x34] sm:$0xf]
      %v423 = vld [vmem:[%s291 + $0x38] sm:$0xf]
      %v424 = vld [vmem:[%s291 + $0x3c] sm:$0xf]
      %v425 = vld [vmem:[%s291 + $0x40] sm:$0xf]
      %v426 = vld [vmem:[%s291 + $0x44] sm:$0xf]
      %v427 = vld [vmem:[%s291 + $0x48] sm:$0xf]
      %v428 = vld [vmem:[%s291 + $0x4c] sm:$0xf]
      %v429 = vld [vmem:[%s291 + $0x50] sm:$0xf]
      %v430 = vld [vmem:[%s291 + $0x54] sm:$0xf]
      %v431 = vld [vmem:[%s291 + $0x58] sm:$0xf]
      %v432 = vld [vmem:[%s291 + $0x5c] sm:$0xf]
      %v433 = vld [vmem:[%s291 + $0x60] sm:$0xf]
      %v434 = vld [vmem:[%s291 + $0x64] sm:$0xf]
      %v435 = vld [vmem:[%s291 + $0x68] sm:$0xf]
      %v436 = vld [vmem:[%s291 + $0x6c] sm:$0xf]
      %v437 = vld [vmem:[%s291 + $0x70] sm:$0xf]
      %v438 = vld [vmem:[%s291 + $0x74] sm:$0xf]
      %v439 = vld [vmem:[%s291 + $0x78] sm:$0xf]
      %v440 = vld [vmem:[%s291 + $0x7c] sm:$0xf]
      %v473 = vunpack.c.l.b16 %v377
      %v474 = vunpack.c.h.b16 %v377
      %v475 = vunpack.c.l.b16 %v378
      %v476 = vunpack.c.h.b16 %v378
      %v477 = vunpack.c.l.b16 %v379
      %v478 = vunpack.c.h.b16 %v379
      %v479 = vunpack.c.l.b16 %v380
      %v480 = vunpack.c.h.b16 %v380
      %v481 = vunpack.c.l.b16 %v381
      %v482 = vunpack.c.h.b16 %v381
      %v483 = vunpack.c.l.b16 %v382
      %v484 = vunpack.c.h.b16 %v382
      %v485 = vunpack.c.l.b16 %v383
      %v486 = vunpack.c.h.b16 %v383
      %v487 = vunpack.c.l.b16 %v384
      %v488 = vunpack.c.h.b16 %v384
      %v489 = vunpack.c.l.b16 %v385
      %v490 = vunpack.c.h.b16 %v385
      %v491 = vunpack.c.l.b16 %v386
      %v492 = vunpack.c.h.b16 %v386
      %v493 = vunpack.c.l.b16 %v387
      %v494 = vunpack.c.h.b16 %v387
      %v495 = vunpack.c.l.b16 %v388
      %v496 = vunpack.c.h.b16 %v388
      %v497 = vunpack.c.l.b16 %v389
      %v498 = vunpack.c.h.b16 %v389
      %v499 = vunpack.c.l.b16 %v390
      %v500 = vunpack.c.h.b16 %v390
      %v501 = vunpack.c.l.b16 %v391
      %v502 = vunpack.c.h.b16 %v391
      %v503 = vunpack.c.l.b16 %v392
      %v504 = vunpack.c.h.b16 %v392
      %v505 = vunpack.c.l.b16 %v393
      %v506 = vunpack.c.h.b16 %v393
      %v507 = vunpack.c.l.b16 %v394
      %v508 = vunpack.c.h.b16 %v394
      %v509 = vunpack.c.l.b16 %v395
      %v510 = vunpack.c.h.b16 %v395
      %v511 = vunpack.c.l.b16 %v396
      %v512 = vunpack.c.h.b16 %v396
      %v513 = vunpack.c.l.b16 %v397
      %v514 = vunpack.c.h.b16 %v397
      %v515 = vunpack.c.l.b16 %v398
      %v516 = vunpack.c.h.b16 %v398
      %v517 = vunpack.c.l.b16 %v399
      %v518 = vunpack.c.h.b16 %v399
      %v519 = vunpack.c.l.b16 %v400
      %v520 = vunpack.c.h.b16 %v400
      %v521 = vunpack.c.l.b16 %v401
      %v522 = vunpack.c.h.b16 %v401
      %v523 = vunpack.c.l.b16 %v402
      %v524 = vunpack.c.h.b16 %v402
      %v525 = vunpack.c.l.b16 %v403
      %v526 = vunpack.c.h.b16 %v403
      %v527 = vunpack.c.l.b16 %v404
      %v528 = vunpack.c.h.b16 %v404
      %v529 = vunpack.c.l.b16 %v405
      %v530 = vunpack.c.h.b16 %v405
      %v531 = vunpack.c.l.b16 %v406
      %v532 = vunpack.c.h.b16 %v406
      %v533 = vunpack.c.l.b16 %v407
      %v534 = vunpack.c.h.b16 %v407
      %v535 = vunpack.c.l.b16 %v408
      %v536 = vunpack.c.h.b16 %v408
      %v537 = vpack.c.b16 %v475, %v473
      %v538 = vpack.c.b16 %v476, %v474
      %v539 = vpack.c.b16 %v479, %v477
      %v540 = vpack.c.b16 %v480, %v478
      %v541 = vpack.c.b16 %v483, %v481
      %v542 = vpack.c.b16 %v484, %v482
      %v543 = vpack.c.b16 %v487, %v485
      %v544 = vpack.c.b16 %v488, %v486
      %v545 = vpack.c.b16 %v491, %v489
      %v546 = vpack.c.b16 %v492, %v490
      %v547 = vpack.c.b16 %v495, %v493
      %v548 = vpack.c.b16 %v496, %v494
      %v549 = vpack.c.b16 %v499, %v497
      %v550 = vpack.c.b16 %v500, %v498
      %v551 = vpack.c.b16 %v503, %v501
      %v552 = vpack.c.b16 %v504, %v502
      %v553 = vpack.c.b16 %v507, %v505
      %v554 = vpack.c.b16 %v508, %v506
      %v555 = vpack.c.b16 %v511, %v509
      %v556 = vpack.c.b16 %v512, %v510
      %v557 = vpack.c.b16 %v515, %v513
      %v558 = vpack.c.b16 %v516, %v514
      %v559 = vpack.c.b16 %v519, %v517
      %v560 = vpack.c.b16 %v520, %v518
      %v561 = vpack.c.b16 %v523, %v521
      %v562 = vpack.c.b16 %v524, %v522
      %v563 = vpack.c.b16 %v527, %v525
      %v564 = vpack.c.b16 %v528, %v526
      %v565 = vpack.c.b16 %v531, %v529
      %v566 = vpack.c.b16 %v532, %v530
      %v567 = vpack.c.b16 %v535, %v533
      %v568 = vpack.c.b16 %v536, %v534
      %v633 = vunpack.c.l.b16 %v409
      %v634 = vunpack.c.l.b16 %v410
      %v635 = vunpack.c.l.b16 %v411
      %v636 = vunpack.c.l.b16 %v412
      %v637 = vunpack.c.l.b16 %v413
      %v638 = vunpack.c.l.b16 %v414
      %v639 = vunpack.c.l.b16 %v415
      %v640 = vunpack.c.l.b16 %v416
      %v641 = vunpack.c.l.b16 %v417
      %v642 = vunpack.c.l.b16 %v418
      %v643 = vunpack.c.l.b16 %v419
      %v644 = vunpack.c.l.b16 %v420
      %v645 = vunpack.c.l.b16 %v421
      %v646 = vunpack.c.l.b16 %v422
      %v647 = vunpack.c.l.b16 %v423
      %v648 = vunpack.c.l.b16 %v424
      %v649 = vunpack.c.l.b16 %v425
      %v650 = vunpack.c.l.b16 %v426
      %v651 = vunpack.c.l.b16 %v427
      %v652 = vunpack.c.l.b16 %v428
      %v653 = vunpack.c.l.b16 %v429
      %v654 = vunpack.c.l.b16 %v430
      %v655 = vunpack.c.l.b16 %v431
      %v656 = vunpack.c.l.b16 %v432
      %v657 = vunpack.c.l.b16 %v433
      %v658 = vunpack.c.l.b16 %v434
      %v659 = vunpack.c.l.b16 %v435
      %v660 = vunpack.c.l.b16 %v436
      %v661 = vunpack.c.l.b16 %v437
      %v662 = vunpack.c.l.b16 %v438
      %v663 = vunpack.c.l.b16 %v439
      %v664 = vunpack.c.l.b16 %v440
      %v665 = vpack.c.b16 %v634, %v633
      %v666 = vpack.c.b16 %v636, %v635
      %v667 = vpack.c.b16 %v638, %v637
      %v668 = vpack.c.b16 %v640, %v639
      %v669 = vpack.c.b16 %v642, %v641
      %v670 = vpack.c.b16 %v644, %v643
      %v671 = vpack.c.b16 %v646, %v645
      %v672 = vpack.c.b16 %v648, %v647
      %v673 = vpack.c.b16 %v650, %v649
      %v674 = vpack.c.b16 %v652, %v651
      %v675 = vpack.c.b16 %v654, %v653
      %v676 = vpack.c.b16 %v656, %v655
      %v677 = vpack.c.b16 %v658, %v657
      %v678 = vpack.c.b16 %v660, %v659
      %v679 = vpack.c.b16 %v662, %v661
      %v680 = vpack.c.b16 %v664, %v663
      %697 = vmatprep.subr.bf16.mxu0 0
      %698 = vmatpush1.bf16.msra.mxu0 %v665
      %699 = vmatprep.subr.bf16.mxu0 0
      %700 = vmatpush1.bf16.msra.mxu0 %v666
      %701 = vmatprep.subr.bf16.mxu0 0
      %702 = vmatpush1.bf16.msra.mxu0 %v667
      %703 = vmatprep.subr.bf16.mxu0 0
      %704 = vmatpush1.bf16.msra.mxu0 %v668
      %705 = vmatprep.subr.bf16.mxu0 0
      %706 = vmatpush1.bf16.msra.mxu0 %v669
      %707 = vmatprep.subr.bf16.mxu0 0
      %708 = vmatpush1.bf16.msra.mxu0 %v670
      %709 = vmatprep.subr.bf16.mxu0 0
      %710 = vmatpush1.bf16.msra.mxu0 %v671
      %711 = vmatprep.subr.bf16.mxu0 0
      %712 = vmatpush1.bf16.msra.mxu0 %v672
      %713 = vmatprep.subr.bf16.mxu0 0
      %714 = vmatpush1.bf16.msra.mxu0 %v673
      %715 = vmatprep.subr.bf16.mxu0 0
      %716 = vmatpush1.bf16.msra.mxu0 %v674
      %717 = vmatprep.subr.bf16.mxu0 0
      %718 = vmatpush1.bf16.msra.mxu0 %v675
      %719 = vmatprep.subr.bf16.mxu0 0
      %720 = vmatpush1.bf16.msra.mxu0 %v676
      %721 = vmatprep.subr.bf16.mxu0 0
      %722 = vmatpush1.bf16.msra.mxu0 %v677
      %723 = vmatprep.subr.bf16.mxu0 0
      %724 = vmatpush1.bf16.msra.mxu0 %v678
      %725 = vmatprep.subr.bf16.mxu0 0
      %726 = vmatpush1.bf16.msra.mxu0 %v679
      %727 = vmatprep.subr.bf16.mxu0 0
      %728 = vmatpush1.bf16.msra.mxu0 %v680
      %729 = vmatprep.mubr.bf16.mxu0 %v538
      %730 = vmatmul.mubr.bf16.gmra.mrb[0].mxu0 %v537
      %v731 = vpop.f32.mrb[0].mxu0
      %v732 = vadd.f32 0.0, %v731
      %v733 = vpop.f32.mrb[0].mxu0
      %v734 = vpop.f32.mrb[0].mxu0
      %v735 = vadd.f32 0.0, %v734
      %v736 = vpop.f32.mrb[0].mxu0
      %737 = vmatprep.mubr.bf16.mxu0 %v540
      %738 = vmatmul.mubr.bf16.gmra.mrb[0].mxu0 %v539
      %v739 = vpop.f32.mrb[0].mxu0
      %v740 = vadd.f32 0.0, %v739
      %v741 = vpop.f32.mrb[0].mxu0
      %v742 = vpop.f32.mrb[0].mxu0
      %v743 = vadd.f32 0.0, %v742
      %v744 = vpop.f32.mrb[0].mxu0
      %745 = vmatprep.mubr.bf16.mxu0 %v542
      %746 = vmatmul.mubr.bf16.gmra.mrb[0].mxu0 %v541
      %v747 = vpop.f32.mrb[0].mxu0
      %v748 = vadd.f32 0.0, %v747
      %v749 = vpop.f32.mrb[0].mxu0
      %v750 = vpop.f32.mrb[0].mxu0
      %v751 = vadd.f32 0.0, %v750
      %v752 = vpop.f32.mrb[0].mxu0
      %753 = vmatprep.mubr.bf16.mxu0 %v544
      %754 = vmatmul.mubr.bf16.gmra.mrb[0].mxu0 %v543
      %v755 = vpop.f32.mrb[0].mxu0
      %v756 = vadd.f32 0.0, %v755
      %v757 = vpop.f32.mrb[0].mxu0
      %v758 = vpop.f32.mrb[0].mxu0
      %v759 = vadd.f32 0.0, %v758
      %v760 = vpop.f32.mrb[0].mxu0
      %761 = vmatprep.mubr.bf16.mxu0 %v546
      %762 = vmatmul.mubr.bf16.gmra.mrb[0].mxu0 %v545
      %v763 = vpop.f32.mrb[0].mxu0
      %v764 = vadd.f32 0.0, %v763
      %v765 = vpop.f32.mrb[0].mxu0
      %v766 = vpop.f32.mrb[0].mxu0
      %v767 = vadd.f32 0.0, %v766
      %v768 = vpop.f32.mrb[0].mxu0
      %769 = vmatprep.mubr.bf16.mxu0 %v548
      %770 = vmatmul.mubr.bf16.gmra.mrb[0].mxu0 %v547
      %v771 = vpop.f32.mrb[0].mxu0
      %v772 = vadd.f32 0.0, %v771
      %v773 = vpop.f32.mrb[0].mxu0
      %v774 = vpop.f32.mrb[0].mxu0
      %v775 = vadd.f32 0.0, %v774
      %v776 = vpop.f32.mrb[0].mxu0
      %777 = vmatprep.mubr.bf16.mxu0 %v550
      %778 = vmatmul.mubr.bf16.gmra.mrb[0].mxu0 %v549
      %v779 = vpop.f32.mrb[0].mxu0
      %v780 = vadd.f32 0.0, %v779
      %v781 = vpop.f32.mrb[0].mxu0
      %v782 = vpop.f32.mrb[0].mxu0
      %v783 = vadd.f32 0.0, %v782
      %v784 = vpop.f32.mrb[0].mxu0
      %785 = vmatprep.mubr.bf16.mxu0 %v552
      %786 = vmatmul.mubr.bf16.gmra.mrb[0].mxu0 %v551
      %v787 = vpop.f32.mrb[0].mxu0
      %v788 = vadd.f32 0.0, %v787
      %v789 = vpop.f32.mrb[0].mxu0
      %v790 = vpop.f32.mrb[0].mxu0
      %v791 = vadd.f32 0.0, %v790
      %v792 = vpop.f32.mrb[0].mxu0
      %793 = vmatprep.mubr.bf16.mxu0 %v554
      %794 = vmatmul.mubr.bf16.gmra.mrb[0].mxu0 %v553
      %v795 = vpop.f32.mrb[0].mxu0
      %v796 = vadd.f32 0.0, %v795
      %v797 = vpop.f32.mrb[0].mxu0
      %v798 = vpop.f32.mrb[0].mxu0
      %v799 = vadd.f32 0.0, %v798
      %v800 = vpop.f32.mrb[0].mxu0
      %801 = vmatprep.mubr.bf16.mxu0 %v556
      %802 = vmatmul.mubr.bf16.gmra.mrb[0].mxu0 %v555
      %v803 = vpop.f32.mrb[0].mxu0
      %v804 = vadd.f32 0.0, %v803
      %v805 = vpop.f32.mrb[0].mxu0
      %v806 = vpop.f32.mrb[0].mxu0
      %v807 = vadd.f32 0.0, %v806
      %v808 = vpop.f32.mrb[0].mxu0
      %809 = vmatprep.mubr.bf16.mxu0 %v558
      %810 = vmatmul.mubr.bf16.gmra.mrb[0].mxu0 %v557
      %v811 = vpop.f32.mrb[0].mxu0
      %v812 = vadd.f32 0.0, %v811
      %v813 = vpop.f32.mrb[0].mxu0
      %v814 = vpop.f32.mrb[0].mxu0
      %v815 = vadd.f32 0.0, %v814
      %v816 = vpop.f32.mrb[0].mxu0
      %817 = vmatprep.mubr.bf16.mxu0 %v560
      %818 = vmatmul.mubr.bf16.gmra.mrb[0].mxu0 %v559
      %v819 = vpop.f32.mrb[0].mxu0
      %v820 = vadd.f32 0.0, %v819
      %v821 = vpop.f32.mrb[0].mxu0
      %v822 = vpop.f32.mrb[0].mxu0
      %v823 = vadd.f32 0.0, %v822
      %v824 = vpop.f32.mrb[0].mxu0
      %825 = vmatprep.mubr.bf16.mxu0 %v562
      %826 = vmatmul.mubr.bf16.gmra.mrb[0].mxu0 %v561
      %v827 = vpop.f32.mrb[0].mxu0
      %v828 = vadd.f32 0.0, %v827
      %v829 = vpop.f32.mrb[0].mxu0
      %v830 = vpop.f32.mrb[0].mxu0
      %v831 = vadd.f32 0.0, %v830
      %v832 = vpop.f32.mrb[0].mxu0
      %833 = vmatprep.mubr.bf16.mxu0 %v564
      %834 = vmatmul.mubr.bf16.gmra.mrb[0].mxu0 %v563
      %v835 = vpop.f32.mrb[0].mxu0
      %v836 = vadd.f32 0.0, %v835
      %v837 = vpop.f32.mrb[0].mxu0
      %v838 = vpop.f32.mrb[0].mxu0
      %v839 = vadd.f32 0.0, %v838
      %v840 = vpop.f32.mrb[0].mxu0
      %841 = vmatprep.mubr.bf16.mxu0 %v566
      %842 = vmatmul.mubr.bf16.gmra.mrb[0].mxu0 %v565
      %v843 = vpop.f32.mrb[0].mxu0
      %v844 = vadd.f32 0.0, %v843
      %v845 = vpop.f32.mrb[0].mxu0
      %v846 = vpop.f32.mrb[0].mxu0
      %v847 = vadd.f32 0.0, %v846
      %v848 = vpop.f32.mrb[0].mxu0
      %849 = vmatprep.mubr.bf16.mxu0 %v568
      %850 = vmatmul.mubr.bf16.gmra.mrb[0].mxu0 %v567
      %v851 = vpop.f32.mrb[0].mxu0
      %v852 = vadd.f32 0.0, %v851
      %v853 = vpop.f32.mrb[0].mxu0
      %v854 = vpop.f32.mrb[0].mxu0
      %v855 = vadd.f32 0.0, %v854
      %v856 = vpop.f32.mrb[0].mxu0
      %857 = vdwg.mxu0
      %v858 = vadd.f32 %v345, %v732
      %v859 = vadd.f32 %v346, %v735
      %v860 = vadd.f32 %v347, %v740
      %v861 = vadd.f32 %v348, %v743
      %v862 = vadd.f32 %v349, %v748
      %v863 = vadd.f32 %v350, %v751
      %v864 = vadd.f32 %v351, %v756
      %v865 = vadd.f32 %v352, %v759
      %v866 = vadd.f32 %v353, %v764
      %v867 = vadd.f32 %v354, %v767
      %v868 = vadd.f32 %v355, %v772
      %v869 = vadd.f32 %v356, %v775
      %v870 = vadd.f32 %v357, %v780
      %v871 = vadd.f32 %v358, %v783
      %v872 = vadd.f32 %v359, %v788
      %v873 = vadd.f32 %v360, %v791
      %v874 = vadd.f32 %v361, %v796
      %v875 = vadd.f32 %v362, %v799
      %v876 = vadd.f32 %v363, %v804
      %v877 = vadd.f32 %v364, %v807
      %v878 = vadd.f32 %v365, %v812
      %v879 = vadd.f32 %v366, %v815
      %v880 = vadd.f32 %v367, %v820
      %v881 = vadd.f32 %v368, %v823
      %v882 = vadd.f32 %v369, %v828
      %v883 = vadd.f32 %v370, %v831
      %v884 = vadd.f32 %v371, %v836
      %v885 = vadd.f32 %v372, %v839
      %v886 = vadd.f32 %v373, %v844
      %v887 = vadd.f32 %v374, %v847
      %v888 = vadd.f32 %v375, %v852
      %v889 = vadd.f32 %v376, %v855
      %890 = vst [vmem:[#allocation2] sm:$0xff] %v858
      %891 = vst [vmem:[#allocation2 + $0x8] sm:$0xff] %v859
      %892 = vst [vmem:[#allocation2 + $0x10] sm:$0xff] %v860
      %893 = vst [vmem:[#allocation2 + $0x18] sm:$0xff] %v861
      %894 = vst [vmem:[#allocation2 + $0x20] sm:$0xff] %v862
      %895 = vst [vmem:[#allocation2 + $0x28] sm:$0xff] %v863
      %896 = vst [vmem:[#allocation2 + $0x30] sm:$0xff] %v864
      %897 = vst [vmem:[#allocation2 + $0x38] sm:$0xff] %v865
      %898 = vst [vmem:[#allocation2 + $0x40] sm:$0xff] %v866
      %899 = vst [vmem:[#allocation2 + $0x48] sm:$0xff] %v867
      %900 = vst [vmem:[#allocation2 + $0x50] sm:$0xff] %v868
      %901 = vst [vmem:[#allocation2 + $0x58] sm:$0xff] %v869
      %902 = vst [vmem:[#allocation2 + $0x60] sm:$0xff] %v870
      %903 = vst [vmem:[#allocation2 + $0x68] sm:$0xff] %v871
      %904 = vst [vmem:[#allocation2 + $0x70] sm:$0xff] %v872
      %905 = vst [vmem:[#allocation2 + $0x78] sm:$0xff] %v873
      %906 = vst [vmem:[#allocation2 + $0x80] sm:$0xff] %v874
      %907 = vst [vmem:[#allocation2 + $0x88] sm:$0xff] %v875
      %908 = vst [vmem:[#allocation2 + $0x90] sm:$0xff] %v876
      %909 = vst [vmem:[#allocation2 + $0x98] sm:$0xff] %v877
      %910 = vst [vmem:[#allocation2 + $0xa0] sm:$0xff] %v878
      %911 = vst [vmem:[#allocation2 + $0xa8] sm:$0xff] %v879
      %912 = vst [vmem:[#allocation2 + $0xb0] sm:$0xff] %v880
      %913 = vst [vmem:[#allocation2 + $0xb8] sm:$0xff] %v881
      %914 = vst [vmem:[#allocation2 + $0xc0] sm:$0xff] %v882
      %915 = vst [vmem:[#allocation2 + $0xc8] sm:$0xff] %v883
      %916 = vst [vmem:[#allocation2 + $0xd0] sm:$0xff] %v884
      %917 = vst [vmem:[#allocation2 + $0xd8] sm:$0xff] %v885
      %918 = vst [vmem:[#allocation2 + $0xe0] sm:$0xff] %v886
      %919 = vst [vmem:[#allocation2 + $0xe8] sm:$0xff] %v887
      %920 = vst [vmem:[#allocation2 + $0xf0] sm:$0xff] %v888
      %921 = vst [vmem:[#allocation2 + $0xf8] sm:$0xff] %v889
      // Predicated region
      $region41: #{_lambda_.33} parent=35 // pred_check
        %p922 = pneg %p309
      $region42: #{_lambda_.33} parent=35 // pred_check_branch
        %924 = sbr.rel (%p922) target = $region44
      $region43: #{_lambda_.33} parent=35 // pred_region
        %v925 = vld [vmem:[#allocation2] sm:$0xff]
        %v926 = vld [vmem:[#allocation2 + $0x8] sm:$0xff]
        %v927 = vld [vmem:[#allocation2 + $0x10] sm:$0xff]
        %v928 = vld [vmem:[#allocation2 + $0x18] sm:$0xff]
        %v929 = vld [vmem:[#allocation2 + $0x20] sm:$0xff]
        %v930 = vld [vmem:[#allocation2 + $0x28] sm:$0xff]
        %v931 = vld [vmem:[#allocation2 + $0x30] sm:$0xff]
        %v932 = vld [vmem:[#allocation2 + $0x38] sm:$0xff]
        %v933 = vld [vmem:[#allocation2 + $0x40] sm:$0xff]
        %v934 = vld [vmem:[#allocation2 + $0x48] sm:$0xff]
        %v935 = vld [vmem:[#allocation2 + $0x50] sm:$0xff]
        %v936 = vld [vmem:[#allocation2 + $0x58] sm:$0xff]
        %v937 = vld [vmem:[#allocation2 + $0x60] sm:$0xff]
        %v938 = vld [vmem:[#allocation2 + $0x68] sm:$0xff]
        %v939 = vld [vmem:[#allocation2 + $0x70] sm:$0xff]
        %v940 = vld [vmem:[#allocation2 + $0x78] sm:$0xff]
        %v941 = vld [vmem:[#allocation2 + $0x80] sm:$0xff]
        %v942 = vld [vmem:[#allocation2 + $0x88] sm:$0xff]
        %v943 = vld [vmem:[#allocation2 + $0x90] sm:$0xff]
        %v944 = vld [vmem:[#allocation2 + $0x98] sm:$0xff]
        %v945 = vld [vmem:[#allocation2 + $0xa0] sm:$0xff]
        %v946 = vld [vmem:[#allocation2 + $0xa8] sm:$0xff]
        %v947 = vld [vmem:[#allocation2 + $0xb0] sm:$0xff]
        %v948 = vld [vmem:[#allocation2 + $0xb8] sm:$0xff]
        %v949 = vld [vmem:[#allocation2 + $0xc0] sm:$0xff]
        %v950 = vld [vmem:[#allocation2 + $0xc8] sm:$0xff]
        %v951 = vld [vmem:[#allocation2 + $0xd0] sm:$0xff]
        %v952 = vld [vmem:[#allocation2 + $0xd8] sm:$0xff]
        %v953 = vld [vmem:[#allocation2 + $0xe0] sm:$0xff]
        %v954 = vld [vmem:[#allocation2 + $0xe8] sm:$0xff]
        %v955 = vld [vmem:[#allocation2 + $0xf0] sm:$0xff]
        %v956 = vld [vmem:[#allocation2 + $0xf8] sm:$0xff]
        %v957 = vld [vmem:[%s295] sm:$0x1]
        %v959 = vlaneseq
        %v960 = vshrl.u32 %v959, 7
        %v961 = vsub.s32 0, %v960
        %v962 = vrot.slane %v957, %v961
        %v964 = vmul.f32 %v925, %v962
        %v965 = vmul.f32 %v926, %v962
        %v966 = vmul.f32 %v927, %v962
        %v967 = vmul.f32 %v928, %v962
        %v968 = vmul.f32 %v929, %v962
        %v969 = vmul.f32 %v930, %v962
        %v970 = vmul.f32 %v931, %v962
        %v971 = vmul.f32 %v932, %v962
        %v972 = vmul.f32 %v933, %v962
        %v973 = vmul.f32 %v934, %v962
        %v974 = vmul.f32 %v935, %v962
        %v975 = vmul.f32 %v936, %v962
        %v976 = vmul.f32 %v937, %v962
        %v977 = vmul.f32 %v938, %v962
        %v978 = vmul.f32 %v939, %v962
        %v979 = vmul.f32 %v940, %v962
        %v980 = vmul.f32 %v941, %v962
        %v981 = vmul.f32 %v942, %v962
        %v982 = vmul.f32 %v943, %v962
        %v983 = vmul.f32 %v944, %v962
        %v984 = vmul.f32 %v945, %v962
        %v985 = vmul.f32 %v946, %v962
        %v986 = vmul.f32 %v947, %v962
        %v987 = vmul.f32 %v948, %v962
        %v988 = vmul.f32 %v949, %v962
        %v989 = vmul.f32 %v950, %v962
        %v990 = vmul.f32 %v951, %v962
        %v991 = vmul.f32 %v952, %v962
        %v992 = vmul.f32 %v953, %v962
        %v993 = vmul.f32 %v954, %v962
        %v994 = vmul.f32 %v955, %v962
        %v995 = vmul.f32 %v956, %v962
        %v996 = vld [vmem:[%s298] sm:$0x1]
        %v998 = vlaneseq
        %v999 = vshrl.u32 %v998, 7
        %v1000 = vsub.s32 0, %v999
        %v1001 = vrot.slane %v996, %v1000
        %v1003 = vadd.f32 %v964, %v1001
        %v1004 = vadd.f32 %v965, %v1001
        %v1005 = vadd.f32 %v966, %v1001
        %v1006 = vadd.f32 %v967, %v1001
        %v1007 = vadd.f32 %v968, %v1001
        %v1008 = vadd.f32 %v969, %v1001
        %v1009 = vadd.f32 %v970, %v1001
        %v1010 = vadd.f32 %v971, %v1001
        %v1011 = vadd.f32 %v972, %v1001
        %v1012 = vadd.f32 %v973, %v1001
        %v1013 = vadd.f32 %v974, %v1001
        %v1014 = vadd.f32 %v975, %v1001
        %v1015 = vadd.f32 %v976, %v1001
        %v1016 = vadd.f32 %v977, %v1001
        %v1017 = vadd.f32 %v978, %v1001
        %v1018 = vadd.f32 %v979, %v1001
        %v1019 = vadd.f32 %v980, %v1001
        %v1020 = vadd.f32 %v981, %v1001
        %v1021 = vadd.f32 %v982, %v1001
        %v1022 = vadd.f32 %v983, %v1001
        %v1023 = vadd.f32 %v984, %v1001
        %v1024 = vadd.f32 %v985, %v1001
        %v1025 = vadd.f32 %v986, %v1001
        %v1026 = vadd.f32 %v987, %v1001
        %v1027 = vadd.f32 %v988, %v1001
        %v1028 = vadd.f32 %v989, %v1001
        %v1029 = vadd.f32 %v990, %v1001
        %v1030 = vadd.f32 %v991, %v1001
        %v1031 = vadd.f32 %v992, %v1001
        %v1032 = vadd.f32 %v993, %v1001
        %v1033 = vadd.f32 %v994, %v1001
        %v1034 = vadd.f32 %v995, %v1001
        %v1035 = vmax.f32 %v1003, 0.0
        %v1036 = vmax.f32 %v1004, 0.0
        %v1037 = vmax.f32 %v1005, 0.0
        %v1038 = vmax.f32 %v1006, 0.0
        %v1039 = vmax.f32 %v1007, 0.0
        %v1040 = vmax.f32 %v1008, 0.0
        %v1041 = vmax.f32 %v1009, 0.0
        %v1042 = vmax.f32 %v1010, 0.0
        %v1043 = vmax.f32 %v1011, 0.0
        %v1044 = vmax.f32 %v1012, 0.0
        %v1045 = vmax.f32 %v1013, 0.0
        %v1046 = vmax.f32 %v1014, 0.0
        %v1047 = vmax.f32 %v1015, 0.0
        %v1048 = vmax.f32 %v1016, 0.0
        %v1049 = vmax.f32 %v1017, 0.0
        %v1050 = vmax.f32 %v1018, 0.0
        %v1051 = vmax.f32 %v1019, 0.0
        %v1052 = vmax.f32 %v1020, 0.0
        %v1053 = vmax.f32 %v1021, 0.0
        %v1054 = vmax.f32 %v1022, 0.0
        %v1055 = vmax.f32 %v1023, 0.0
        %v1056 = vmax.f32 %v1024, 0.0
        %v1057 = vmax.f32 %v1025, 0.0
        %v1058 = vmax.f32 %v1026, 0.0
        %v1059 = vmax.f32 %v1027, 0.0
        %v1060 = vmax.f32 %v1028, 0.0
        %v1061 = vmax.f32 %v1029, 0.0
        %v1062 = vmax.f32 %v1030, 0.0
        %v1063 = vmax.f32 %v1031, 0.0
        %v1064 = vmax.f32 %v1032, 0.0
        %v1065 = vmax.f32 %v1033, 0.0
        %v1066 = vmax.f32 %v1034, 0.0
        %v1067 = vpack.c.bf16 %v1036, %v1035
        %v1068 = vpack.c.bf16 %v1038, %v1037
        %v1069 = vpack.c.bf16 %v1040, %v1039
        %v1070 = vpack.c.bf16 %v1042, %v1041
        %v1071 = vpack.c.bf16 %v1044, %v1043
        %v1072 = vpack.c.bf16 %v1046, %v1045
        %v1073 = vpack.c.bf16 %v1048, %v1047
        %v1074 = vpack.c.bf16 %v1050, %v1049
        %v1075 = vpack.c.bf16 %v1052, %v1051
        %v1076 = vpack.c.bf16 %v1054, %v1053
        %v1077 = vpack.c.bf16 %v1056, %v1055
        %v1078 = vpack.c.bf16 %v1058, %v1057
        %v1079 = vpack.c.bf16 %v1060, %v1059
        %v1080 = vpack.c.bf16 %v1062, %v1061
        %v1081 = vpack.c.bf16 %v1064, %v1063
        %v1082 = vpack.c.bf16 %v1066, %v1065
        %v1099 = vunpack.c.l.b16 %v1067
        %v1100 = vunpack.c.h.b16 %v1067
        %v1101 = vunpack.c.l.b16 %v1068
        %v1102 = vunpack.c.h.b16 %v1068
        %v1103 = vunpack.c.l.b16 %v1069
        %v1104 = vunpack.c.h.b16 %v1069
        %v1105 = vunpack.c.l.b16 %v1070
        %v1106 = vunpack.c.h.b16 %v1070
        %v1107 = vunpack.c.l.b16 %v1071
        %v1108 = vunpack.c.h.b16 %v1071
        %v1109 = vunpack.c.l.b16 %v1072
        %v1110 = vunpack.c.h.b16 %v1072
        %v1111 = vunpack.c.l.b16 %v1073
        %v1112 = vunpack.c.h.b16 %v1073
        %v1113 = vunpack.c.l.b16 %v1074
        %v1114 = vunpack.c.h.b16 %v1074
        %v1115 = vunpack.c.l.b16 %v1075
        %v1116 = vunpack.c.h.b16 %v1075
        %v1117 = vunpack.c.l.b16 %v1076
        %v1118 = vunpack.c.h.b16 %v1076
        %v1119 = vunpack.c.l.b16 %v1077
        %v1120 = vunpack.c.h.b16 %v1077
        %v1121 = vunpack.c.l.b16 %v1078
        %v1122 = vunpack.c.h.b16 %v1078
        %v1123 = vunpack.c.l.b16 %v1079
        %v1124 = vunpack.c.h.b16 %v1079
        %v1125 = vunpack.c.l.b16 %v1080
        %v1126 = vunpack.c.h.b16 %v1080
        %v1127 = vunpack.c.l.b16 %v1081
        %v1128 = vunpack.c.h.b16 %v1081
        %v1129 = vunpack.c.l.b16 %v1082
        %v1130 = vunpack.c.h.b16 %v1082
        %v1131 = vpack.c.b16 %v1099, %v1099
        %v1132 = vpack.c.b16 %v1100, %v1100
        %v1133 = vpack.c.b16 %v1101, %v1101
        %v1134 = vpack.c.b16 %v1102, %v1102
        %v1135 = vpack.c.b16 %v1103, %v1103
        %v1136 = vpack.c.b16 %v1104, %v1104
        %v1137 = vpack.c.b16 %v1105, %v1105
        %v1138 = vpack.c.b16 %v1106, %v1106
        %v1139 = vpack.c.b16 %v1107, %v1107
        %v1140 = vpack.c.b16 %v1108, %v1108
        %v1141 = vpack.c.b16 %v1109, %v1109
        %v1142 = vpack.c.b16 %v1110, %v1110
        %v1143 = vpack.c.b16 %v1111, %v1111
        %v1144 = vpack.c.b16 %v1112, %v1112
        %v1145 = vpack.c.b16 %v1113, %v1113
        %v1146 = vpack.c.b16 %v1114, %v1114
        %v1147 = vpack.c.b16 %v1115, %v1115
        %v1148 = vpack.c.b16 %v1116, %v1116
        %v1149 = vpack.c.b16 %v1117, %v1117
        %v1150 = vpack.c.b16 %v1118, %v1118
        %v1151 = vpack.c.b16 %v1119, %v1119
        %v1152 = vpack.c.b16 %v1120, %v1120
        %v1153 = vpack.c.b16 %v1121, %v1121
        %v1154 = vpack.c.b16 %v1122, %v1122
        %v1155 = vpack.c.b16 %v1123, %v1123
        %v1156 = vpack.c.b16 %v1124, %v1124
        %v1157 = vpack.c.b16 %v1125, %v1125
        %v1158 = vpack.c.b16 %v1126, %v1126
        %v1159 = vpack.c.b16 %v1127, %v1127
        %v1160 = vpack.c.b16 %v1128, %v1128
        %v1161 = vpack.c.b16 %v1129, %v1129
        %v1162 = vpack.c.b16 %v1130, %v1130
        %1195 = vst [vmem:[%s306] sm:$0xf] %v1131
        %1196 = vst [vmem:[%s306 + $0x4] sm:$0xf] %v1132
        %1197 = vst [vmem:[%s306 + $0x8] sm:$0xf] %v1133
        %1198 = vst [vmem:[%s306 + $0xc] sm:$0xf] %v1134
        %1199 = vst [vmem:[%s306 + $0x10] sm:$0xf] %v1135
        %1200 = vst [vmem:[%s306 + $0x14] sm:$0xf] %v1136
        %1201 = vst [vmem:[%s306 + $0x18] sm:$0xf] %v1137
        %1202 = vst [vmem:[%s306 + $0x1c] sm:$0xf] %v1138
        %1203 = vst [vmem:[%s306 + $0x20] sm:$0xf] %v1139
        %1204 = vst [vmem:[%s306 + $0x24] sm:$0xf] %v1140
        %1205 = vst [vmem:[%s306 + $0x28] sm:$0xf] %v1141
        %1206 = vst [vmem:[%s306 + $0x2c] sm:$0xf] %v1142
        %1207 = vst [vmem:[%s306 + $0x30] sm:$0xf] %v1143
        %1208 = vst [vmem:[%s306 + $0x34] sm:$0xf] %v1144
        %1209 = vst [vmem:[%s306 + $0x38] sm:$0xf] %v1145
        %1210 = vst [vmem:[%s306 + $0x3c] sm:$0xf] %v1146
        %1211 = vst [vmem:[%s306 + $0x40] sm:$0xf] %v1147
        %1212 = vst [vmem:[%s306 + $0x44] sm:$0xf] %v1148
        %1213 = vst [vmem:[%s306 + $0x48] sm:$0xf] %v1149
        %1214 = vst [vmem:[%s306 + $0x4c] sm:$0xf] %v1150
        %1215 = vst [vmem:[%s306 + $0x50] sm:$0xf] %v1151
        %1216 = vst [vmem:[%s306 + $0x54] sm:$0xf] %v1152
        %1217 = vst [vmem:[%s306 + $0x58] sm:$0xf] %v1153
        %1218 = vst [vmem:[%s306 + $0x5c] sm:$0xf] %v1154
        %1219 = vst [vmem:[%s306 + $0x60] sm:$0xf] %v1155
        %1220 = vst [vmem:[%s306 + $0x64] sm:$0xf] %v1156
        %1221 = vst [vmem:[%s306 + $0x68] sm:$0xf] %v1157
        %1222 = vst [vmem:[%s306 + $0x6c] sm:$0xf] %v1158
        %1223 = vst [vmem:[%s306 + $0x70] sm:$0xf] %v1159
        %1224 = vst [vmem:[%s306 + $0x74] sm:$0xf] %v1160
        %1225 = vst [vmem:[%s306 + $0x78] sm:$0xf] %v1161
        %1226 = vst [vmem:[%s306 + $0x7c] sm:$0xf] %v1162
      $region44: #{_lambda_.33} parent=35 // pred_fallthru
        _
      %s1227 = smul.u32 32, %s20
      %p1228 = scmp.lt.s32.totalorder %s1227, 63
      %s1229 = scalar_select %p1228, %s1227, 63
      %p1230 = scmp.lt.s32.totalorder %s21, 0
      %s1231 = scalar_select %p1230, %s21, 0
      %s1232 = sadd.s32 %s1231, %s1229
      %s1233 = smul.addr %s1232, 4
      %s1234 = scalar_lea.vmem %s4, %s1233
      // Predicated region
      $region45: #{_lambda_.33} parent=35 // pred_check
        %p1235 = pneg %p162
      $region46: #{_lambda_.33} parent=35 // pred_check_branch
        %1237 = sbr.rel (%p1235) target = $region48
      $region47: #{_lambda_.33} parent=35 // pred_region
        %s1238 = smul.u32 32, %s20
      $region48: #{_lambda_.33} parent=35 // pred_fallthru
        _
    $region36: #{_lambda_.33} parent=5 // pred_fallthru
      _
    %p1239 = scmp.le.s32.totalorder 2, %s10
    // Predicated region
    $region49: #{_lambda_.33} parent=5 // pred_check
      %p1240 = pneg %p1239
    $region50: #{_lambda_.33} parent=5 // pred_check_branch
      %1242 = sbr.rel (%p1240) target = $region52
    $region51: #{_lambda_.33} parent=5 // pred_region
      %s1243 = ssub.s32 %s10, 2
      // Predicated region
      $region53: #{_lambda_.33} parent=51 // pred_check
        %p1244 = pneg %p168
      $region54: #{_lambda_.33} parent=51 // pred_check_branch
        %1246 = sbr.rel (%p1244) target = $region56
      $region55: #{_lambda_.33} parent=51 // pred_region
        %s1247 = smul.u32 32, %s23
        %p1248 = scmp.lt.s32.totalorder %s1247, 63
        %s1249 = scalar_select %p1248, %s1247, 63
        %p1250 = scmp.lt.s32.totalorder %s24, 0
        %s1251 = scalar_select %p1250, %s24, 0
        %s1252 = sadd.s32 %s1251, %s1249
        %s1253 = smul.addr %s1252, 4
        %s1254 = scalar_lea.vmem %s4, %s1253
      $region56: #{_lambda_.33} parent=51 // pred_fallthru
        _
    $region52: #{_lambda_.33} parent=5 // pred_fallthru
      _
  $region6: #{_lambda_.33} parent=0 // loop_footer
    %s14 = sadd.s32 1, %s10
  $region7: #{_lambda_.33} parent=0 // loop_footer_branch
    %9 = sbr.rel target = $region3
  $region8: #{_lambda_.33} parent=0 // loop_exit
    _

// kernel: _lambda_.34
$region0: #{_lambda_.34}
  #allocation0 [shape = 'u32[]', space=smem, size = 0x4, offset = 0x4, fixed_abs, tag = 'smem constant byte address 0x4 - core index']
  #allocation1 [shape = 'u32[144,128]{1,0:T(1,128)}', space=vmem, size = 0x12000, scoped, tag = 'internal scratch']
  %s0 = inlined_call_operand.vmem [shape: bf16[9,8,128], index: 0, kind: input, shape index: {}]
  %s1 = inlined_call_operand.vmem [shape: bf16[8,128], index: 1, kind: output, shape index: {}]
  %s2 = sld [smem:[#allocation0]]
  $region14: #{_lambda_.34} parent=0
    _
  %s4 = ssub.s32 1, %s2
  %s5 = scalar_select 0, %s4, %s2
  // Predicated region
  $region2: #{_lambda_.34} parent=0 // pred_check
    _
  $region3: #{_lambda_.34} parent=0 // pred_check_branch
    %7 = sbr.rel (0) target = $region5
  $region4: #{_lambda_.34} parent=0 // pred_region
    _
  $region5: #{_lambda_.34} parent=0 // pred_fallthru
    _
  %v9 = vld [vmem:[%s0] sm:$0xf]
  %v10 = vld [vmem:[%s0 + $0x4] sm:$0xf]
  %v11 = vld [vmem:[%s0 + $0x8] sm:$0xf]
  %v12 = vld [vmem:[%s0 + $0xc] sm:$0xf]
  %v13 = vld [vmem:[%s0 + $0x10] sm:$0xf]
  %v14 = vld [vmem:[%s0 + $0x14] sm:$0xf]
  %v15 = vld [vmem:[%s0 + $0x18] sm:$0xf]
  %v16 = vld [vmem:[%s0 + $0x1c] sm:$0xf]
  %v17 = vld [vmem:[%s0 + $0x20] sm:$0xf]
  %vm18 = vcmask 1043456
  %v21 = vsel %vm18, %v9, 4286644096
  %v24 = vsel %vm18, %v10, 4286644096
  %v27 = vsel %vm18, %v11, 4286644096
  %v30 = vsel %vm18, %v12, 4286644096
  %v33 = vsel %vm18, %v13, 4286644096
  %v35 = vmax.bf16 %v21, %v33
  %v37 = vsel %vm18, %v14, 4286644096
  %v39 = vmax.bf16 %v24, %v37
  %v41 = vsel %vm18, %v15, 4286644096
  %v43 = vmax.bf16 %v27, %v41
  %v45 = vsel %vm18, %v16, 4286644096
  %v47 = vmax.bf16 %v30, %v45
  %v49 = vsel %vm18, %v17, 4286644096
  %v51 = vmax.bf16 %v35, %v49
  %v52 = vmax.bf16 %v51, %v39
  %v53 = vmax.bf16 %v43, %v47
  %v54 = vmax.bf16 %v52, %v53
  %55 = vst [vmem:[%s1] sm:$0xf] %v54
  // Predicated region
  $region6: #{_lambda_.34} parent=0 // pred_check
    _
  $region7: #{_lambda_.34} parent=0 // pred_check_branch
    %57 = sbr.rel (0) target = $region9
  $region8: #{_lambda_.34} parent=0 // pred_region
    _
  $region9: #{_lambda_.34} parent=0 // pred_fallthru
    _
  // Predicated region
  $region10: #{_lambda_.34} parent=0 // pred_check
    _
  $region11: #{_lambda_.34} parent=0 // pred_check_branch
    %59 = sbr.rel (0) target = $region13
  $region12: #{_lambda_.34} parent=0 // pred_region
    _
  $region13: #{_lambda_.34} parent=0 // pred_fallthru
    _

// kernel: _lambda_.35
$region0: #{_lambda_.35}
  #allocation0 [shape = 'u32[]', space=smem, size = 0x4, offset = 0x4, fixed_abs, tag = 'smem constant byte address 0x4 - core index']
  #allocation1 [shape = 'u32[144,128]{1,0:T(1,128)}', space=vmem, size = 0x12000, scoped, tag = 'internal scratch']
  #allocation2 [shape = 'f32[128,128]{1,0:T(8,128)}', space=vmem, size = 0x10000, scoped, tag = 'scratch operand']
  %s0 = inlined_call_operand.vmem [shape: bf16[128,128], index: 0, kind: input, shape index: {}]
  %s1 = inlined_call_operand.vmem [shape: bf16[128,128], index: 1, kind: input, shape index: {}]
  %s2 = inlined_call_operand.vmem [shape: f32[1,128], index: 2, kind: input, shape index: {}]
  %s3 = inlined_call_operand.vmem [shape: f32[1,128], index: 3, kind: input, shape index: {}]
  %s4 = inlined_call_operand.vmem [shape: bf16[128,128], index: 4, kind: output, shape index: {}]
  %s5 = sld [smem:[#allocation0]]
  $region34: #{_lambda_.35} parent=0
    _
  %s7 = ssub.s32 1, %s5
  %s8 = scalar_select 0, %s7, %s5
  // Predicated region
  $region2: #{_lambda_.35} parent=0 // pred_check
    _
  $region3: #{_lambda_.35} parent=0 // pred_check_branch
    %10 = sbr.rel (0) target = $region5
  $region4: #{_lambda_.35} parent=0 // pred_region
    _
  $region5: #{_lambda_.35} parent=0 // pred_fallthru
    _
  // Predicated region
  $region6: #{_lambda_.35} parent=0 // pred_check
    _
  $region7: #{_lambda_.35} parent=0 // pred_check_branch
    %12 = sbr.rel (0) target = $region9
  $region8: #{_lambda_.35} parent=0 // pred_region
    _
  $region9: #{_lambda_.35} parent=0 // pred_fallthru
    _
  // Predicated region
  $region10: #{_lambda_.35} parent=0 // pred_check
    _
  $region11: #{_lambda_.35} parent=0 // pred_check_branch
    %14 = sbr.rel (0) target = $region13
  $region12: #{_lambda_.35} parent=0 // pred_region
    _
  $region13: #{_lambda_.35} parent=0 // pred_fallthru
    _
  // Predicated region
  $region14: #{_lambda_.35} parent=0 // pred_check
    _
  $region15: #{_lambda_.35} parent=0 // pred_check_branch
    %16 = sbr.rel (0) target = $region17
  $region16: #{_lambda_.35} parent=0 // pred_region
    _
  $region17: #{_lambda_.35} parent=0 // pred_fallthru
    _
  %p18 = scmp.eq.s32.totalorder 0, 0
  // Predicated region
  $region18: #{_lambda_.35} parent=0 // pred_check
    %p19 = pneg %p18
  $region19: #{_lambda_.35} parent=0 // pred_check_branch
    %21 = sbr.rel (%p19) target = $region21
  $region20: #{_lambda_.35} parent=0 // pred_region
    %22 = vst [vmem:[#allocation2] sm:$0xff] 0.0
    %23 = vst [vmem:[#allocation2 + $0x8] sm:$0xff] 0.0
    %24 = vst [vmem:[#allocation2 + $0x10] sm:$0xff] 0.0
    %25 = vst [vmem:[#allocation2 + $0x18] sm:$0xff] 0.0
    %26 = vst [vmem:[#allocation2 + $0x20] sm:$0xff] 0.0
    %27 = vst [vmem:[#allocation2 + $0x28] sm:$0xff] 0.0
    %28 = vst [vmem:[#allocation2 + $0x30] sm:$0xff] 0.0
    %29 = vst [vmem:[#allocation2 + $0x38] sm:$0xff] 0.0
    %30 = vst [vmem:[#allocation2 + $0x40] sm:$0xff] 0.0
    %31 = vst [vmem:[#allocation2 + $0x48] sm:$0xff] 0.0
    %32 = vst [vmem:[#allocation2 + $0x50] sm:$0xff] 0.0
    %33 = vst [vmem:[#allocation2 + $0x58] sm:$0xff] 0.0
    %34 = vst [vmem:[#allocation2 + $0x60] sm:$0xff] 0.0
    %35 = vst [vmem:[#allocation2 + $0x68] sm:$0xff] 0.0
    %36 = vst [vmem:[#allocation2 + $0x70] sm:$0xff] 0.0
    %37 = vst [vmem:[#allocation2 + $0x78] sm:$0xff] 0.0
  $region21: #{_lambda_.35} parent=0 // pred_fallthru
    _
  %v38 = vld [vmem:[#allocation2] sm:$0xff]
  %v39 = vld [vmem:[#allocation2 + $0x8] sm:$0xff]
  %v40 = vld [vmem:[#allocation2 + $0x10] sm:$0xff]
  %v41 = vld [vmem:[#allocation2 + $0x18] sm:$0xff]
  %v42 = vld [vmem:[#allocation2 + $0x20] sm:$0xff]
  %v43 = vld [vmem:[#allocation2 + $0x28] sm:$0xff]
  %v44 = vld [vmem:[#allocation2 + $0x30] sm:$0xff]
  %v45 = vld [vmem:[#allocation2 + $0x38] sm:$0xff]
  %v46 = vld [vmem:[#allocation2 + $0x40] sm:$0xff]
  %v47 = vld [vmem:[#allocation2 + $0x48] sm:$0xff]
  %v48 = vld [vmem:[#allocation2 + $0x50] sm:$0xff]
  %v49 = vld [vmem:[#allocation2 + $0x58] sm:$0xff]
  %v50 = vld [vmem:[#allocation2 + $0x60] sm:$0xff]
  %v51 = vld [vmem:[#allocation2 + $0x68] sm:$0xff]
  %v52 = vld [vmem:[#allocation2 + $0x70] sm:$0xff]
  %v53 = vld [vmem:[#allocation2 + $0x78] sm:$0xff]
  %v54 = vld [vmem:[%s0] sm:$0xf]
  %v55 = vld [vmem:[%s0 + $0x4] sm:$0xf]
  %v56 = vld [vmem:[%s0 + $0x8] sm:$0xf]
  %v57 = vld [vmem:[%s0 + $0xc] sm:$0xf]
  %v58 = vld [vmem:[%s0 + $0x10] sm:$0xf]
  %v59 = vld [vmem:[%s0 + $0x14] sm:$0xf]
  %v60 = vld [vmem:[%s0 + $0x18] sm:$0xf]
  %v61 = vld [vmem:[%s0 + $0x1c] sm:$0xf]
  %v62 = vld [vmem:[%s0 + $0x20] sm:$0xf]
  %v63 = vld [vmem:[%s0 + $0x24] sm:$0xf]
  %v64 = vld [vmem:[%s0 + $0x28] sm:$0xf]
  %v65 = vld [vmem:[%s0 + $0x2c] sm:$0xf]
  %v66 = vld [vmem:[%s0 + $0x30] sm:$0xf]
  %v67 = vld [vmem:[%s0 + $0x34] sm:$0xf]
  %v68 = vld [vmem:[%s0 + $0x38] sm:$0xf]
  %v69 = vld [vmem:[%s0 + $0x3c] sm:$0xf]
  %v70 = vld [vmem:[%s1] sm:$0xf]
  %v71 = vld [vmem:[%s1 + $0x4] sm:$0xf]
  %v72 = vld [vmem:[%s1 + $0x8] sm:$0xf]
  %v73 = vld [vmem:[%s1 + $0xc] sm:$0xf]
  %v74 = vld [vmem:[%s1 + $0x10] sm:$0xf]
  %v75 = vld [vmem:[%s1 + $0x14] sm:$0xf]
  %v76 = vld [vmem:[%s1 + $0x18] sm:$0xf]
  %v77 = vld [vmem:[%s1 + $0x1c] sm:$0xf]
  %v78 = vld [vmem:[%s1 + $0x20] sm:$0xf]
  %v79 = vld [vmem:[%s1 + $0x24] sm:$0xf]
  %v80 = vld [vmem:[%s1 + $0x28] sm:$0xf]
  %v81 = vld [vmem:[%s1 + $0x2c] sm:$0xf]
  %v82 = vld [vmem:[%s1 + $0x30] sm:$0xf]
  %v83 = vld [vmem:[%s1 + $0x34] sm:$0xf]
  %v84 = vld [vmem:[%s1 + $0x38] sm:$0xf]
  %v85 = vld [vmem:[%s1 + $0x3c] sm:$0xf]
  %v102 = vunpack.c.l.b16 %v54
  %v103 = vunpack.c.l.b16 %v55
  %v104 = vunpack.c.l.b16 %v56
  %v105 = vunpack.c.l.b16 %v57
  %v106 = vunpack.c.l.b16 %v58
  %v107 = vunpack.c.l.b16 %v59
  %v108 = vunpack.c.l.b16 %v60
  %v109 = vunpack.c.l.b16 %v61
  %v110 = vunpack.c.l.b16 %v62
  %v111 = vunpack.c.l.b16 %v63
  %v112 = vunpack.c.l.b16 %v64
  %v113 = vunpack.c.l.b16 %v65
  %v114 = vunpack.c.l.b16 %v66
  %v115 = vunpack.c.l.b16 %v67
  %v116 = vunpack.c.l.b16 %v68
  %v117 = vunpack.c.l.b16 %v69
  %v118 = vpack.c.b16 %v103, %v102
  %v119 = vpack.c.b16 %v105, %v104
  %v120 = vpack.c.b16 %v107, %v106
  %v121 = vpack.c.b16 %v109, %v108
  %v122 = vpack.c.b16 %v111, %v110
  %v123 = vpack.c.b16 %v113, %v112
  %v124 = vpack.c.b16 %v115, %v114
  %v125 = vpack.c.b16 %v117, %v116
  %v150 = vunpack.c.l.b16 %v70
  %v151 = vunpack.c.l.b16 %v71
  %v152 = vunpack.c.l.b16 %v72
  %v153 = vunpack.c.l.b16 %v73
  %v154 = vunpack.c.l.b16 %v74
  %v155 = vunpack.c.l.b16 %v75
  %v156 = vunpack.c.l.b16 %v76
  %v157 = vunpack.c.l.b16 %v77
  %v158 = vunpack.c.l.b16 %v78
  %v159 = vunpack.c.l.b16 %v79
  %v160 = vunpack.c.l.b16 %v80
  %v161 = vunpack.c.l.b16 %v81
  %v162 = vunpack.c.l.b16 %v82
  %v163 = vunpack.c.l.b16 %v83
  %v164 = vunpack.c.l.b16 %v84
  %v165 = vunpack.c.l.b16 %v85
  %v166 = vpack.c.b16 %v151, %v150
  %v167 = vpack.c.b16 %v153, %v152
  %v168 = vpack.c.b16 %v155, %v154
  %v169 = vpack.c.b16 %v157, %v156
  %v170 = vpack.c.b16 %v159, %v158
  %v171 = vpack.c.b16 %v161, %v160
  %v172 = vpack.c.b16 %v163, %v162
  %v173 = vpack.c.b16 %v165, %v164
  %182 = vmatprep.subr.bf16.mxu0 0
  %183 = vmatpush1.bf16.msra.mxu0 %v166
  %184 = vmatprep.subr.bf16.mxu0 0
  %185 = vmatpush1.bf16.msra.mxu0 %v167
  %186 = vmatprep.subr.bf16.mxu0 0
  %187 = vmatpush1.bf16.msra.mxu0 %v168
  %188 = vmatprep.subr.bf16.mxu0 0
  %189 = vmatpush1.bf16.msra.mxu0 %v169
  %190 = vmatprep.subr.bf16.mxu0 0
  %191 = vmatpush1.bf16.msra.mxu0 %v170
  %192 = vmatprep.subr.bf16.mxu0 0
  %193 = vmatpush1.bf16.msra.mxu0 %v171
  %194 = vmatprep.subr.bf16.mxu0 0
  %195 = vmatpush1.bf16.msra.mxu0 %v172
  %196 = vmatprep.subr.bf16.mxu0 0
  %197 = vmatpush1.bf16.msra.mxu0 %v173
  %198 = vmatprep.subr.bf16.mxu0 0
  %199 = vmatpush1.bf16.msra.mxu0 0
  %200 = vmatprep.subr.bf16.mxu0 0
  %201 = vmatpush1.bf16.msra.mxu0 0
  %202 = vmatprep.subr.bf16.mxu0 0
  %203 = vmatpush1.bf16.msra.mxu0 0
  %204 = vmatprep.subr.bf16.mxu0 0
  %205 = vmatpush1.bf16.msra.mxu0 0
  %206 = vmatprep.subr.bf16.mxu0 0
  %207 = vmatpush1.bf16.msra.mxu0 0
  %208 = vmatprep.subr.bf16.mxu0 0
  %209 = vmatpush1.bf16.msra.mxu0 0
  %210 = vmatprep.subr.bf16.mxu0 0
  %211 = vmatpush1.bf16.msra.mxu0 0
  %212 = vmatprep.subr.bf16.mxu0 0
  %213 = vmatpush1.bf16.msra.mxu0 0
  %214 = vmatprep.mubr.bf16.mxu0 0
  %215 = vmatmul.mubr.bf16.gmra.mrb[0].mxu0 %v118
  %v216 = vpop.f32.mrb[0].mxu0
  %v217 = vadd.f32 0.0, %v216
  %v218 = vpop.f32.mrb[0].mxu0
  %v219 = vpop.f32.mrb[0].mxu0
  %v220 = vadd.f32 0.0, %v219
  %v221 = vpop.f32.mrb[0].mxu0
  %222 = vmatprep.mubr.bf16.mxu0 0
  %223 = vmatmul.mubr.bf16.gmra.mrb[0].mxu0 %v119
  %v224 = vpop.f32.mrb[0].mxu0
  %v225 = vadd.f32 0.0, %v224
  %v226 = vpop.f32.mrb[0].mxu0
  %v227 = vpop.f32.mrb[0].mxu0
  %v228 = vadd.f32 0.0, %v227
  %v229 = vpop.f32.mrb[0].mxu0
  %230 = vmatprep.mubr.bf16.mxu0 0
  %231 = vmatmul.mubr.bf16.gmra.mrb[0].mxu0 %v120
  %v232 = vpop.f32.mrb[0].mxu0
  %v233 = vadd.f32 0.0, %v232
  %v234 = vpop.f32.mrb[0].mxu0
  %v235 = vpop.f32.mrb[0].mxu0
  %v236 = vadd.f32 0.0, %v235
  %v237 = vpop.f32.mrb[0].mxu0
  %238 = vmatprep.mubr.bf16.mxu0 0
  %239 = vmatmul.mubr.bf16.gmra.mrb[0].mxu0 %v121
  %v240 = vpop.f32.mrb[0].mxu0
  %v241 = vadd.f32 0.0, %v240
  %v242 = vpop.f32.mrb[0].mxu0
  %v243 = vpop.f32.mrb[0].mxu0
  %v244 = vadd.f32 0.0, %v243
  %v245 = vpop.f32.mrb[0].mxu0
  %246 = vmatprep.mubr.bf16.mxu0 0
  %247 = vmatmul.mubr.bf16.gmra.mrb[0].mxu0 %v122
  %v248 = vpop.f32.mrb[0].mxu0
  %v249 = vadd.f32 0.0, %v248
  %v250 = vpop.f32.mrb[0].mxu0
  %v251 = vpop.f32.mrb[0].mxu0
  %v252 = vadd.f32 0.0, %v251
  %v253 = vpop.f32.mrb[0].mxu0
  %254 = vmatprep.mubr.bf16.mxu0 0
  %255 = vmatmul.mubr.bf16.gmra.mrb[0].mxu0 %v123
  %v256 = vpop.f32.mrb[0].mxu0
  %v257 = vadd.f32 0.0, %v256
  %v258 = vpop.f32.mrb[0].mxu0
  %v259 = vpop.f32.mrb[0].mxu0
  %v260 = vadd.f32 0.0, %v259
  %v261 = vpop.f32.mrb[0].mxu0
  %262 = vmatprep.mubr.bf16.mxu0 0
  %263 = vmatmul.mubr.bf16.gmra.mrb[0].mxu0 %v124
  %v264 = vpop.f32.mrb[0].mxu0
  %v265 = vadd.f32 0.0, %v264
  %v266 = vpop.f32.mrb[0].mxu0
  %v267 = vpop.f32.mrb[0].mxu0
  %v268 = vadd.f32 0.0, %v267
  %v269 = vpop.f32.mrb[0].mxu0
  %270 = vmatprep.mubr.bf16.mxu0 0
  %271 = vmatmul.mubr.bf16.gmra.mrb[0].mxu0 %v125
  %v272 = vpop.f32.mrb[0].mxu0
  %v273 = vadd.f32 0.0, %v272
  %v274 = vpop.f32.mrb[0].mxu0
  %v275 = vpop.f32.mrb[0].mxu0
  %v276 = vadd.f32 0.0, %v275
  %v277 = vpop.f32.mrb[0].mxu0
  %278 = vdwg.mxu0
  %v279 = vadd.f32 %v38, %v217
  %v280 = vadd.f32 %v39, %v220
  %v281 = vadd.f32 %v40, %v225
  %v282 = vadd.f32 %v41, %v228
  %v283 = vadd.f32 %v42, %v233
  %v284 = vadd.f32 %v43, %v236
  %v285 = vadd.f32 %v44, %v241
  %v286 = vadd.f32 %v45, %v244
  %v287 = vadd.f32 %v46, %v249
  %v288 = vadd.f32 %v47, %v252
  %v289 = vadd.f32 %v48, %v257
  %v290 = vadd.f32 %v49, %v260
  %v291 = vadd.f32 %v50, %v265
  %v292 = vadd.f32 %v51, %v268
  %v293 = vadd.f32 %v52, %v273
  %v294 = vadd.f32 %v53, %v276
  %295 = vst [vmem:[#allocation2] sm:$0xff] %v279
  %296 = vst [vmem:[#allocation2 + $0x8] sm:$0xff] %v280
  %297 = vst [vmem:[#allocation2 + $0x10] sm:$0xff] %v281
  %298 = vst [vmem:[#allocation2 + $0x18] sm:$0xff] %v282
  %299 = vst [vmem:[#allocation2 + $0x20] sm:$0xff] %v283
  %300 = vst [vmem:[#allocation2 + $0x28] sm:$0xff] %v284
  %301 = vst [vmem:[#allocation2 + $0x30] sm:$0xff] %v285
  %302 = vst [vmem:[#allocation2 + $0x38] sm:$0xff] %v286
  %303 = vst [vmem:[#allocation2 + $0x40] sm:$0xff] %v287
  %304 = vst [vmem:[#allocation2 + $0x48] sm:$0xff] %v288
  %305 = vst [vmem:[#allocation2 + $0x50] sm:$0xff] %v289
  %306 = vst [vmem:[#allocation2 + $0x58] sm:$0xff] %v290
  %307 = vst [vmem:[#allocation2 + $0x60] sm:$0xff] %v291
  %308 = vst [vmem:[#allocation2 + $0x68] sm:$0xff] %v292
  %309 = vst [vmem:[#allocation2 + $0x70] sm:$0xff] %v293
  %310 = vst [vmem:[#allocation2 + $0x78] sm:$0xff] %v294
  // Predicated region
  $region22: #{_lambda_.35} parent=0 // pred_check
    %p311 = pneg %p18
  $region23: #{_lambda_.35} parent=0 // pred_check_branch
    %313 = sbr.rel (%p311) target = $region25
  $region24: #{_lambda_.35} parent=0 // pred_region
    %v314 = vld [vmem:[#allocation2] sm:$0xff]
    %v315 = vld [vmem:[#allocation2 + $0x8] sm:$0xff]
    %v316 = vld [vmem:[#allocation2 + $0x10] sm:$0xff]
    %v317 = vld [vmem:[#allocation2 + $0x18] sm:$0xff]
    %v318 = vld [vmem:[#allocation2 + $0x20] sm:$0xff]
    %v319 = vld [vmem:[#allocation2 + $0x28] sm:$0xff]
    %v320 = vld [vmem:[#allocation2 + $0x30] sm:$0xff]
    %v321 = vld [vmem:[#allocation2 + $0x38] sm:$0xff]
    %v322 = vld [vmem:[#allocation2 + $0x40] sm:$0xff]
    %v323 = vld [vmem:[#allocation2 + $0x48] sm:$0xff]
    %v324 = vld [vmem:[#allocation2 + $0x50] sm:$0xff]
    %v325 = vld [vmem:[#allocation2 + $0x58] sm:$0xff]
    %v326 = vld [vmem:[#allocation2 + $0x60] sm:$0xff]
    %v327 = vld [vmem:[#allocation2 + $0x68] sm:$0xff]
    %v328 = vld [vmem:[#allocation2 + $0x70] sm:$0xff]
    %v329 = vld [vmem:[#allocation2 + $0x78] sm:$0xff]
    %v330 = vld [vmem:[%s2] sm:$0x1]
    %v332 = vlaneseq
    %v333 = vshrl.u32 %v332, 7
    %v334 = vsub.s32 0, %v333
    %v335 = vrot.slane %v330, %v334
    %v337 = vmul.f32 %v314, %v335
    %v338 = vmul.f32 %v315, %v335
    %v339 = vmul.f32 %v316, %v335
    %v340 = vmul.f32 %v317, %v335
    %v341 = vmul.f32 %v318, %v335
    %v342 = vmul.f32 %v319, %v335
    %v343 = vmul.f32 %v320, %v335
    %v344 = vmul.f32 %v321, %v335
    %v345 = vmul.f32 %v322, %v335
    %v346 = vmul.f32 %v323, %v335
    %v347 = vmul.f32 %v324, %v335
    %v348 = vmul.f32 %v325, %v335
    %v349 = vmul.f32 %v326, %v335
    %v350 = vmul.f32 %v327, %v335
    %v351 = vmul.f32 %v328, %v335
    %v352 = vmul.f32 %v329, %v335
    %v353 = vld [vmem:[%s3] sm:$0x1]
    %v355 = vlaneseq
    %v356 = vshrl.u32 %v355, 7
    %v357 = vsub.s32 0, %v356
    %v358 = vrot.slane %v353, %v357
    %v360 = vadd.f32 %v337, %v358
    %v361 = vadd.f32 %v338, %v358
    %v362 = vadd.f32 %v339, %v358
    %v363 = vadd.f32 %v340, %v358
    %v364 = vadd.f32 %v341, %v358
    %v365 = vadd.f32 %v342, %v358
    %v366 = vadd.f32 %v343, %v358
    %v367 = vadd.f32 %v344, %v358
    %v368 = vadd.f32 %v345, %v358
    %v369 = vadd.f32 %v346, %v358
    %v370 = vadd.f32 %v347, %v358
    %v371 = vadd.f32 %v348, %v358
    %v372 = vadd.f32 %v349, %v358
    %v373 = vadd.f32 %v350, %v358
    %v374 = vadd.f32 %v351, %v358
    %v375 = vadd.f32 %v352, %v358
    %v376 = vpack.c.bf16 %v361, %v360
    %v377 = vpack.c.bf16 %v363, %v362
    %v378 = vpack.c.bf16 %v365, %v364
    %v379 = vpack.c.bf16 %v367, %v366
    %v380 = vpack.c.bf16 %v369, %v368
    %v381 = vpack.c.bf16 %v371, %v370
    %v382 = vpack.c.bf16 %v373, %v372
    %v383 = vpack.c.bf16 %v375, %v374
    %v392 = vunpack.c.l.b16 %v376
    %v393 = vunpack.c.h.b16 %v376
    %v394 = vunpack.c.l.b16 %v377
    %v395 = vunpack.c.h.b16 %v377
    %v396 = vunpack.c.l.b16 %v378
    %v397 = vunpack.c.h.b16 %v378
    %v398 = vunpack.c.l.b16 %v379
    %v399 = vunpack.c.h.b16 %v379
    %v400 = vunpack.c.l.b16 %v380
    %v401 = vunpack.c.h.b16 %v380
    %v402 = vunpack.c.l.b16 %v381
    %v403 = vunpack.c.h.b16 %v381
    %v404 = vunpack.c.l.b16 %v382
    %v405 = vunpack.c.h.b16 %v382
    %v406 = vunpack.c.l.b16 %v383
    %v407 = vunpack.c.h.b16 %v383
    %v408 = vpack.c.b16 %v392, %v392
    %v409 = vpack.c.b16 %v393, %v393
    %v410 = vpack.c.b16 %v394, %v394
    %v411 = vpack.c.b16 %v395, %v395
    %v412 = vpack.c.b16 %v396, %v396
    %v413 = vpack.c.b16 %v397, %v397
    %v414 = vpack.c.b16 %v398, %v398
    %v415 = vpack.c.b16 %v399, %v399
    %v416 = vpack.c.b16 %v400, %v400
    %v417 = vpack.c.b16 %v401, %v401
    %v418 = vpack.c.b16 %v402, %v402
    %v419 = vpack.c.b16 %v403, %v403
    %v420 = vpack.c.b16 %v404, %v404
    %v421 = vpack.c.b16 %v405, %v405
    %v422 = vpack.c.b16 %v406, %v406
    %v423 = vpack.c.b16 %v407, %v407
    %440 = vst [vmem:[%s4] sm:$0xf] %v408
    %441 = vst [vmem:[%s4 + $0x4] sm:$0xf] %v409
    %442 = vst [vmem:[%s4 + $0x8] sm:$0xf] %v410
    %443 = vst [vmem:[%s4 + $0xc] sm:$0xf] %v411
    %444 = vst [vmem:[%s4 + $0x10] sm:$0xf] %v412
    %445 = vst [vmem:[%s4 + $0x14] sm:$0xf] %v413
    %446 = vst [vmem:[%s4 + $0x18] sm:$0xf] %v414
    %447 = vst [vmem:[%s4 + $0x1c] sm:$0xf] %v415
    %448 = vst [vmem:[%s4 + $0x20] sm:$0xf] %v416
    %449 = vst [vmem:[%s4 + $0x24] sm:$0xf] %v417
    %450 = vst [vmem:[%s4 + $0x28] sm:$0xf] %v418
    %451 = vst [vmem:[%s4 + $0x2c] sm:$0xf] %v419
    %452 = vst [vmem:[%s4 + $0x30] sm:$0xf] %v420
    %453 = vst [vmem:[%s4 + $0x34] sm:$0xf] %v421
    %454 = vst [vmem:[%s4 + $0x38] sm:$0xf] %v422
    %455 = vst [vmem:[%s4 + $0x3c] sm:$0xf] %v423
  $region25: #{_lambda_.35} parent=0 // pred_fallthru
    _
  // Predicated region
  $region26: #{_lambda_.35} parent=0 // pred_check
    _
  $region27: #{_lambda_.35} parent=0 // pred_check_branch
    %457 = sbr.rel (0) target = $region29
  $region28: #{_lambda_.35} parent=0 // pred_region
    _
  $region29: #{_lambda_.35} parent=0 // pred_fallthru
    _
  // Predicated region
  $region30: #{_lambda_.35} parent=0 // pred_check
    _
  $region31: #{_lambda_.35} parent=0 // pred_check_branch
    %459 = sbr.rel (0) target = $region33
  $region32: #{_lambda_.35} parent=0 // pred_region
    _
  $region33: #{_lambda_.35} parent=0 // pred_fallthru
    _

// kernel: _lambda_.38
$region0: #{_lambda_.38}
  #allocation0 [shape = 'u32[]', space=smem, size = 0x4, offset = 0x4, fixed_abs, tag = 'smem constant byte address 0x4 - core index']
  #allocation1 [shape = 'u32[144,128]{1,0:T(1,128)}', space=vmem, size = 0x12000, scoped, tag = 'internal scratch']
  #allocation2 [shape = 'f32[128,128]{1,0:T(8,128)}', space=vmem, size = 0x10000, scoped, tag = 'scratch operand']
  %s0 = inlined_call_operand.vmem [shape: bf16[128,128], index: 0, kind: input, shape index: {}]
  %s1 = inlined_call_operand.vmem [shape: bf16[128,128], index: 1, kind: input, shape index: {}]
  %s2 = inlined_call_operand.vmem [shape: f32[1,128], index: 2, kind: input, shape index: {}]
  %s3 = inlined_call_operand.vmem [shape: f32[1,128], index: 3, kind: input, shape index: {}]
  %s4 = inlined_call_operand.vmem [shape: bf16[128,128], index: 4, kind: input, shape index: {}]
  %s5 = inlined_call_operand.vmem [shape: bf16[128,128], index: 5, kind: output, shape index: {}]
  %s6 = sld [smem:[#allocation0]]
  $region38: #{_lambda_.38} parent=0
    _
  %s8 = ssub.s32 1, %s6
  %s9 = scalar_select 0, %s8, %s6
  // Predicated region
  $region2: #{_lambda_.38} parent=0 // pred_check
    _
  $region3: #{_lambda_.38} parent=0 // pred_check_branch
    %11 = sbr.rel (0) target = $region5
  $region4: #{_lambda_.38} parent=0 // pred_region
    _
  $region5: #{_lambda_.38} parent=0 // pred_fallthru
    _
  // Predicated region
  $region6: #{_lambda_.38} parent=0 // pred_check
    _
  $region7: #{_lambda_.38} parent=0 // pred_check_branch
    %13 = sbr.rel (0) target = $region9
  $region8: #{_lambda_.38} parent=0 // pred_region
    _
  $region9: #{_lambda_.38} parent=0 // pred_fallthru
    _
  // Predicated region
  $region10: #{_lambda_.38} parent=0 // pred_check
    _
  $region11: #{_lambda_.38} parent=0 // pred_check_branch
    %15 = sbr.rel (0) target = $region13
  $region12: #{_lambda_.38} parent=0 // pred_region
    _
  $region13: #{_lambda_.38} parent=0 // pred_fallthru
    _
  // Predicated region
  $region14: #{_lambda_.38} parent=0 // pred_check
    _
  $region15: #{_lambda_.38} parent=0 // pred_check_branch
    %17 = sbr.rel (0) target = $region17
  $region16: #{_lambda_.38} parent=0 // pred_region
    _
  $region17: #{_lambda_.38} parent=0 // pred_fallthru
    _
  // Predicated region
  $region18: #{_lambda_.38} parent=0 // pred_check
    _
  $region19: #{_lambda_.38} parent=0 // pred_check_branch
    %19 = sbr.rel (0) target = $region21
  $region20: #{_lambda_.38} parent=0 // pred_region
    _
  $region21: #{_lambda_.38} parent=0 // pred_fallthru
    _
  %p21 = scmp.eq.s32.totalorder 0, 0
  // Predicated region
  $region22: #{_lambda_.38} parent=0 // pred_check
    %p22 = pneg %p21
  $region23: #{_lambda_.38} parent=0 // pred_check_branch
    %24 = sbr.rel (%p22) target = $region25
  $region24: #{_lambda_.38} parent=0 // pred_region
    %25 = vst [vmem:[#allocation2] sm:$0xff] 0.0
    %26 = vst [vmem:[#allocation2 + $0x8] sm:$0xff] 0.0
    %27 = vst [vmem:[#allocation2 + $0x10] sm:$0xff] 0.0
    %28 = vst [vmem:[#allocation2 + $0x18] sm:$0xff] 0.0
    %29 = vst [vmem:[#allocation2 + $0x20] sm:$0xff] 0.0
    %30 = vst [vmem:[#allocation2 + $0x28] sm:$0xff] 0.0
    %31 = vst [vmem:[#allocation2 + $0x30] sm:$0xff] 0.0
    %32 = vst [vmem:[#allocation2 + $0x38] sm:$0xff] 0.0
    %33 = vst [vmem:[#allocation2 + $0x40] sm:$0xff] 0.0
    %34 = vst [vmem:[#allocation2 + $0x48] sm:$0xff] 0.0
    %35 = vst [vmem:[#allocation2 + $0x50] sm:$0xff] 0.0
    %36 = vst [vmem:[#allocation2 + $0x58] sm:$0xff] 0.0
    %37 = vst [vmem:[#allocation2 + $0x60] sm:$0xff] 0.0
    %38 = vst [vmem:[#allocation2 + $0x68] sm:$0xff] 0.0
    %39 = vst [vmem:[#allocation2 + $0x70] sm:$0xff] 0.0
    %40 = vst [vmem:[#allocation2 + $0x78] sm:$0xff] 0.0
  $region25: #{_lambda_.38} parent=0 // pred_fallthru
    _
  %v41 = vld [vmem:[#allocation2] sm:$0xff]
  %v42 = vld [vmem:[#allocation2 + $0x8] sm:$0xff]
  %v43 = vld [vmem:[#allocation2 + $0x10] sm:$0xff]
  %v44 = vld [vmem:[#allocation2 + $0x18] sm:$0xff]
  %v45 = vld [vmem:[#allocation2 + $0x20] sm:$0xff]
  %v46 = vld [vmem:[#allocation2 + $0x28] sm:$0xff]
  %v47 = vld [vmem:[#allocation2 + $0x30] sm:$0xff]
  %v48 = vld [vmem:[#allocation2 + $0x38] sm:$0xff]
  %v49 = vld [vmem:[#allocation2 + $0x40] sm:$0xff]
  %v50 = vld [vmem:[#allocation2 + $0x48] sm:$0xff]
  %v51 = vld [vmem:[#allocation2 + $0x50] sm:$0xff]
  %v52 = vld [vmem:[#allocation2 + $0x58] sm:$0xff]
  %v53 = vld [vmem:[#allocation2 + $0x60] sm:$0xff]
  %v54 = vld [vmem:[#allocation2 + $0x68] sm:$0xff]
  %v55 = vld [vmem:[#allocation2 + $0x70] sm:$0xff]
  %v56 = vld [vmem:[#allocation2 + $0x78] sm:$0xff]
  %v57 = vld [vmem:[%s0] sm:$0xf]
  %v58 = vld [vmem:[%s0 + $0x4] sm:$0xf]
  %v59 = vld [vmem:[%s0 + $0x8] sm:$0xf]
  %v60 = vld [vmem:[%s0 + $0xc] sm:$0xf]
  %v61 = vld [vmem:[%s0 + $0x10] sm:$0xf]
  %v62 = vld [vmem:[%s0 + $0x14] sm:$0xf]
  %v63 = vld [vmem:[%s0 + $0x18] sm:$0xf]
  %v64 = vld [vmem:[%s0 + $0x1c] sm:$0xf]
  %v65 = vld [vmem:[%s0 + $0x20] sm:$0xf]
  %v66 = vld [vmem:[%s0 + $0x24] sm:$0xf]
  %v67 = vld [vmem:[%s0 + $0x28] sm:$0xf]
  %v68 = vld [vmem:[%s0 + $0x2c] sm:$0xf]
  %v69 = vld [vmem:[%s0 + $0x30] sm:$0xf]
  %v70 = vld [vmem:[%s0 + $0x34] sm:$0xf]
  %v71 = vld [vmem:[%s0 + $0x38] sm:$0xf]
  %v72 = vld [vmem:[%s0 + $0x3c] sm:$0xf]
  %v73 = vld [vmem:[%s1] sm:$0xf]
  %v74 = vld [vmem:[%s1 + $0x4] sm:$0xf]
  %v75 = vld [vmem:[%s1 + $0x8] sm:$0xf]
  %v76 = vld [vmem:[%s1 + $0xc] sm:$0xf]
  %v77 = vld [vmem:[%s1 + $0x10] sm:$0xf]
  %v78 = vld [vmem:[%s1 + $0x14] sm:$0xf]
  %v79 = vld [vmem:[%s1 + $0x18] sm:$0xf]
  %v80 = vld [vmem:[%s1 + $0x1c] sm:$0xf]
  %v81 = vld [vmem:[%s1 + $0x20] sm:$0xf]
  %v82 = vld [vmem:[%s1 + $0x24] sm:$0xf]
  %v83 = vld [vmem:[%s1 + $0x28] sm:$0xf]
  %v84 = vld [vmem:[%s1 + $0x2c] sm:$0xf]
  %v85 = vld [vmem:[%s1 + $0x30] sm:$0xf]
  %v86 = vld [vmem:[%s1 + $0x34] sm:$0xf]
  %v87 = vld [vmem:[%s1 + $0x38] sm:$0xf]
  %v88 = vld [vmem:[%s1 + $0x3c] sm:$0xf]
  %v105 = vunpack.c.l.b16 %v57
  %v106 = vunpack.c.l.b16 %v58
  %v107 = vunpack.c.l.b16 %v59
  %v108 = vunpack.c.l.b16 %v60
  %v109 = vunpack.c.l.b16 %v61
  %v110 = vunpack.c.l.b16 %v62
  %v111 = vunpack.c.l.b16 %v63
  %v112 = vunpack.c.l.b16 %v64
  %v113 = vunpack.c.l.b16 %v65
  %v114 = vunpack.c.l.b16 %v66
  %v115 = vunpack.c.l.b16 %v67
  %v116 = vunpack.c.l.b16 %v68
  %v117 = vunpack.c.l.b16 %v69
  %v118 = vunpack.c.l.b16 %v70
  %v119 = vunpack.c.l.b16 %v71
  %v120 = vunpack.c.l.b16 %v72
  %v121 = vpack.c.b16 %v106, %v105
  %v122 = vpack.c.b16 %v108, %v107
  %v123 = vpack.c.b16 %v110, %v109
  %v124 = vpack.c.b16 %v112, %v111
  %v125 = vpack.c.b16 %v114, %v113
  %v126 = vpack.c.b16 %v116, %v115
  %v127 = vpack.c.b16 %v118, %v117
  %v128 = vpack.c.b16 %v120, %v119
  %v153 = vunpack.c.l.b16 %v73
  %v154 = vunpack.c.l.b16 %v74
  %v155 = vunpack.c.l.b16 %v75
  %v156 = vunpack.c.l.b16 %v76
  %v157 = vunpack.c.l.b16 %v77
  %v158 = vunpack.c.l.b16 %v78
  %v159 = vunpack.c.l.b16 %v79
  %v160 = vunpack.c.l.b16 %v80
  %v161 = vunpack.c.l.b16 %v81
  %v162 = vunpack.c.l.b16 %v82
  %v163 = vunpack.c.l.b16 %v83
  %v164 = vunpack.c.l.b16 %v84
  %v165 = vunpack.c.l.b16 %v85
  %v166 = vunpack.c.l.b16 %v86
  %v167 = vunpack.c.l.b16 %v87
  %v168 = vunpack.c.l.b16 %v88
  %v169 = vpack.c.b16 %v154, %v153
  %v170 = vpack.c.b16 %v156, %v155
  %v171 = vpack.c.b16 %v158, %v157
  %v172 = vpack.c.b16 %v160, %v159
  %v173 = vpack.c.b16 %v162, %v161
  %v174 = vpack.c.b16 %v164, %v163
  %v175 = vpack.c.b16 %v166, %v165
  %v176 = vpack.c.b16 %v168, %v167
  %185 = vmatprep.subr.bf16.mxu0 0
  %186 = vmatpush1.bf16.msra.mxu0 %v169
  %187 = vmatprep.subr.bf16.mxu0 0
  %188 = vmatpush1.bf16.msra.mxu0 %v170
  %189 = vmatprep.subr.bf16.mxu0 0
  %190 = vmatpush1.bf16.msra.mxu0 %v171
  %191 = vmatprep.subr.bf16.mxu0 0
  %192 = vmatpush1.bf16.msra.mxu0 %v172
  %193 = vmatprep.subr.bf16.mxu0 0
  %194 = vmatpush1.bf16.msra.mxu0 %v173
  %195 = vmatprep.subr.bf16.mxu0 0
  %196 = vmatpush1.bf16.msra.mxu0 %v174
  %197 = vmatprep.subr.bf16.mxu0 0
  %198 = vmatpush1.bf16.msra.mxu0 %v175
  %199 = vmatprep.subr.bf16.mxu0 0
  %200 = vmatpush1.bf16.msra.mxu0 %v176
  %201 = vmatprep.subr.bf16.mxu0 0
  %202 = vmatpush1.bf16.msra.mxu0 0
  %203 = vmatprep.subr.bf16.mxu0 0
  %204 = vmatpush1.bf16.msra.mxu0 0
  %205 = vmatprep.subr.bf16.mxu0 0
  %206 = vmatpush1.bf16.msra.mxu0 0
  %207 = vmatprep.subr.bf16.mxu0 0
  %208 = vmatpush1.bf16.msra.mxu0 0
  %209 = vmatprep.subr.bf16.mxu0 0
  %210 = vmatpush1.bf16.msra.mxu0 0
  %211 = vmatprep.subr.bf16.mxu0 0
  %212 = vmatpush1.bf16.msra.mxu0 0
  %213 = vmatprep.subr.bf16.mxu0 0
  %214 = vmatpush1.bf16.msra.mxu0 0
  %215 = vmatprep.subr.bf16.mxu0 0
  %216 = vmatpush1.bf16.msra.mxu0 0
  %217 = vmatprep.mubr.bf16.mxu0 0
  %218 = vmatmul.mubr.bf16.gmra.mrb[0].mxu0 %v121
  %v219 = vpop.f32.mrb[0].mxu0
  %v220 = vadd.f32 0.0, %v219
  %v221 = vpop.f32.mrb[0].mxu0
  %v222 = vpop.f32.mrb[0].mxu0
  %v223 = vadd.f32 0.0, %v222
  %v224 = vpop.f32.mrb[0].mxu0
  %225 = vmatprep.mubr.bf16.mxu0 0
  %226 = vmatmul.mubr.bf16.gmra.mrb[0].mxu0 %v122
  %v227 = vpop.f32.mrb[0].mxu0
  %v228 = vadd.f32 0.0, %v227
  %v229 = vpop.f32.mrb[0].mxu0
  %v230 = vpop.f32.mrb[0].mxu0
  %v231 = vadd.f32 0.0, %v230
  %v232 = vpop.f32.mrb[0].mxu0
  %233 = vmatprep.mubr.bf16.mxu0 0
  %234 = vmatmul.mubr.bf16.gmra.mrb[0].mxu0 %v123
  %v235 = vpop.f32.mrb[0].mxu0
  %v236 = vadd.f32 0.0, %v235
  %v237 = vpop.f32.mrb[0].mxu0
  %v238 = vpop.f32.mrb[0].mxu0
  %v239 = vadd.f32 0.0, %v238
  %v240 = vpop.f32.mrb[0].mxu0
  %241 = vmatprep.mubr.bf16.mxu0 0
  %242 = vmatmul.mubr.bf16.gmra.mrb[0].mxu0 %v124
  %v243 = vpop.f32.mrb[0].mxu0
  %v244 = vadd.f32 0.0, %v243
  %v245 = vpop.f32.mrb[0].mxu0
  %v246 = vpop.f32.mrb[0].mxu0
  %v247 = vadd.f32 0.0, %v246
  %v248 = vpop.f32.mrb[0].mxu0
  %249 = vmatprep.mubr.bf16.mxu0 0
  %250 = vmatmul.mubr.bf16.gmra.mrb[0].mxu0 %v125
  %v251 = vpop.f32.mrb[0].mxu0
  %v252 = vadd.f32 0.0, %v251
  %v253 = vpop.f32.mrb[0].mxu0
  %v254 = vpop.f32.mrb[0].mxu0
  %v255 = vadd.f32 0.0, %v254
  %v256 = vpop.f32.mrb[0].mxu0
  %257 = vmatprep.mubr.bf16.mxu0 0
  %258 = vmatmul.mubr.bf16.gmra.mrb[0].mxu0 %v126
  %v259 = vpop.f32.mrb[0].mxu0
  %v260 = vadd.f32 0.0, %v259
  %v261 = vpop.f32.mrb[0].mxu0
  %v262 = vpop.f32.mrb[0].mxu0
  %v263 = vadd.f32 0.0, %v262
  %v264 = vpop.f32.mrb[0].mxu0
  %265 = vmatprep.mubr.bf16.mxu0 0
  %266 = vmatmul.mubr.bf16.gmra.mrb[0].mxu0 %v127
  %v267 = vpop.f32.mrb[0].mxu0
  %v268 = vadd.f32 0.0, %v267
  %v269 = vpop.f32.mrb[0].mxu0
  %v270 = vpop.f32.mrb[0].mxu0
  %v271 = vadd.f32 0.0, %v270
  %v272 = vpop.f32.mrb[0].mxu0
  %273 = vmatprep.mubr.bf16.mxu0 0
  %274 = vmatmul.mubr.bf16.gmra.mrb[0].mxu0 %v128
  %v275 = vpop.f32.mrb[0].mxu0
  %v276 = vadd.f32 0.0, %v275
  %v277 = vpop.f32.mrb[0].mxu0
  %v278 = vpop.f32.mrb[0].mxu0
  %v279 = vadd.f32 0.0, %v278
  %v280 = vpop.f32.mrb[0].mxu0
  %281 = vdwg.mxu0
  %v282 = vadd.f32 %v41, %v220
  %v283 = vadd.f32 %v42, %v223
  %v284 = vadd.f32 %v43, %v228
  %v285 = vadd.f32 %v44, %v231
  %v286 = vadd.f32 %v45, %v236
  %v287 = vadd.f32 %v46, %v239
  %v288 = vadd.f32 %v47, %v244
  %v289 = vadd.f32 %v48, %v247
  %v290 = vadd.f32 %v49, %v252
  %v291 = vadd.f32 %v50, %v255
  %v292 = vadd.f32 %v51, %v260
  %v293 = vadd.f32 %v52, %v263
  %v294 = vadd.f32 %v53, %v268
  %v295 = vadd.f32 %v54, %v271
  %v296 = vadd.f32 %v55, %v276
  %v297 = vadd.f32 %v56, %v279
  %298 = vst [vmem:[#allocation2] sm:$0xff] %v282
  %299 = vst [vmem:[#allocation2 + $0x8] sm:$0xff] %v283
  %300 = vst [vmem:[#allocation2 + $0x10] sm:$0xff] %v284
  %301 = vst [vmem:[#allocation2 + $0x18] sm:$0xff] %v285
  %302 = vst [vmem:[#allocation2 + $0x20] sm:$0xff] %v286
  %303 = vst [vmem:[#allocation2 + $0x28] sm:$0xff] %v287
  %304 = vst [vmem:[#allocation2 + $0x30] sm:$0xff] %v288
  %305 = vst [vmem:[#allocation2 + $0x38] sm:$0xff] %v289
  %306 = vst [vmem:[#allocation2 + $0x40] sm:$0xff] %v290
  %307 = vst [vmem:[#allocation2 + $0x48] sm:$0xff] %v291
  %308 = vst [vmem:[#allocation2 + $0x50] sm:$0xff] %v292
  %309 = vst [vmem:[#allocation2 + $0x58] sm:$0xff] %v293
  %310 = vst [vmem:[#allocation2 + $0x60] sm:$0xff] %v294
  %311 = vst [vmem:[#allocation2 + $0x68] sm:$0xff] %v295
  %312 = vst [vmem:[#allocation2 + $0x70] sm:$0xff] %v296
  %313 = vst [vmem:[#allocation2 + $0x78] sm:$0xff] %v297
  // Predicated region
  $region26: #{_lambda_.38} parent=0 // pred_check
    %p314 = pneg %p21
  $region27: #{_lambda_.38} parent=0 // pred_check_branch
    %316 = sbr.rel (%p314) target = $region29
  $region28: #{_lambda_.38} parent=0 // pred_region
    %v317 = vld [vmem:[#allocation2] sm:$0xff]
    %v318 = vld [vmem:[#allocation2 + $0x8] sm:$0xff]
    %v319 = vld [vmem:[#allocation2 + $0x10] sm:$0xff]
    %v320 = vld [vmem:[#allocation2 + $0x18] sm:$0xff]
    %v321 = vld [vmem:[#allocation2 + $0x20] sm:$0xff]
    %v322 = vld [vmem:[#allocation2 + $0x28] sm:$0xff]
    %v323 = vld [vmem:[#allocation2 + $0x30] sm:$0xff]
    %v324 = vld [vmem:[#allocation2 + $0x38] sm:$0xff]
    %v325 = vld [vmem:[#allocation2 + $0x40] sm:$0xff]
    %v326 = vld [vmem:[#allocation2 + $0x48] sm:$0xff]
    %v327 = vld [vmem:[#allocation2 + $0x50] sm:$0xff]
    %v328 = vld [vmem:[#allocation2 + $0x58] sm:$0xff]
    %v329 = vld [vmem:[#allocation2 + $0x60] sm:$0xff]
    %v330 = vld [vmem:[#allocation2 + $0x68] sm:$0xff]
    %v331 = vld [vmem:[#allocation2 + $0x70] sm:$0xff]
    %v332 = vld [vmem:[#allocation2 + $0x78] sm:$0xff]
    %v333 = vld [vmem:[%s2] sm:$0x1]
    %v335 = vlaneseq
    %v336 = vshrl.u32 %v335, 7
    %v337 = vsub.s32 0, %v336
    %v338 = vrot.slane %v333, %v337
    %v340 = vmul.f32 %v317, %v338
    %v341 = vmul.f32 %v318, %v338
    %v342 = vmul.f32 %v319, %v338
    %v343 = vmul.f32 %v320, %v338
    %v344 = vmul.f32 %v321, %v338
    %v345 = vmul.f32 %v322, %v338
    %v346 = vmul.f32 %v323, %v338
    %v347 = vmul.f32 %v324, %v338
    %v348 = vmul.f32 %v325, %v338
    %v349 = vmul.f32 %v326, %v338
    %v350 = vmul.f32 %v327, %v338
    %v351 = vmul.f32 %v328, %v338
    %v352 = vmul.f32 %v329, %v338
    %v353 = vmul.f32 %v330, %v338
    %v354 = vmul.f32 %v331, %v338
    %v355 = vmul.f32 %v332, %v338
    %v356 = vld [vmem:[%s3] sm:$0x1]
    %v358 = vlaneseq
    %v359 = vshrl.u32 %v358, 7
    %v360 = vsub.s32 0, %v359
    %v361 = vrot.slane %v356, %v360
    %v363 = vadd.f32 %v340, %v361
    %v364 = vadd.f32 %v341, %v361
    %v365 = vadd.f32 %v342, %v361
    %v366 = vadd.f32 %v343, %v361
    %v367 = vadd.f32 %v344, %v361
    %v368 = vadd.f32 %v345, %v361
    %v369 = vadd.f32 %v346, %v361
    %v370 = vadd.f32 %v347, %v361
    %v371 = vadd.f32 %v348, %v361
    %v372 = vadd.f32 %v349, %v361
    %v373 = vadd.f32 %v350, %v361
    %v374 = vadd.f32 %v351, %v361
    %v375 = vadd.f32 %v352, %v361
    %v376 = vadd.f32 %v353, %v361
    %v377 = vadd.f32 %v354, %v361
    %v378 = vadd.f32 %v355, %v361
    %v379 = vld [vmem:[%s4] sm:$0xf]
    %v380 = vld [vmem:[%s4 + $0x4] sm:$0xf]
    %v381 = vld [vmem:[%s4 + $0x8] sm:$0xf]
    %v382 = vld [vmem:[%s4 + $0xc] sm:$0xf]
    %v383 = vld [vmem:[%s4 + $0x10] sm:$0xf]
    %v384 = vld [vmem:[%s4 + $0x14] sm:$0xf]
    %v385 = vld [vmem:[%s4 + $0x18] sm:$0xf]
    %v386 = vld [vmem:[%s4 + $0x1c] sm:$0xf]
    %v387 = vld [vmem:[%s4 + $0x20] sm:$0xf]
    %v388 = vld [vmem:[%s4 + $0x24] sm:$0xf]
    %v389 = vld [vmem:[%s4 + $0x28] sm:$0xf]
    %v390 = vld [vmem:[%s4 + $0x2c] sm:$0xf]
    %v391 = vld [vmem:[%s4 + $0x30] sm:$0xf]
    %v392 = vld [vmem:[%s4 + $0x34] sm:$0xf]
    %v393 = vld [vmem:[%s4 + $0x38] sm:$0xf]
    %v394 = vld [vmem:[%s4 + $0x3c] sm:$0xf]
    %v395 = vunpack.c.l.bf16 %v379
    %v396 = vunpack.c.l.bf16 %v380
    %v397 = vunpack.c.l.bf16 %v381
    %v398 = vunpack.c.l.bf16 %v382
    %v399 = vunpack.c.l.bf16 %v383
    %v400 = vunpack.c.l.bf16 %v384
    %v401 = vunpack.c.l.bf16 %v385
    %v402 = vunpack.c.l.bf16 %v386
    %v403 = vunpack.c.l.bf16 %v387
    %v404 = vunpack.c.l.bf16 %v388
    %v405 = vunpack.c.l.bf16 %v389
    %v406 = vunpack.c.l.bf16 %v390
    %v407 = vunpack.c.l.bf16 %v391
    %v408 = vunpack.c.l.bf16 %v392
    %v409 = vunpack.c.l.bf16 %v393
    %v410 = vunpack.c.l.bf16 %v394
    %v411 = vadd.f32 %v363, %v395
    %v412 = vadd.f32 %v364, %v396
    %v413 = vadd.f32 %v365, %v397
    %v414 = vadd.f32 %v366, %v398
    %v415 = vadd.f32 %v367, %v399
    %v416 = vadd.f32 %v368, %v400
    %v417 = vadd.f32 %v369, %v401
    %v418 = vadd.f32 %v370, %v402
    %v419 = vadd.f32 %v371, %v403
    %v420 = vadd.f32 %v372, %v404
    %v421 = vadd.f32 %v373, %v405
    %v422 = vadd.f32 %v374, %v406
    %v423 = vadd.f32 %v375, %v407
    %v424 = vadd.f32 %v376, %v408
    %v425 = vadd.f32 %v377, %v409
    %v426 = vadd.f32 %v378, %v410
    %v427 = vmax.f32 %v411, 0.0
    %v428 = vmax.f32 %v412, 0.0
    %v429 = vmax.f32 %v413, 0.0
    %v430 = vmax.f32 %v414, 0.0
    %v431 = vmax.f32 %v415, 0.0
    %v432 = vmax.f32 %v416, 0.0
    %v433 = vmax.f32 %v417, 0.0
    %v434 = vmax.f32 %v418, 0.0
    %v435 = vmax.f32 %v419, 0.0
    %v436 = vmax.f32 %v420, 0.0
    %v437 = vmax.f32 %v421, 0.0
    %v438 = vmax.f32 %v422, 0.0
    %v439 = vmax.f32 %v423, 0.0
    %v440 = vmax.f32 %v424, 0.0
    %v441 = vmax.f32 %v425, 0.0
    %v442 = vmax.f32 %v426, 0.0
    %v443 = vpack.c.bf16 %v428, %v427
    %v444 = vpack.c.bf16 %v430, %v429
    %v445 = vpack.c.bf16 %v432, %v431
    %v446 = vpack.c.bf16 %v434, %v433
    %v447 = vpack.c.bf16 %v436, %v435
    %v448 = vpack.c.bf16 %v438, %v437
    %v449 = vpack.c.bf16 %v440, %v439
    %v450 = vpack.c.bf16 %v442, %v441
    %v459 = vunpack.c.l.b16 %v443
    %v460 = vunpack.c.h.b16 %v443
    %v461 = vunpack.c.l.b16 %v444
    %v462 = vunpack.c.h.b16 %v444
    %v463 = vunpack.c.l.b16 %v445
    %v464 = vunpack.c.h.b16 %v445
    %v465 = vunpack.c.l.b16 %v446
    %v466 = vunpack.c.h.b16 %v446
    %v467 = vunpack.c.l.b16 %v447
    %v468 = vunpack.c.h.b16 %v447
    %v469 = vunpack.c.l.b16 %v448
    %v470 = vunpack.c.h.b16 %v448
    %v471 = vunpack.c.l.b16 %v449
    %v472 = vunpack.c.h.b16 %v449
    %v473 = vunpack.c.l.b16 %v450
    %v474 = vunpack.c.h.b16 %v450
    %v475 = vpack.c.b16 %v459, %v459
    %v476 = vpack.c.b16 %v460, %v460
    %v477 = vpack.c.b16 %v461, %v461
    %v478 = vpack.c.b16 %v462, %v462
    %v479 = vpack.c.b16 %v463, %v463
    %v480 = vpack.c.b16 %v464, %v464
    %v481 = vpack.c.b16 %v465, %v465
    %v482 = vpack.c.b16 %v466, %v466
    %v483 = vpack.c.b16 %v467, %v467
    %v484 = vpack.c.b16 %v468, %v468
    %v485 = vpack.c.b16 %v469, %v469
    %v486 = vpack.c.b16 %v470, %v470
    %v487 = vpack.c.b16 %v471, %v471
    %v488 = vpack.c.b16 %v472, %v472
    %v489 = vpack.c.b16 %v473, %v473
    %v490 = vpack.c.b16 %v474, %v474
    %507 = vst [vmem:[%s5] sm:$0xf] %v475
    %508 = vst [vmem:[%s5 + $0x4] sm:$0xf] %v476
    %509 = vst [vmem:[%s5 + $0x8] sm:$0xf] %v477
    %510 = vst [vmem:[%s5 + $0xc] sm:$0xf] %v478
    %511 = vst [vmem:[%s5 + $0x10] sm:$0xf] %v479
    %512 = vst [vmem:[%s5 + $0x14] sm:$0xf] %v480
    %513 = vst [vmem:[%s5 + $0x18] sm:$0xf] %v481
    %514 = vst [vmem:[%s5 + $0x1c] sm:$0xf] %v482
    %515 = vst [vmem:[%s5 + $0x20] sm:$0xf] %v483
    %516 = vst [vmem:[%s5 + $0x24] sm:$0xf] %v484
    %517 = vst [vmem:[%s5 + $0x28] sm:$0xf] %v485
    %518 = vst [vmem:[%s5 + $0x2c] sm:$0xf] %v486
    %519 = vst [vmem:[%s5 + $0x30] sm:$0xf] %v487
    %520 = vst [vmem:[%s5 + $0x34] sm:$0xf] %v488
    %521 = vst [vmem:[%s5 + $0x38] sm:$0xf] %v489
    %522 = vst [vmem:[%s5 + $0x3c] sm:$0xf] %v490
  $region29: #{_lambda_.38} parent=0 // pred_fallthru
    _
  // Predicated region
  $region30: #{_lambda_.38} parent=0 // pred_check
    _
  $region31: #{_lambda_.38} parent=0 // pred_check_branch
    %524 = sbr.rel (0) target = $region33
  $region32: #{_lambda_.38} parent=0 // pred_region
    _
  $region33: #{_lambda_.38} parent=0 // pred_fallthru
    _
  // Predicated region
  $region34: #{_lambda_.38} parent=0 // pred_check
    _
  $region35: #{_lambda_.38} parent=0 // pred_check_branch
    %526 = sbr.rel (0) target = $region37
  $region36: #{_lambda_.38} parent=0 // pred_region
    _
  $region37: #{_lambda_.38} parent=0 // pred_fallthru
    _

// kernel: _lambda_.46
$region0: #{_lambda_.46}
  #allocation0 [shape = 'u32[]', space=smem, size = 0x4, offset = 0x4, fixed_abs, tag = 'smem constant byte address 0x4 - core index']
  #allocation1 [shape = 'u32[144,128]{1,0:T(1,128)}', space=vmem, size = 0x12000, scoped, tag = 'internal scratch']
  #allocation2 [shape = 'f32[32,128]{1,0:T(8,128)}', space=vmem, size = 0x4000, scoped, tag = 'scratch operand']
  %s0 = inlined_call_operand.vmem [shape: bf16[32,256], index: 0, kind: input, shape index: {}]
  %s1 = inlined_call_operand.vmem [shape: bf16[256,128], index: 1, kind: input, shape index: {}]
  %s2 = inlined_call_operand.vmem [shape: f32[1,128], index: 2, kind: input, shape index: {}]
  %s3 = inlined_call_operand.vmem [shape: f32[1,128], index: 3, kind: input, shape index: {}]
  %s4 = inlined_call_operand.vmem [shape: bf16[32,128], index: 4, kind: output, shape index: {}]
  %s5 = sld [smem:[#allocation0]]
  $region34: #{_lambda_.46} parent=0
    _
  %s7 = ssub.s32 1, %s5
  %s8 = scalar_select 0, %s7, %s5
  // Predicated region
  $region2: #{_lambda_.46} parent=0 // pred_check
    _
  $region3: #{_lambda_.46} parent=0 // pred_check_branch
    %10 = sbr.rel (0) target = $region5
  $region4: #{_lambda_.46} parent=0 // pred_region
    _
  $region5: #{_lambda_.46} parent=0 // pred_fallthru
    _
  // Predicated region
  $region6: #{_lambda_.46} parent=0 // pred_check
    _
  $region7: #{_lambda_.46} parent=0 // pred_check_branch
    %12 = sbr.rel (0) target = $region9
  $region8: #{_lambda_.46} parent=0 // pred_region
    _
  $region9: #{_lambda_.46} parent=0 // pred_fallthru
    _
  // Predicated region
  $region10: #{_lambda_.46} parent=0 // pred_check
    _
  $region11: #{_lambda_.46} parent=0 // pred_check_branch
    %14 = sbr.rel (0) target = $region13
  $region12: #{_lambda_.46} parent=0 // pred_region
    _
  $region13: #{_lambda_.46} parent=0 // pred_fallthru
    _
  // Predicated region
  $region14: #{_lambda_.46} parent=0 // pred_check
    _
  $region15: #{_lambda_.46} parent=0 // pred_check_branch
    %16 = sbr.rel (0) target = $region17
  $region16: #{_lambda_.46} parent=0 // pred_region
    _
  $region17: #{_lambda_.46} parent=0 // pred_fallthru
    _
  %p18 = scmp.eq.s32.totalorder 0, 0
  // Predicated region
  $region18: #{_lambda_.46} parent=0 // pred_check
    %p19 = pneg %p18
  $region19: #{_lambda_.46} parent=0 // pred_check_branch
    %21 = sbr.rel (%p19) target = $region21
  $region20: #{_lambda_.46} parent=0 // pred_region
    %22 = vst [vmem:[#allocation2] sm:$0xff] 0.0
    %23 = vst [vmem:[#allocation2 + $0x8] sm:$0xff] 0.0
    %24 = vst [vmem:[#allocation2 + $0x10] sm:$0xff] 0.0
    %25 = vst [vmem:[#allocation2 + $0x18] sm:$0xff] 0.0
  $region21: #{_lambda_.46} parent=0 // pred_fallthru
    _
  %v26 = vld [vmem:[#allocation2] sm:$0xff]
  %v27 = vld [vmem:[#allocation2 + $0x8] sm:$0xff]
  %v28 = vld [vmem:[#allocation2 + $0x10] sm:$0xff]
  %v29 = vld [vmem:[#allocation2 + $0x18] sm:$0xff]
  %v30 = vld [vmem:[%s0] sm:$0xff]
  %v31 = vld [vmem:[%s0 + $0x8] sm:$0xff]
  %v32 = vld [vmem:[%s0 + $0x10] sm:$0xff]
  %v33 = vld [vmem:[%s0 + $0x18] sm:$0xff]
  %v34 = vld [vmem:[%s1] sm:$0xf]
  %v35 = vld [vmem:[%s1 + $0x4] sm:$0xf]
  %v36 = vld [vmem:[%s1 + $0x8] sm:$0xf]
  %v37 = vld [vmem:[%s1 + $0xc] sm:$0xf]
  %v38 = vld [vmem:[%s1 + $0x10] sm:$0xf]
  %v39 = vld [vmem:[%s1 + $0x14] sm:$0xf]
  %v40 = vld [vmem:[%s1 + $0x18] sm:$0xf]
  %v41 = vld [vmem:[%s1 + $0x1c] sm:$0xf]
  %v42 = vld [vmem:[%s1 + $0x20] sm:$0xf]
  %v43 = vld [vmem:[%s1 + $0x24] sm:$0xf]
  %v44 = vld [vmem:[%s1 + $0x28] sm:$0xf]
  %v45 = vld [vmem:[%s1 + $0x2c] sm:$0xf]
  %v46 = vld [vmem:[%s1 + $0x30] sm:$0xf]
  %v47 = vld [vmem:[%s1 + $0x34] sm:$0xf]
  %v48 = vld [vmem:[%s1 + $0x38] sm:$0xf]
  %v49 = vld [vmem:[%s1 + $0x3c] sm:$0xf]
  %v50 = vld [vmem:[%s1 + $0x40] sm:$0xf]
  %v51 = vld [vmem:[%s1 + $0x44] sm:$0xf]
  %v52 = vld [vmem:[%s1 + $0x48] sm:$0xf]
  %v53 = vld [vmem:[%s1 + $0x4c] sm:$0xf]
  %v54 = vld [vmem:[%s1 + $0x50] sm:$0xf]
  %v55 = vld [vmem:[%s1 + $0x54] sm:$0xf]
  %v56 = vld [vmem:[%s1 + $0x58] sm:$0xf]
  %v57 = vld [vmem:[%s1 + $0x5c] sm:$0xf]
  %v58 = vld [vmem:[%s1 + $0x60] sm:$0xf]
  %v59 = vld [vmem:[%s1 + $0x64] sm:$0xf]
  %v60 = vld [vmem:[%s1 + $0x68] sm:$0xf]
  %v61 = vld [vmem:[%s1 + $0x6c] sm:$0xf]
  %v62 = vld [vmem:[%s1 + $0x70] sm:$0xf]
  %v63 = vld [vmem:[%s1 + $0x74] sm:$0xf]
  %v64 = vld [vmem:[%s1 + $0x78] sm:$0xf]
  %v65 = vld [vmem:[%s1 + $0x7c] sm:$0xf]
  %v70 = vunpack.c.l.b16 %v30
  %v71 = vunpack.c.h.b16 %v30
  %v72 = vunpack.c.l.b16 %v31
  %v73 = vunpack.c.h.b16 %v31
  %v74 = vunpack.c.l.b16 %v32
  %v75 = vunpack.c.h.b16 %v32
  %v76 = vunpack.c.l.b16 %v33
  %v77 = vunpack.c.h.b16 %v33
  %v78 = vpack.c.b16 %v72, %v70
  %v79 = vpack.c.b16 %v73, %v71
  %v80 = vpack.c.b16 %v76, %v74
  %v81 = vpack.c.b16 %v77, %v75
  %v118 = vunpack.c.l.b16 %v34
  %v119 = vunpack.c.l.b16 %v35
  %v120 = vunpack.c.l.b16 %v36
  %v121 = vunpack.c.l.b16 %v37
  %v122 = vunpack.c.l.b16 %v38
  %v123 = vunpack.c.l.b16 %v39
  %v124 = vunpack.c.l.b16 %v40
  %v125 = vunpack.c.l.b16 %v41
  %v126 = vunpack.c.l.b16 %v42
  %v127 = vunpack.c.l.b16 %v43
  %v128 = vunpack.c.l.b16 %v44
  %v129 = vunpack.c.l.b16 %v45
  %v130 = vunpack.c.l.b16 %v46
  %v131 = vunpack.c.l.b16 %v47
  %v132 = vunpack.c.l.b16 %v48
  %v133 = vunpack.c.l.b16 %v49
  %v134 = vunpack.c.l.b16 %v50
  %v135 = vunpack.c.l.b16 %v51
  %v136 = vunpack.c.l.b16 %v52
  %v137 = vunpack.c.l.b16 %v53
  %v138 = vunpack.c.l.b16 %v54
  %v139 = vunpack.c.l.b16 %v55
  %v140 = vunpack.c.l.b16 %v56
  %v141 = vunpack.c.l.b16 %v57
  %v142 = vunpack.c.l.b16 %v58
  %v143 = vunpack.c.l.b16 %v59
  %v144 = vunpack.c.l.b16 %v60
  %v145 = vunpack.c.l.b16 %v61
  %v146 = vunpack.c.l.b16 %v62
  %v147 = vunpack.c.l.b16 %v63
  %v148 = vunpack.c.l.b16 %v64
  %v149 = vunpack.c.l.b16 %v65
  %v150 = vpack.c.b16 %v119, %v118
  %v151 = vpack.c.b16 %v121, %v120
  %v152 = vpack.c.b16 %v123, %v122
  %v153 = vpack.c.b16 %v125, %v124
  %v154 = vpack.c.b16 %v127, %v126
  %v155 = vpack.c.b16 %v129, %v128
  %v156 = vpack.c.b16 %v131, %v130
  %v157 = vpack.c.b16 %v133, %v132
  %v158 = vpack.c.b16 %v135, %v134
  %v159 = vpack.c.b16 %v137, %v136
  %v160 = vpack.c.b16 %v139, %v138
  %v161 = vpack.c.b16 %v141, %v140
  %v162 = vpack.c.b16 %v143, %v142
  %v163 = vpack.c.b16 %v145, %v144
  %v164 = vpack.c.b16 %v147, %v146
  %v165 = vpack.c.b16 %v149, %v148
  %182 = vmatprep.subr.bf16.mxu0 0
  %183 = vmatpush1.bf16.msra.mxu0 %v150
  %184 = vmatprep.subr.bf16.mxu0 0
  %185 = vmatpush1.bf16.msra.mxu0 %v151
  %186 = vmatprep.subr.bf16.mxu0 0
  %187 = vmatpush1.bf16.msra.mxu0 %v152
  %188 = vmatprep.subr.bf16.mxu0 0
  %189 = vmatpush1.bf16.msra.mxu0 %v153
  %190 = vmatprep.subr.bf16.mxu0 0
  %191 = vmatpush1.bf16.msra.mxu0 %v154
  %192 = vmatprep.subr.bf16.mxu0 0
  %193 = vmatpush1.bf16.msra.mxu0 %v155
  %194 = vmatprep.subr.bf16.mxu0 0
  %195 = vmatpush1.bf16.msra.mxu0 %v156
  %196 = vmatprep.subr.bf16.mxu0 0
  %197 = vmatpush1.bf16.msra.mxu0 %v157
  %198 = vmatprep.subr.bf16.mxu0 0
  %199 = vmatpush1.bf16.msra.mxu0 %v158
  %200 = vmatprep.subr.bf16.mxu0 0
  %201 = vmatpush1.bf16.msra.mxu0 %v159
  %202 = vmatprep.subr.bf16.mxu0 0
  %203 = vmatpush1.bf16.msra.mxu0 %v160
  %204 = vmatprep.subr.bf16.mxu0 0
  %205 = vmatpush1.bf16.msra.mxu0 %v161
  %206 = vmatprep.subr.bf16.mxu0 0
  %207 = vmatpush1.bf16.msra.mxu0 %v162
  %208 = vmatprep.subr.bf16.mxu0 0
  %209 = vmatpush1.bf16.msra.mxu0 %v163
  %210 = vmatprep.subr.bf16.mxu0 0
  %211 = vmatpush1.bf16.msra.mxu0 %v164
  %212 = vmatprep.subr.bf16.mxu0 0
  %213 = vmatpush1.bf16.msra.mxu0 %v165
  %214 = vmatprep.mubr.bf16.mxu0 %v79
  %215 = vmatmul.mubr.bf16.gmra.mrb[0].mxu0 %v78
  %v216 = vpop.f32.mrb[0].mxu0
  %v217 = vadd.f32 0.0, %v216
  %v218 = vpop.f32.mrb[0].mxu0
  %v219 = vpop.f32.mrb[0].mxu0
  %v220 = vadd.f32 0.0, %v219
  %v221 = vpop.f32.mrb[0].mxu0
  %222 = vmatprep.mubr.bf16.mxu0 %v81
  %223 = vmatmul.mubr.bf16.gmra.mrb[0].mxu0 %v80
  %v224 = vpop.f32.mrb[0].mxu0
  %v225 = vadd.f32 0.0, %v224
  %v226 = vpop.f32.mrb[0].mxu0
  %v227 = vpop.f32.mrb[0].mxu0
  %v228 = vadd.f32 0.0, %v227
  %v229 = vpop.f32.mrb[0].mxu0
  %230 = vdwg.mxu0
  %v231 = vadd.f32 %v26, %v217
  %v232 = vadd.f32 %v27, %v220
  %v233 = vadd.f32 %v28, %v225
  %v234 = vadd.f32 %v29, %v228
  %235 = vst [vmem:[#allocation2] sm:$0xff] %v231
  %236 = vst [vmem:[#allocation2 + $0x8] sm:$0xff] %v232
  %237 = vst [vmem:[#allocation2 + $0x10] sm:$0xff] %v233
  %238 = vst [vmem:[#allocation2 + $0x18] sm:$0xff] %v234
  // Predicated region
  $region22: #{_lambda_.46} parent=0 // pred_check
    %p239 = pneg %p18
  $region23: #{_lambda_.46} parent=0 // pred_check_branch
    %241 = sbr.rel (%p239) target = $region25
  $region24: #{_lambda_.46} parent=0 // pred_region
    %v242 = vld [vmem:[#allocation2] sm:$0xff]
    %v243 = vld [vmem:[#allocation2 + $0x8] sm:$0xff]
    %v244 = vld [vmem:[#allocation2 + $0x10] sm:$0xff]
    %v245 = vld [vmem:[#allocation2 + $0x18] sm:$0xff]
    %v246 = vld [vmem:[%s2] sm:$0x1]
    %v248 = vlaneseq
    %v249 = vshrl.u32 %v248, 7
    %v250 = vsub.s32 0, %v249
    %v251 = vrot.slane %v246, %v250
    %v253 = vmul.f32 %v242, %v251
    %v254 = vmul.f32 %v243, %v251
    %v255 = vmul.f32 %v244, %v251
    %v256 = vmul.f32 %v245, %v251
    %v257 = vld [vmem:[%s3] sm:$0x1]
    %v259 = vlaneseq
    %v260 = vshrl.u32 %v259, 7
    %v261 = vsub.s32 0, %v260
    %v262 = vrot.slane %v257, %v261
    %v264 = vadd.f32 %v253, %v262
    %v265 = vadd.f32 %v254, %v262
    %v266 = vadd.f32 %v255, %v262
    %v267 = vadd.f32 %v256, %v262
    %v268 = vpack.c.bf16 %v265, %v264
    %v269 = vpack.c.bf16 %v267, %v266
    %v272 = vunpack.c.l.b16 %v268
    %v273 = vunpack.c.h.b16 %v268
    %v274 = vunpack.c.l.b16 %v269
    %v275 = vunpack.c.h.b16 %v269
    %v276 = vpack.c.b16 %v272, %v272
    %v277 = vpack.c.b16 %v273, %v273
    %v278 = vpack.c.b16 %v274, %v274
    %v279 = vpack.c.b16 %v275, %v275
    %284 = vst [vmem:[%s4] sm:$0xf] %v276
    %285 = vst [vmem:[%s4 + $0x4] sm:$0xf] %v277
    %286 = vst [vmem:[%s4 + $0x8] sm:$0xf] %v278
    %287 = vst [vmem:[%s4 + $0xc] sm:$0xf] %v279
  $region25: #{_lambda_.46} parent=0 // pred_fallthru
    _
  // Predicated region
  $region26: #{_lambda_.46} parent=0 // pred_check
    _
  $region27: #{_lambda_.46} parent=0 // pred_check_branch
    %289 = sbr.rel (0) target = $region29
  $region28: #{_lambda_.46} parent=0 // pred_region
    _
  $region29: #{_lambda_.46} parent=0 // pred_fallthru
    _
  // Predicated region
  $region30: #{_lambda_.46} parent=0 // pred_check
    _
  $region31: #{_lambda_.46} parent=0 // pred_check_branch
    %291 = sbr.rel (0) target = $region33
  $region32: #{_lambda_.46} parent=0 // pred_region
    _
  $region33: #{_lambda_.46} parent=0 // pred_fallthru
    _

// kernel: _lambda_.48
$region0: #{_lambda_.48}
  #allocation0 [shape = 'u32[]', space=smem, size = 0x4, offset = 0x4, fixed_abs, tag = 'smem constant byte address 0x4 - core index']
  #allocation1 [shape = 'u32[144,128]{1,0:T(1,128)}', space=vmem, size = 0x12000, scoped, tag = 'internal scratch']
  #allocation2 [shape = 'f32[32,128]{1,0:T(8,128)}', space=vmem, size = 0x4000, scoped, tag = 'scratch operand']
  %s0 = inlined_call_operand.vmem [shape: bf16[32,128], index: 0, kind: input, shape index: {}]
  %s1 = inlined_call_operand.vmem [shape: bf16[128,128], index: 1, kind: input, shape index: {}]
  %s2 = inlined_call_operand.vmem [shape: f32[1,128], index: 2, kind: input, shape index: {}]
  %s3 = inlined_call_operand.vmem [shape: f32[1,128], index: 3, kind: input, shape index: {}]
  %s4 = inlined_call_operand.vmem [shape: bf16[32,128], index: 4, kind: input, shape index: {}]
  %s5 = inlined_call_operand.vmem [shape: bf16[32,128], index: 5, kind: output, shape index: {}]
  %s6 = sld [smem:[#allocation0]]
  $region38: #{_lambda_.48} parent=0
    _
  %s8 = ssub.s32 1, %s6
  %s9 = scalar_select 0, %s8, %s6
  // Predicated region
  $region2: #{_lambda_.48} parent=0 // pred_check
    _
  $region3: #{_lambda_.48} parent=0 // pred_check_branch
    %11 = sbr.rel (0) target = $region5
  $region4: #{_lambda_.48} parent=0 // pred_region
    _
  $region5: #{_lambda_.48} parent=0 // pred_fallthru
    _
  // Predicated region
  $region6: #{_lambda_.48} parent=0 // pred_check
    _
  $region7: #{_lambda_.48} parent=0 // pred_check_branch
    %13 = sbr.rel (0) target = $region9
  $region8: #{_lambda_.48} parent=0 // pred_region
    _
  $region9: #{_lambda_.48} parent=0 // pred_fallthru
    _
  // Predicated region
  $region10: #{_lambda_.48} parent=0 // pred_check
    _
  $region11: #{_lambda_.48} parent=0 // pred_check_branch
    %15 = sbr.rel (0) target = $region13
  $region12: #{_lambda_.48} parent=0 // pred_region
    _
  $region13: #{_lambda_.48} parent=0 // pred_fallthru
    _
  // Predicated region
  $region14: #{_lambda_.48} parent=0 // pred_check
    _
  $region15: #{_lambda_.48} parent=0 // pred_check_branch
    %17 = sbr.rel (0) target = $region17
  $region16: #{_lambda_.48} parent=0 // pred_region
    _
  $region17: #{_lambda_.48} parent=0 // pred_fallthru
    _
  // Predicated region
  $region18: #{_lambda_.48} parent=0 // pred_check
    _
  $region19: #{_lambda_.48} parent=0 // pred_check_branch
    %19 = sbr.rel (0) target = $region21
  $region20: #{_lambda_.48} parent=0 // pred_region
    _
  $region21: #{_lambda_.48} parent=0 // pred_fallthru
    _
  %p21 = scmp.eq.s32.totalorder 0, 0
  // Predicated region
  $region22: #{_lambda_.48} parent=0 // pred_check
    %p22 = pneg %p21
  $region23: #{_lambda_.48} parent=0 // pred_check_branch
    %24 = sbr.rel (%p22) target = $region25
  $region24: #{_lambda_.48} parent=0 // pred_region
    %25 = vst [vmem:[#allocation2] sm:$0xff] 0.0
    %26 = vst [vmem:[#allocation2 + $0x8] sm:$0xff] 0.0
    %27 = vst [vmem:[#allocation2 + $0x10] sm:$0xff] 0.0
    %28 = vst [vmem:[#allocation2 + $0x18] sm:$0xff] 0.0
  $region25: #{_lambda_.48} parent=0 // pred_fallthru
    _
  %v29 = vld [vmem:[#allocation2] sm:$0xff]
  %v30 = vld [vmem:[#allocation2 + $0x8] sm:$0xff]
  %v31 = vld [vmem:[#allocation2 + $0x10] sm:$0xff]
  %v32 = vld [vmem:[#allocation2 + $0x18] sm:$0xff]
  %v33 = vld [vmem:[%s0] sm:$0xf]
  %v34 = vld [vmem:[%s0 + $0x4] sm:$0xf]
  %v35 = vld [vmem:[%s0 + $0x8] sm:$0xf]
  %v36 = vld [vmem:[%s0 + $0xc] sm:$0xf]
  %v37 = vld [vmem:[%s1] sm:$0xf]
  %v38 = vld [vmem:[%s1 + $0x4] sm:$0xf]
  %v39 = vld [vmem:[%s1 + $0x8] sm:$0xf]
  %v40 = vld [vmem:[%s1 + $0xc] sm:$0xf]
  %v41 = vld [vmem:[%s1 + $0x10] sm:$0xf]
  %v42 = vld [vmem:[%s1 + $0x14] sm:$0xf]
  %v43 = vld [vmem:[%s1 + $0x18] sm:$0xf]
  %v44 = vld [vmem:[%s1 + $0x1c] sm:$0xf]
  %v45 = vld [vmem:[%s1 + $0x20] sm:$0xf]
  %v46 = vld [vmem:[%s1 + $0x24] sm:$0xf]
  %v47 = vld [vmem:[%s1 + $0x28] sm:$0xf]
  %v48 = vld [vmem:[%s1 + $0x2c] sm:$0xf]
  %v49 = vld [vmem:[%s1 + $0x30] sm:$0xf]
  %v50 = vld [vmem:[%s1 + $0x34] sm:$0xf]
  %v51 = vld [vmem:[%s1 + $0x38] sm:$0xf]
  %v52 = vld [vmem:[%s1 + $0x3c] sm:$0xf]
  %v57 = vunpack.c.l.b16 %v33
  %v58 = vunpack.c.l.b16 %v34
  %v59 = vunpack.c.l.b16 %v35
  %v60 = vunpack.c.l.b16 %v36
  %v61 = vpack.c.b16 %v58, %v57
  %v62 = vpack.c.b16 %v60, %v59
  %v81 = vunpack.c.l.b16 %v37
  %v82 = vunpack.c.l.b16 %v38
  %v83 = vunpack.c.l.b16 %v39
  %v84 = vunpack.c.l.b16 %v40
  %v85 = vunpack.c.l.b16 %v41
  %v86 = vunpack.c.l.b16 %v42
  %v87 = vunpack.c.l.b16 %v43
  %v88 = vunpack.c.l.b16 %v44
  %v89 = vunpack.c.l.b16 %v45
  %v90 = vunpack.c.l.b16 %v46
  %v91 = vunpack.c.l.b16 %v47
  %v92 = vunpack.c.l.b16 %v48
  %v93 = vunpack.c.l.b16 %v49
  %v94 = vunpack.c.l.b16 %v50
  %v95 = vunpack.c.l.b16 %v51
  %v96 = vunpack.c.l.b16 %v52
  %v97 = vpack.c.b16 %v82, %v81
  %v98 = vpack.c.b16 %v84, %v83
  %v99 = vpack.c.b16 %v86, %v85
  %v100 = vpack.c.b16 %v88, %v87
  %v101 = vpack.c.b16 %v90, %v89
  %v102 = vpack.c.b16 %v92, %v91
  %v103 = vpack.c.b16 %v94, %v93
  %v104 = vpack.c.b16 %v96, %v95
  %113 = vmatprep.subr.bf16.mxu0 0
  %114 = vmatpush1.bf16.msra.mxu0 %v97
  %115 = vmatprep.subr.bf16.mxu0 0
  %116 = vmatpush1.bf16.msra.mxu0 %v98
  %117 = vmatprep.subr.bf16.mxu0 0
  %118 = vmatpush1.bf16.msra.mxu0 %v99
  %119 = vmatprep.subr.bf16.mxu0 0
  %120 = vmatpush1.bf16.msra.mxu0 %v100
  %121 = vmatprep.subr.bf16.mxu0 0
  %122 = vmatpush1.bf16.msra.mxu0 %v101
  %123 = vmatprep.subr.bf16.mxu0 0
  %124 = vmatpush1.bf16.msra.mxu0 %v102
  %125 = vmatprep.subr.bf16.mxu0 0
  %126 = vmatpush1.bf16.msra.mxu0 %v103
  %127 = vmatprep.subr.bf16.mxu0 0
  %128 = vmatpush1.bf16.msra.mxu0 %v104
  %129 = vmatprep.subr.bf16.mxu0 0
  %130 = vmatpush1.bf16.msra.mxu0 0
  %131 = vmatprep.subr.bf16.mxu0 0
  %132 = vmatpush1.bf16.msra.mxu0 0
  %133 = vmatprep.subr.bf16.mxu0 0
  %134 = vmatpush1.bf16.msra.mxu0 0
  %135 = vmatprep.subr.bf16.mxu0 0
  %136 = vmatpush1.bf16.msra.mxu0 0
  %137 = vmatprep.subr.bf16.mxu0 0
  %138 = vmatpush1.bf16.msra.mxu0 0
  %139 = vmatprep.subr.bf16.mxu0 0
  %140 = vmatpush1.bf16.msra.mxu0 0
  %141 = vmatprep.subr.bf16.mxu0 0
  %142 = vmatpush1.bf16.msra.mxu0 0
  %143 = vmatprep.subr.bf16.mxu0 0
  %144 = vmatpush1.bf16.msra.mxu0 0
  %145 = vmatprep.mubr.bf16.mxu0 0
  %146 = vmatmul.mubr.bf16.gmra.mrb[0].mxu0 %v61
  %v147 = vpop.f32.mrb[0].mxu0
  %v148 = vadd.f32 0.0, %v147
  %v149 = vpop.f32.mrb[0].mxu0
  %v150 = vpop.f32.mrb[0].mxu0
  %v151 = vadd.f32 0.0, %v150
  %v152 = vpop.f32.mrb[0].mxu0
  %153 = vmatprep.mubr.bf16.mxu0 0
  %154 = vmatmul.mubr.bf16.gmra.mrb[0].mxu0 %v62
  %v155 = vpop.f32.mrb[0].mxu0
  %v156 = vadd.f32 0.0, %v155
  %v157 = vpop.f32.mrb[0].mxu0
  %v158 = vpop.f32.mrb[0].mxu0
  %v159 = vadd.f32 0.0, %v158
  %v160 = vpop.f32.mrb[0].mxu0
  %161 = vdwg.mxu0
  %v162 = vadd.f32 %v29, %v148
  %v163 = vadd.f32 %v30, %v151
  %v164 = vadd.f32 %v31, %v156
  %v165 = vadd.f32 %v32, %v159
  %166 = vst [vmem:[#allocation2] sm:$0xff] %v162
  %167 = vst [vmem:[#allocation2 + $0x8] sm:$0xff] %v163
  %168 = vst [vmem:[#allocation2 + $0x10] sm:$0xff] %v164
  %169 = vst [vmem:[#allocation2 + $0x18] sm:$0xff] %v165
  // Predicated region
  $region26: #{_lambda_.48} parent=0 // pred_check
    %p170 = pneg %p21
  $region27: #{_lambda_.48} parent=0 // pred_check_branch
    %172 = sbr.rel (%p170) target = $region29
  $region28: #{_lambda_.48} parent=0 // pred_region
    %v173 = vld [vmem:[#allocation2] sm:$0xff]
    %v174 = vld [vmem:[#allocation2 + $0x8] sm:$0xff]
    %v175 = vld [vmem:[#allocation2 + $0x10] sm:$0xff]
    %v176 = vld [vmem:[#allocation2 + $0x18] sm:$0xff]
    %v177 = vld [vmem:[%s2] sm:$0x1]
    %v179 = vlaneseq
    %v180 = vshrl.u32 %v179, 7
    %v181 = vsub.s32 0, %v180
    %v182 = vrot.slane %v177, %v181
    %v184 = vmul.f32 %v173, %v182
    %v185 = vmul.f32 %v174, %v182
    %v186 = vmul.f32 %v175, %v182
    %v187 = vmul.f32 %v176, %v182
    %v188 = vld [vmem:[%s3] sm:$0x1]
    %v190 = vlaneseq
    %v191 = vshrl.u32 %v190, 7
    %v192 = vsub.s32 0, %v191
    %v193 = vrot.slane %v188, %v192
    %v195 = vadd.f32 %v184, %v193
    %v196 = vadd.f32 %v185, %v193
    %v197 = vadd.f32 %v186, %v193
    %v198 = vadd.f32 %v187, %v193
    %v199 = vld [vmem:[%s4] sm:$0xf]
    %v200 = vld [vmem:[%s4 + $0x4] sm:$0xf]
    %v201 = vld [vmem:[%s4 + $0x8] sm:$0xf]
    %v202 = vld [vmem:[%s4 + $0xc] sm:$0xf]
    %v203 = vunpack.c.l.bf16 %v199
    %v204 = vunpack.c.l.bf16 %v200
    %v205 = vunpack.c.l.bf16 %v201
    %v206 = vunpack.c.l.bf16 %v202
    %v207 = vadd.f32 %v195, %v203
    %v208 = vadd.f32 %v196, %v204
    %v209 = vadd.f32 %v197, %v205
    %v210 = vadd.f32 %v198, %v206
    %v211 = vmax.f32 %v207, 0.0
    %v212 = vmax.f32 %v208, 0.0
    %v213 = vmax.f32 %v209, 0.0
    %v214 = vmax.f32 %v210, 0.0
    %v215 = vpack.c.bf16 %v212, %v211
    %v216 = vpack.c.bf16 %v214, %v213
    %v219 = vunpack.c.l.b16 %v215
    %v220 = vunpack.c.h.b16 %v215
    %v221 = vunpack.c.l.b16 %v216
    %v222 = vunpack.c.h.b16 %v216
    %v223 = vpack.c.b16 %v219, %v219
    %v224 = vpack.c.b16 %v220, %v220
    %v225 = vpack.c.b16 %v221, %v221
    %v226 = vpack.c.b16 %v222, %v222
    %231 = vst [vmem:[%s5] sm:$0xf] %v223
    %232 = vst [vmem:[%s5 + $0x4] sm:$0xf] %v224
    %233 = vst [vmem:[%s5 + $0x8] sm:$0xf] %v225
    %234 = vst [vmem:[%s5 + $0xc] sm:$0xf] %v226
  $region29: #{_lambda_.48} parent=0 // pred_fallthru
    _
  // Predicated region
  $region30: #{_lambda_.48} parent=0 // pred_check
    _
  $region31: #{_lambda_.48} parent=0 // pred_check_branch
    %236 = sbr.rel (0) target = $region33
  $region32: #{_lambda_.48} parent=0 // pred_region
    _
  $region33: #{_lambda_.48} parent=0 // pred_fallthru
    _
  // Predicated region
  $region34: #{_lambda_.48} parent=0 // pred_check
    _
  $region35: #{_lambda_.48} parent=0 // pred_check_branch
    %238 = sbr.rel (0) target = $region37
  $region36: #{_lambda_.48} parent=0 // pred_region
    _
  $region37: #{_lambda_.48} parent=0 // pred_fallthru
    _

// kernel: _lambda_.47
$region0: #{_lambda_.47}
  #allocation0 [shape = 'u32[]', space=smem, size = 0x4, offset = 0x4, fixed_abs, tag = 'smem constant byte address 0x4 - core index']
  #allocation1 [shape = 'u32[144,128]{1,0:T(1,128)}', space=vmem, size = 0x12000, scoped, tag = 'internal scratch']
  #allocation2 [shape = 'f32[32,128]{1,0:T(8,128)}', space=vmem, size = 0x4000, scoped, tag = 'scratch operand']
  %s0 = inlined_call_operand.vmem [shape: bf16[32,128], index: 0, kind: input, shape index: {}]
  %s1 = inlined_call_operand.vmem [shape: bf16[128,128], index: 1, kind: input, shape index: {}]
  %s2 = inlined_call_operand.vmem [shape: f32[1,128], index: 2, kind: input, shape index: {}]
  %s3 = inlined_call_operand.vmem [shape: f32[1,128], index: 3, kind: input, shape index: {}]
  %s4 = inlined_call_operand.vmem [shape: bf16[32,128], index: 4, kind: output, shape index: {}]
  %s5 = sld [smem:[#allocation0]]
  $region34: #{_lambda_.47} parent=0
    _
  %s7 = ssub.s32 1, %s5
  %s8 = scalar_select 0, %s7, %s5
  // Predicated region
  $region2: #{_lambda_.47} parent=0 // pred_check
    _
  $region3: #{_lambda_.47} parent=0 // pred_check_branch
    %10 = sbr.rel (0) target = $region5
  $region4: #{_lambda_.47} parent=0 // pred_region
    _
  $region5: #{_lambda_.47} parent=0 // pred_fallthru
    _
  // Predicated region
  $region6: #{_lambda_.47} parent=0 // pred_check
    _
  $region7: #{_lambda_.47} parent=0 // pred_check_branch
    %12 = sbr.rel (0) target = $region9
  $region8: #{_lambda_.47} parent=0 // pred_region
    _
  $region9: #{_lambda_.47} parent=0 // pred_fallthru
    _
  // Predicated region
  $region10: #{_lambda_.47} parent=0 // pred_check
    _
  $region11: #{_lambda_.47} parent=0 // pred_check_branch
    %14 = sbr.rel (0) target = $region13
  $region12: #{_lambda_.47} parent=0 // pred_region
    _
  $region13: #{_lambda_.47} parent=0 // pred_fallthru
    _
  // Predicated region
  $region14: #{_lambda_.47} parent=0 // pred_check
    _
  $region15: #{_lambda_.47} parent=0 // pred_check_branch
    %16 = sbr.rel (0) target = $region17
  $region16: #{_lambda_.47} parent=0 // pred_region
    _
  $region17: #{_lambda_.47} parent=0 // pred_fallthru
    _
  %p18 = scmp.eq.s32.totalorder 0, 0
  // Predicated region
  $region18: #{_lambda_.47} parent=0 // pred_check
    %p19 = pneg %p18
  $region19: #{_lambda_.47} parent=0 // pred_check_branch
    %21 = sbr.rel (%p19) target = $region21
  $region20: #{_lambda_.47} parent=0 // pred_region
    %22 = vst [vmem:[#allocation2] sm:$0xff] 0.0
    %23 = vst [vmem:[#allocation2 + $0x8] sm:$0xff] 0.0
    %24 = vst [vmem:[#allocation2 + $0x10] sm:$0xff] 0.0
    %25 = vst [vmem:[#allocation2 + $0x18] sm:$0xff] 0.0
  $region21: #{_lambda_.47} parent=0 // pred_fallthru
    _
  %v26 = vld [vmem:[#allocation2] sm:$0xff]
  %v27 = vld [vmem:[#allocation2 + $0x8] sm:$0xff]
  %v28 = vld [vmem:[#allocation2 + $0x10] sm:$0xff]
  %v29 = vld [vmem:[#allocation2 + $0x18] sm:$0xff]
  %v30 = vld [vmem:[%s0] sm:$0xf]
  %v31 = vld [vmem:[%s0 + $0x4] sm:$0xf]
  %v32 = vld [vmem:[%s0 + $0x8] sm:$0xf]
  %v33 = vld [vmem:[%s0 + $0xc] sm:$0xf]
  %v34 = vld [vmem:[%s1] sm:$0xf]
  %v35 = vld [vmem:[%s1 + $0x4] sm:$0xf]
  %v36 = vld [vmem:[%s1 + $0x8] sm:$0xf]
  %v37 = vld [vmem:[%s1 + $0xc] sm:$0xf]
  %v38 = vld [vmem:[%s1 + $0x10] sm:$0xf]
  %v39 = vld [vmem:[%s1 + $0x14] sm:$0xf]
  %v40 = vld [vmem:[%s1 + $0x18] sm:$0xf]
  %v41 = vld [vmem:[%s1 + $0x1c] sm:$0xf]
  %v42 = vld [vmem:[%s1 + $0x20] sm:$0xf]
  %v43 = vld [vmem:[%s1 + $0x24] sm:$0xf]
  %v44 = vld [vmem:[%s1 + $0x28] sm:$0xf]
  %v45 = vld [vmem:[%s1 + $0x2c] sm:$0xf]
  %v46 = vld [vmem:[%s1 + $0x30] sm:$0xf]
  %v47 = vld [vmem:[%s1 + $0x34] sm:$0xf]
  %v48 = vld [vmem:[%s1 + $0x38] sm:$0xf]
  %v49 = vld [vmem:[%s1 + $0x3c] sm:$0xf]
  %v54 = vunpack.c.l.b16 %v30
  %v55 = vunpack.c.l.b16 %v31
  %v56 = vunpack.c.l.b16 %v32
  %v57 = vunpack.c.l.b16 %v33
  %v58 = vpack.c.b16 %v55, %v54
  %v59 = vpack.c.b16 %v57, %v56
  %v78 = vunpack.c.l.b16 %v34
  %v79 = vunpack.c.l.b16 %v35
  %v80 = vunpack.c.l.b16 %v36
  %v81 = vunpack.c.l.b16 %v37
  %v82 = vunpack.c.l.b16 %v38
  %v83 = vunpack.c.l.b16 %v39
  %v84 = vunpack.c.l.b16 %v40
  %v85 = vunpack.c.l.b16 %v41
  %v86 = vunpack.c.l.b16 %v42
  %v87 = vunpack.c.l.b16 %v43
  %v88 = vunpack.c.l.b16 %v44
  %v89 = vunpack.c.l.b16 %v45
  %v90 = vunpack.c.l.b16 %v46
  %v91 = vunpack.c.l.b16 %v47
  %v92 = vunpack.c.l.b16 %v48
  %v93 = vunpack.c.l.b16 %v49
  %v94 = vpack.c.b16 %v79, %v78
  %v95 = vpack.c.b16 %v81, %v80
  %v96 = vpack.c.b16 %v83, %v82
  %v97 = vpack.c.b16 %v85, %v84
  %v98 = vpack.c.b16 %v87, %v86
  %v99 = vpack.c.b16 %v89, %v88
  %v100 = vpack.c.b16 %v91, %v90
  %v101 = vpack.c.b16 %v93, %v92
  %110 = vmatprep.subr.bf16.mxu0 0
  %111 = vmatpush1.bf16.msra.mxu0 %v94
  %112 = vmatprep.subr.bf16.mxu0 0
  %113 = vmatpush1.bf16.msra.mxu0 %v95
  %114 = vmatprep.subr.bf16.mxu0 0
  %115 = vmatpush1.bf16.msra.mxu0 %v96
  %116 = vmatprep.subr.bf16.mxu0 0
  %117 = vmatpush1.bf16.msra.mxu0 %v97
  %118 = vmatprep.subr.bf16.mxu0 0
  %119 = vmatpush1.bf16.msra.mxu0 %v98
  %120 = vmatprep.subr.bf16.mxu0 0
  %121 = vmatpush1.bf16.msra.mxu0 %v99
  %122 = vmatprep.subr.bf16.mxu0 0
  %123 = vmatpush1.bf16.msra.mxu0 %v100
  %124 = vmatprep.subr.bf16.mxu0 0
  %125 = vmatpush1.bf16.msra.mxu0 %v101
  %126 = vmatprep.subr.bf16.mxu0 0
  %127 = vmatpush1.bf16.msra.mxu0 0
  %128 = vmatprep.subr.bf16.mxu0 0
  %129 = vmatpush1.bf16.msra.mxu0 0
  %130 = vmatprep.subr.bf16.mxu0 0
  %131 = vmatpush1.bf16.msra.mxu0 0
  %132 = vmatprep.subr.bf16.mxu0 0
  %133 = vmatpush1.bf16.msra.mxu0 0
  %134 = vmatprep.subr.bf16.mxu0 0
  %135 = vmatpush1.bf16.msra.mxu0 0
  %136 = vmatprep.subr.bf16.mxu0 0
  %137 = vmatpush1.bf16.msra.mxu0 0
  %138 = vmatprep.subr.bf16.mxu0 0
  %139 = vmatpush1.bf16.msra.mxu0 0
  %140 = vmatprep.subr.bf16.mxu0 0
  %141 = vmatpush1.bf16.msra.mxu0 0
  %142 = vmatprep.mubr.bf16.mxu0 0
  %143 = vmatmul.mubr.bf16.gmra.mrb[0].mxu0 %v58
  %v144 = vpop.f32.mrb[0].mxu0
  %v145 = vadd.f32 0.0, %v144
  %v146 = vpop.f32.mrb[0].mxu0
  %v147 = vpop.f32.mrb[0].mxu0
  %v148 = vadd.f32 0.0, %v147
  %v149 = vpop.f32.mrb[0].mxu0
  %150 = vmatprep.mubr.bf16.mxu0 0
  %151 = vmatmul.mubr.bf16.gmra.mrb[0].mxu0 %v59
  %v152 = vpop.f32.mrb[0].mxu0
  %v153 = vadd.f32 0.0, %v152
  %v154 = vpop.f32.mrb[0].mxu0
  %v155 = vpop.f32.mrb[0].mxu0
  %v156 = vadd.f32 0.0, %v155
  %v157 = vpop.f32.mrb[0].mxu0
  %158 = vdwg.mxu0
  %v159 = vadd.f32 %v26, %v145
  %v160 = vadd.f32 %v27, %v148
  %v161 = vadd.f32 %v28, %v153
  %v162 = vadd.f32 %v29, %v156
  %163 = vst [vmem:[#allocation2] sm:$0xff] %v159
  %164 = vst [vmem:[#allocation2 + $0x8] sm:$0xff] %v160
  %165 = vst [vmem:[#allocation2 + $0x10] sm:$0xff] %v161
  %166 = vst [vmem:[#allocation2 + $0x18] sm:$0xff] %v162
  // Predicated region
  $region22: #{_lambda_.47} parent=0 // pred_check
    %p167 = pneg %p18
  $region23: #{_lambda_.47} parent=0 // pred_check_branch
    %169 = sbr.rel (%p167) target = $region25
  $region24: #{_lambda_.47} parent=0 // pred_region
    %v170 = vld [vmem:[#allocation2] sm:$0xff]
    %v171 = vld [vmem:[#allocation2 + $0x8] sm:$0xff]
    %v172 = vld [vmem:[#allocation2 + $0x10] sm:$0xff]
    %v173 = vld [vmem:[#allocation2 + $0x18] sm:$0xff]
    %v174 = vld [vmem:[%s2] sm:$0x1]
    %v176 = vlaneseq
    %v177 = vshrl.u32 %v176, 7
    %v178 = vsub.s32 0, %v177
    %v179 = vrot.slane %v174, %v178
    %v181 = vmul.f32 %v170, %v179
    %v182 = vmul.f32 %v171, %v179
    %v183 = vmul.f32 %v172, %v179
    %v184 = vmul.f32 %v173, %v179
    %v185 = vld [vmem:[%s3] sm:$0x1]
    %v187 = vlaneseq
    %v188 = vshrl.u32 %v187, 7
    %v189 = vsub.s32 0, %v188
    %v190 = vrot.slane %v185, %v189
    %v192 = vadd.f32 %v181, %v190
    %v193 = vadd.f32 %v182, %v190
    %v194 = vadd.f32 %v183, %v190
    %v195 = vadd.f32 %v184, %v190
    %v196 = vpack.c.bf16 %v193, %v192
    %v197 = vpack.c.bf16 %v195, %v194
    %v200 = vunpack.c.l.b16 %v196
    %v201 = vunpack.c.h.b16 %v196
    %v202 = vunpack.c.l.b16 %v197
    %v203 = vunpack.c.h.b16 %v197
    %v204 = vpack.c.b16 %v200, %v200
    %v205 = vpack.c.b16 %v201, %v201
    %v206 = vpack.c.b16 %v202, %v202
    %v207 = vpack.c.b16 %v203, %v203
    %212 = vst [vmem:[%s4] sm:$0xf] %v204
    %213 = vst [vmem:[%s4 + $0x4] sm:$0xf] %v205
    %214 = vst [vmem:[%s4 + $0x8] sm:$0xf] %v206
    %215 = vst [vmem:[%s4 + $0xc] sm:$0xf] %v207
  $region25: #{_lambda_.47} parent=0 // pred_fallthru
    _
  // Predicated region
  $region26: #{_lambda_.47} parent=0 // pred_check
    _
  $region27: #{_lambda_.47} parent=0 // pred_check_branch
    %217 = sbr.rel (0) target = $region29
  $region28: #{_lambda_.47} parent=0 // pred_region
    _
  $region29: #{_lambda_.47} parent=0 // pred_fallthru
    _
  // Predicated region
  $region30: #{_lambda_.47} parent=0 // pred_check
    _
  $region31: #{_lambda_.47} parent=0 // pred_check_branch
    %219 = sbr.rel (0) target = $region33
  $region32: #{_lambda_.47} parent=0 // pred_region
    _
  $region33: #{_lambda_.47} parent=0 // pred_fallthru
    _

// kernel: _lambda_.56
$region0: #{_lambda_.56}
  #allocation0 [shape = 'u32[]', space=smem, size = 0x4, offset = 0x4, fixed_abs, tag = 'smem constant byte address 0x4 - core index']
  #allocation1 [shape = 'u32[144,128]{1,0:T(1,128)}', space=vmem, size = 0x12000, scoped, tag = 'internal scratch']
  #allocation2 [shape = 'f32[16,128]{1,0:T(8,128)}', space=vmem, size = 0x2000, scoped, tag = 'scratch operand']
  %s0 = inlined_call_operand.vmem [shape: bf16[16,384], index: 0, kind: input, shape index: {}]
  %s1 = inlined_call_operand.vmem [shape: bf16[384,128], index: 1, kind: input, shape index: {}]
  %s2 = inlined_call_operand.vmem [shape: f32[1,128], index: 2, kind: input, shape index: {}]
  %s3 = inlined_call_operand.vmem [shape: f32[1,128], index: 3, kind: input, shape index: {}]
  %s4 = inlined_call_operand.vmem [shape: bf16[16,128], index: 4, kind: output, shape index: {}]
  %s5 = sld [smem:[#allocation0]]
  $region98: #{_lambda_.56} parent=0
    _
  %s7 = ssub.s32 1, %s5
  %s8 = scalar_select 0, %s7, %s5
  $region1: #{_lambda_.56} parent=0
    #allocation3 [shape = 'u8[8192]{0}', space=vmem, size = 0x2000, scoped, tag = 'input window, operand 0']
    loop: start=0, step=1, limit=5
    $region2: #{_lambda_.56} parent=1 // loop_pre_header
      _
    $region3: #{_lambda_.56} parent=1 // loop_header
      %s10 = sphi 0, %s14
      %p11 = scmp.ge.s32.totalorder %s10, 5
      %s17 = sphi 0, %s36
      %s18 = sphi 0, %s32
      %s19 = sphi 0, %s28
      %s20 = sphi 0, %s17
      %s21 = sphi 0, %s18
      %s22 = sphi 0, %s19
      %s23 = sphi 0, %s20
      %s24 = sphi 0, %s21
      %s25 = sphi 0, %s22
      %s41 = sphi 0, %s43
      %s44 = sphi 0, %s41
      %s45 = sphi 0, %s44
      %s61 = sphi 0, %s45
      %s69 = sphi 0, %s71
      %s72 = sphi 0, %s69
      %s73 = sphi 0, %s72
      %s89 = sphi 0, %s73
      %s95 = sphi 0, %s97
      %s98 = sphi 0, %s95
      %s99 = sphi 0, %s98
      %s115 = sphi 0, %s99
      %s121 = sphi 0, %s123
      %s124 = sphi 0, %s121
      %s125 = sphi 0, %s124
      %s141 = sphi 0, %s125
      %s149 = sphi 0, %s151
      %s152 = sphi 0, %s149
      %s153 = sphi 0, %s152
      %s169 = sphi 0, %s153
    $region4: #{_lambda_.56} parent=1 // loop_header_branch
      %13 = sbr.rel (%p11) target = $region8
    $region5: #{_lambda_.56} parent=1 // loop_body
      %s15 = ssub.s32 %s10, 1
      %s16 = ssub.s32 %s10, 2
      %s26 = sadd.s32 1, %s19
      %p27 = scmp.ge.s32.totalorder %s26, 3
      %s28 = scalar_select %p27, 0, %s26
      %s29 = sadd.s32 1, %s18
      %s30 = scalar_select %p27, %s29, %s18
      %p31 = scmp.ge.s32.totalorder %s30, 1
      %s32 = scalar_select %p31, 0, %s30
      %s33 = sadd.s32 1, %s17
      %s34 = scalar_select %p31, %s33, %s17
      %p35 = scmp.ge.s32.totalorder %s34, 1
      %s36 = scalar_select %p35, 0, %s34
      %s37 = ssub.s32 %s17, %s36
      %s38 = ssub.s32 %s19, %s28
      %s39 = sor.u32 %s37, %s38
      %p40 = scmp.eq.s32.totalorder %s39, 0
      %s42 = sadd.s32 %s41, 1
      %s43 = scalar_select %p40, %s41, %s42
      %p46 = pneg %p40
      %p47 = scmp.eq.s32.totalorder %s10, 2
      %p48 = por %p46, %p47
      %p49 = scmp.ne.s32.totalorder %s41, %s44
      %p50 = scmp.eq.s32.totalorder %s10, 0
      %p51 = por %p49, %p50
      %p52 = scmp.ne.s32.totalorder %s41, %s44
      %p53 = scmp.eq.s32.totalorder %s15, 2
      %p54 = por %p52, %p53
      %p55 = scmp.ne.s32.totalorder %s44, %s45
      %p56 = scmp.eq.s32.totalorder %s15, 0
      %p57 = por %p55, %p56
      %p58 = scmp.ne.s32.totalorder %s44, %s45
      %p59 = scmp.eq.s32.totalorder %s16, 2
      %p60 = por %p58, %p59
      %p62 = scmp.ne.s32.totalorder %s45, %s61
      %p63 = scmp.eq.s32.totalorder %s16, 0
      %p64 = por %p62, %p63
      %s65 = ssub.s32 %s19, %s28
      %s66 = ssub.s32 %s18, %s32
      %s67 = sor.u32 %s65, %s66
      %p68 = scmp.eq.s32.totalorder %s67, 0
      %s70 = sadd.s32 %s69, 1
      %s71 = scalar_select %p68, %s69, %s70
      %p74 = pneg %p68
      %p75 = scmp.eq.s32.totalorder %s10, 2
      %p76 = por %p74, %p75
      %p77 = scmp.ne.s32.totalorder %s69, %s72
      %p78 = scmp.eq.s32.totalorder %s10, 0
      %p79 = por %p77, %p78
      %p80 = scmp.ne.s32.totalorder %s69, %s72
      %p81 = scmp.eq.s32.totalorder %s15, 2
      %p82 = por %p80, %p81
      %p83 = scmp.ne.s32.totalorder %s72, %s73
      %p84 = scmp.eq.s32.totalorder %s15, 0
      %p85 = por %p83, %p84
      %p86 = scmp.ne.s32.totalorder %s72, %s73
      %p87 = scmp.eq.s32.totalorder %s16, 2
      %p88 = por %p86, %p87
      %p90 = scmp.ne.s32.totalorder %s73, %s89
      %p91 = scmp.eq.s32.totalorder %s16, 0
      %p92 = por %p90, %p91
      %s93 = ssub.s32 %s18, %s32
      %p94 = scmp.eq.s32.totalorder %s93, 0
      %s96 = sadd.s32 %s95, 1
      %s97 = scalar_select %p94, %s95, %s96
      %p100 = pneg %p94
      %p101 = scmp.eq.s32.totalorder %s10, 2
      %p102 = por %p100, %p101
      %p103 = scmp.ne.s32.totalorder %s95, %s98
      %p104 = scmp.eq.s32.totalorder %s10, 0
      %p105 = por %p103, %p104
      %p106 = scmp.ne.s32.totalorder %s95, %s98
      %p107 = scmp.eq.s32.totalorder %s15, 2
      %p108 = por %p106, %p107
      %p109 = scmp.ne.s32.totalorder %s98, %s99
      %p110 = scmp.eq.s32.totalorder %s15, 0
      %p111 = por %p109, %p110
      %p112 = scmp.ne.s32.totalorder %s98, %s99
      %p113 = scmp.eq.s32.totalorder %s16, 2
      %p114 = por %p112, %p113
      %p116 = scmp.ne.s32.totalorder %s99, %s115
      %p117 = scmp.eq.s32.totalorder %s16, 0
      %p118 = por %p116, %p117
      %s119 = ssub.s32 %s18, %s32
      %p120 = scmp.eq.s32.totalorder %s119, 0
      %s122 = sadd.s32 %s121, 1
      %s123 = scalar_select %p120, %s121, %s122
      %p126 = pneg %p120
      %p127 = scmp.eq.s32.totalorder %s10, 2
      %p128 = por %p126, %p127
      %p129 = scmp.ne.s32.totalorder %s121, %s124
      %p130 = scmp.eq.s32.totalorder %s10, 0
      %p131 = por %p129, %p130
      %p132 = scmp.ne.s32.totalorder %s121, %s124
      %p133 = scmp.eq.s32.totalorder %s15, 2
      %p134 = por %p132, %p133
      %p135 = scmp.ne.s32.totalorder %s124, %s125
      %p136 = scmp.eq.s32.totalorder %s15, 0
      %p137 = por %p135, %p136
      %p138 = scmp.ne.s32.totalorder %s124, %s125
      %p139 = scmp.eq.s32.totalorder %s16, 2
      %p140 = por %p138, %p139
      %p142 = scmp.ne.s32.totalorder %s125, %s141
      %p143 = scmp.eq.s32.totalorder %s16, 0
      %p144 = por %p142, %p143
      %s145 = ssub.s32 %s17, %s36
      %s146 = ssub.s32 %s18, %s32
      %s147 = sor.u32 %s145, %s146
      %p148 = scmp.eq.s32.totalorder %s147, 0
      %s150 = sadd.s32 %s149, 1
      %s151 = scalar_select %p148, %s149, %s150
      %p154 = pneg %p148
      %p155 = scmp.eq.s32.totalorder %s10, 2
      %p156 = por %p154, %p155
      %p157 = scmp.ne.s32.totalorder %s149, %s152
      %p158 = scmp.eq.s32.totalorder %s10, 0
      %p159 = por %p157, %p158
      %p160 = scmp.ne.s32.totalorder %s149, %s152
      %p161 = scmp.eq.s32.totalorder %s15, 2
      %p162 = por %p160, %p161
      %p163 = scmp.ne.s32.totalorder %s152, %s153
      %p164 = scmp.eq.s32.totalorder %s15, 0
      %p165 = por %p163, %p164
      %p166 = scmp.ne.s32.totalorder %s152, %s153
      %p167 = scmp.eq.s32.totalorder %s16, 2
      %p168 = por %p166, %p167
      %p170 = scmp.ne.s32.totalorder %s153, %s169
      %p171 = scmp.eq.s32.totalorder %s16, 0
      %p172 = por %p170, %p171
      %p173 = scmp.le.s32.totalorder 1, %s10
      %p174 = scmp.lt.s32.totalorder %s10, 4
      %p175 = pnand %p173, %p174
      %p176 = pneg %p175
      // Predicated region
      $region9: #{_lambda_.56} parent=5 // pred_check
        _
      $region10: #{_lambda_.56} parent=5 // pred_check_branch
        %178 = sbr.rel (%p175) target = $region12
      $region11: #{_lambda_.56} parent=5 // pred_region
        %s179 = ssub.s32 %s10, 1
        // Predicated region
        $region13: #{_lambda_.56} parent=11 // pred_check
          %p180 = pneg %p111
        $region14: #{_lambda_.56} parent=11 // pred_check_branch
          %182 = sbr.rel (%p180) target = $region16
        $region15: #{_lambda_.56} parent=11 // pred_region
          %p183 = scmp.lt.s32.totalorder %s21, 0
          %s184 = scalar_select %p183, %s21, 0
          %s185 = scalar_lea.vmem %s2, %s184
        $region16: #{_lambda_.56} parent=11 // pred_fallthru
          _
        // Predicated region
        $region17: #{_lambda_.56} parent=11 // pred_check
          %p186 = pneg %p137
        $region18: #{_lambda_.56} parent=11 // pred_check_branch
          %188 = sbr.rel (%p186) target = $region20
        $region19: #{_lambda_.56} parent=11 // pred_region
          %p189 = scmp.lt.s32.totalorder %s21, 0
          %s190 = scalar_select %p189, %s21, 0
          %s191 = scalar_lea.vmem %s3, %s190
        $region20: #{_lambda_.56} parent=11 // pred_fallthru
          _
      $region12: #{_lambda_.56} parent=5 // pred_fallthru
        _
      %p192 = scmp.lt.s32.totalorder %s10, 3
      // Predicated region
      $region21: #{_lambda_.56} parent=5 // pred_check
        %p193 = pneg %p192
      $region22: #{_lambda_.56} parent=5 // pred_check_branch
        %195 = sbr.rel (%p193) target = $region24
      $region23: #{_lambda_.56} parent=5 // pred_region
        // Predicated region
        $region25: #{_lambda_.56} parent=23 // pred_check
          %p196 = pneg %p51
        $region26: #{_lambda_.56} parent=23 // pred_check_branch
          %198 = sbr.rel (%p196) target = $region28
        $region27: #{_lambda_.56} parent=23 // pred_region
          %s199 = sand.u32 %s41, 1
          %s200 = sand.u32 %s41, 1
          %s201 = smul.addr %s200, 8
          %s202 = scalar_lea.vmem [#allocation3], %s201
          %s203 = smul.u32 2, %s17
          %s204 = smul.addr %s203, 3
          %s205 = sadd.s32 %s19, %s204
          %s206 = smul.addr %s205, 4
          %s207 = scalar_lea.vmem %s0, %s206
          // Predicated region
          $region29: #{_lambda_.56} parent=27 // pred_check
            _
          $region30: #{_lambda_.56} parent=27 // pred_check_branch
            %209 = sbr.rel (0) target = $region32
          $region31: #{_lambda_.56} parent=27 // pred_region
            // Predicated region
            $region33: #{_lambda_.56} parent=31 // pred_check
              _
            $region34: #{_lambda_.56} parent=31 // pred_check_branch
              %211 = sbr.rel target = $region36
            $region35: #{_lambda_.56} parent=31 // pred_region
              // Predicated region
              $region48: #{_lambda_.56} parent=35 // pred_check
                _
              $region49: #{_lambda_.56} parent=35 // pred_check_branch
                %228 = sbr.rel (0) target = $region51
              $region50: #{_lambda_.56} parent=35 // pred_region
                loop: start=0, step=1, limit=1
                $region52: #{_lambda_.56} parent=50 // loop_pre_header
                  _
                $region53: #{_lambda_.56} parent=50 // loop_header
                  %s230 = sphi 0, %s234
                  %p231 = scmp.ge.s32.totalorder %s230, 1
                  %s235 = sphi %s207, %s207
                  %s236 = sphi %s202, %s202
                $region54: #{_lambda_.56} parent=50 // loop_header_branch
                  %233 = sbr.rel (%p231) target = $region58
                $region55: #{_lambda_.56} parent=50 // loop_body
                  _
                $region56: #{_lambda_.56} parent=50 // loop_footer
                  %s234 = sadd.s32 1, %s230
                $region57: #{_lambda_.56} parent=50 // loop_footer_branch
                  %229 = sbr.rel target = $region53
                $region58: #{_lambda_.56} parent=50 // loop_exit
                  _
                loop: start=0, step=1, limit=1
                $region59: #{_lambda_.56} parent=50 // loop_pre_header
                  _
                $region60: #{_lambda_.56} parent=50 // loop_header
                  %s239 = sphi 0, %s243
                  %p240 = scmp.ge.s32.totalorder %s239, 1
                  %s244 = sphi %s207, %s207
                  %s245 = sphi %s202, %s202
                $region61: #{_lambda_.56} parent=50 // loop_header_branch
                  %242 = sbr.rel (%p240) target = $region65
                $region62: #{_lambda_.56} parent=50 // loop_body
                  %v246 = vld [vmem:[%s244] sm:$0xf]
                  %247 = vst [vmem:[%s245] sm:$0xf] %v246
                  %v248 = vld [vmem:[%s244 + $0xc] sm:$0xf]
                  %249 = vst [vmem:[%s245 + $0x4] sm:$0xf] %v248
                $region63: #{_lambda_.56} parent=50 // loop_footer
                  %s243 = sadd.s32 1, %s239
                $region64: #{_lambda_.56} parent=50 // loop_footer_branch
                  %238 = sbr.rel target = $region60
                $region65: #{_lambda_.56} parent=50 // loop_exit
                  _
              $region51: #{_lambda_.56} parent=35 // pred_fallthru
                _
            $region36: #{_lambda_.56} parent=31 // pred_fallthru
              _
            // Predicated region
            $region37: #{_lambda_.56} parent=31 // pred_check
              _
            $region38: #{_lambda_.56} parent=31 // pred_check_branch
              %213 = sbr.rel (0) target = $region40
            $region39: #{_lambda_.56} parent=31 // pred_region
              loop: start=0, step=1, limit=1
              $region41: #{_lambda_.56} parent=39 // loop_pre_header
                _
              $region42: #{_lambda_.56} parent=39 // loop_header
                %s216 = sphi 0, %s220
                %p217 = scmp.ge.s32.totalorder %s216, 1
                %s221 = sphi %s207, %s207
                %s222 = sphi %s202, %s202
              $region43: #{_lambda_.56} parent=39 // loop_header_branch
                %219 = sbr.rel (%p217) target = $region47
              $region44: #{_lambda_.56} parent=39 // loop_body
                %v223 = vld [vmem:[%s221] sm:$0xf]
                %224 = vst [vmem:[%s222] sm:$0xf] %v223
                %v225 = vld [vmem:[%s221 + $0xc] sm:$0xf]
                %226 = vst [vmem:[%s222 + $0x4] sm:$0xf] %v225
              $region45: #{_lambda_.56} parent=39 // loop_footer
                %s220 = sadd.s32 1, %s216
              $region46: #{_lambda_.56} parent=39 // loop_footer_branch
                %215 = sbr.rel target = $region42
              $region47: #{_lambda_.56} parent=39 // loop_exit
                _
            $region40: #{_lambda_.56} parent=31 // pred_fallthru
              _
          $region32: #{_lambda_.56} parent=27 // pred_fallthru
            _
          %250 = vnop
        $region28: #{_lambda_.56} parent=23 // pred_fallthru
          _
        // Predicated region
        $region66: #{_lambda_.56} parent=23 // pred_check
          %p251 = pneg %p79
        $region67: #{_lambda_.56} parent=23 // pred_check_branch
          %253 = sbr.rel (%p251) target = $region69
        $region68: #{_lambda_.56} parent=23 // pred_region
          %s254 = smul.u32 16, %s19
          %p255 = scmp.lt.s32.totalorder %s254, 47
          %s256 = scalar_select %p255, %s254, 47
          %p257 = scmp.lt.s32.totalorder %s18, 0
          %s258 = scalar_select %p257, %s18, 0
          %s259 = sadd.s32 %s258, %s256
          %s260 = smul.addr %s259, 4
          %s261 = scalar_lea.vmem %s1, %s260
          %s262 = smul.u32 16, %s19
        $region69: #{_lambda_.56} parent=23 // pred_fallthru
          _
      $region24: #{_lambda_.56} parent=5 // pred_fallthru
        _
      %p263 = scmp.le.s32.totalorder 1, %s10
      %p264 = scmp.lt.s32.totalorder %s10, 4
      %p265 = pnand %p263, %p264
      %p266 = pneg %p265
      // Predicated region
      $region70: #{_lambda_.56} parent=5 // pred_check
        _
      $region71: #{_lambda_.56} parent=5 // pred_check_branch
        %268 = sbr.rel (%p265) target = $region73
      $region72: #{_lambda_.56} parent=5 // pred_region
        %s269 = ssub.s32 %s10, 1
        %s270 = sand.u32 %s44, 1
        %s271 = sand.u32 %s44, 1
        %s272 = smul.addr %s271, 8
        %s273 = scalar_lea.vmem [#allocation3], %s272
        // Predicated region
        $region74: #{_lambda_.56} parent=72 // pred_check
          %p274 = pneg %p57
        $region75: #{_lambda_.56} parent=72 // pred_check_branch
          %276 = sbr.rel (%p274) target = $region77
        $region76: #{_lambda_.56} parent=72 // pred_region
          _
        $region77: #{_lambda_.56} parent=72 // pred_fallthru
          _
        %s277 = sand.u32 %s44, 1
        %s278 = sand.u32 %s44, 1
        %s279 = smul.addr %s278, 8
        %s280 = scalar_lea.vmem [#allocation3], %s279
        %p281 = pneg %p57
        %p282 = pneg %p54
        %s283 = smul.u32 16, %s22
        %p284 = scmp.lt.s32.totalorder %s283, 47
        %s285 = scalar_select %p284, %s283, 47
        %p286 = scmp.lt.s32.totalorder %s21, 0
        %s287 = scalar_select %p286, %s21, 0
        %s288 = sadd.s32 %s287, %s285
        %s289 = smul.addr %s288, 4
        %s290 = scalar_lea.vmem %s1, %s289
        %p291 = pneg %p85
        %p292 = pneg %p82
        %p293 = scmp.lt.s32.totalorder %s21, 0
        %s294 = scalar_select %p293, %s21, 0
        %s295 = scalar_lea.vmem %s2, %s294
        %p296 = pneg %p111
        %p297 = pneg %p108
        %p298 = scmp.lt.s32.totalorder %s21, 0
        %s299 = scalar_select %p298, %s21, 0
        %s300 = scalar_lea.vmem %s3, %s299
        %p301 = pneg %p137
        %p302 = pneg %p134
        %p303 = pneg %p165
        %p304 = pneg %p162
        %s305 = smul.u32 2, %s20
        %p306 = scmp.lt.s32.totalorder %s305, 1
        %s307 = scalar_select %p306, %s305, 1
        %p308 = scmp.lt.s32.totalorder %s21, 0
        %s309 = scalar_select %p308, %s21, 0
        %s310 = sadd.s32 %s309, %s307
        %s311 = smul.addr %s310, 4
        %s312 = scalar_lea.vmem %s4, %s311
        %s313 = smul.u32 2, %s20
        %s314 = smul.u32 16, %s22
        %p315 = scmp.lt.s32.totalorder %s314, 47
        %s316 = scalar_select %p315, %s314, 47
        %p317 = scmp.lt.s32.totalorder %s21, 0
        %s318 = scalar_select %p317, %s21, 0
        %s319 = sadd.s32 %s318, %s316
        %s320 = smul.addr %s319, 4
        %s321 = scalar_lea.vmem %s1, %s320
        %s322 = smul.u32 16, %s22
        %p323 = scmp.lt.s32.totalorder %s21, 0
        %s324 = scalar_select %p323, %s21, 0
        %s325 = scalar_lea.vmem %s2, %s324
        %p326 = scmp.lt.s32.totalorder %s21, 0
        %s327 = scalar_select %p326, %s21, 0
        %s328 = scalar_lea.vmem %s3, %s327
        %s329 = smul.u32 2, %s20
        %p330 = scmp.lt.s32.totalorder %s329, 1
        %s331 = scalar_select %p330, %s329, 1
        %p332 = scmp.lt.s32.totalorder %s21, 0
        %s333 = scalar_select %p332, %s21, 0
        %s334 = sadd.s32 %s333, %s331
        %s335 = smul.addr %s334, 4
        %s336 = scalar_lea.vmem %s4, %s335
        %s337 = smul.u32 2, %s20
        %p339 = scmp.eq.s32.totalorder %s22, 0
        // Predicated region
        $region78: #{_lambda_.56} parent=72 // pred_check
          %p340 = pneg %p339
        $region79: #{_lambda_.56} parent=72 // pred_check_branch
          %342 = sbr.rel (%p340) target = $region81
        $region80: #{_lambda_.56} parent=72 // pred_region
          %343 = vst [vmem:[#allocation2] sm:$0xff] 0.0
          %344 = vst [vmem:[#allocation2 + $0x8] sm:$0xff] 0.0
        $region81: #{_lambda_.56} parent=72 // pred_fallthru
          _
        %v345 = vld [vmem:[#allocation2] sm:$0xff]
        %v346 = vld [vmem:[#allocation2 + $0x8] sm:$0xff]
        %v347 = vld [vmem:[%s273] sm:$0xf]
        %v348 = vld [vmem:[%s273 + $0x4] sm:$0xf]
        %v349 = vld [vmem:[%s321] sm:$0xf]
        %v350 = vld [vmem:[%s321 + $0x4] sm:$0xf]
        %v351 = vld [vmem:[%s321 + $0x8] sm:$0xf]
        %v352 = vld [vmem:[%s321 + $0xc] sm:$0xf]
        %v353 = vld [vmem:[%s321 + $0x10] sm:$0xf]
        %v354 = vld [vmem:[%s321 + $0x14] sm:$0xf]
        %v355 = vld [vmem:[%s321 + $0x18] sm:$0xf]
        %v356 = vld [vmem:[%s321 + $0x1c] sm:$0xf]
        %v357 = vld [vmem:[%s321 + $0x20] sm:$0xf]
        %v358 = vld [vmem:[%s321 + $0x24] sm:$0xf]
        %v359 = vld [vmem:[%s321 + $0x28] sm:$0xf]
        %v360 = vld [vmem:[%s321 + $0x2c] sm:$0xf]
        %v361 = vld [vmem:[%s321 + $0x30] sm:$0xf]
        %v362 = vld [vmem:[%s321 + $0x34] sm:$0xf]
        %v363 = vld [vmem:[%s321 + $0x38] sm:$0xf]
        %v364 = vld [vmem:[%s321 + $0x3c] sm:$0xf]
        %v367 = vunpack.c.l.b16 %v347
        %v368 = vunpack.c.l.b16 %v348
        %v369 = vpack.c.b16 %v368, %v367
        %v387 = vunpack.c.l.b16 %v349
        %v388 = vunpack.c.l.b16 %v350
        %v389 = vunpack.c.l.b16 %v351
        %v390 = vunpack.c.l.b16 %v352
        %v391 = vunpack.c.l.b16 %v353
        %v392 = vunpack.c.l.b16 %v354
        %v393 = vunpack.c.l.b16 %v355
        %v394 = vunpack.c.l.b16 %v356
        %v395 = vunpack.c.l.b16 %v357
        %v396 = vunpack.c.l.b16 %v358
        %v397 = vunpack.c.l.b16 %v359
        %v398 = vunpack.c.l.b16 %v360
        %v399 = vunpack.c.l.b16 %v361
        %v400 = vunpack.c.l.b16 %v362
        %v401 = vunpack.c.l.b16 %v363
        %v402 = vunpack.c.l.b16 %v364
        %v403 = vpack.c.b16 %v388, %v387
        %v404 = vpack.c.b16 %v390, %v389
        %v405 = vpack.c.b16 %v392, %v391
        %v406 = vpack.c.b16 %v394, %v393
        %v407 = vpack.c.b16 %v396, %v395
        %v408 = vpack.c.b16 %v398, %v397
        %v409 = vpack.c.b16 %v400, %v399
        %v410 = vpack.c.b16 %v402, %v401
        %419 = vmatprep.subr.bf16.mxu0 0
        %420 = vmatpush1.bf16.msra.mxu0 %v403
        %421 = vmatprep.subr.bf16.mxu0 0
        %422 = vmatpush1.bf16.msra.mxu0 %v404
        %423 = vmatprep.subr.bf16.mxu0 0
        %424 = vmatpush1.bf16.msra.mxu0 %v405
        %425 = vmatprep.subr.bf16.mxu0 0
        %426 = vmatpush1.bf16.msra.mxu0 %v406
        %427 = vmatprep.subr.bf16.mxu0 0
        %428 = vmatpush1.bf16.msra.mxu0 %v407
        %429 = vmatprep.subr.bf16.mxu0 0
        %430 = vmatpush1.bf16.msra.mxu0 %v408
        %431 = vmatprep.subr.bf16.mxu0 0
        %432 = vmatpush1.bf16.msra.mxu0 %v409
        %433 = vmatprep.subr.bf16.mxu0 0
        %434 = vmatpush1.bf16.msra.mxu0 %v410
        %435 = vmatprep.subr.bf16.mxu0 0
        %436 = vmatpush1.bf16.msra.mxu0 0
        %437 = vmatprep.subr.bf16.mxu0 0
        %438 = vmatpush1.bf16.msra.mxu0 0
        %439 = vmatprep.subr.bf16.mxu0 0
        %440 = vmatpush1.bf16.msra.mxu0 0
        %441 = vmatprep.subr.bf16.mxu0 0
        %442 = vmatpush1.bf16.msra.mxu0 0
        %443 = vmatprep.subr.bf16.mxu0 0
        %444 = vmatpush1.bf16.msra.mxu0 0
        %445 = vmatprep.subr.bf16.mxu0 0
        %446 = vmatpush1.bf16.msra.mxu0 0
        %447 = vmatprep.subr.bf16.mxu0 0
        %448 = vmatpush1.bf16.msra.mxu0 0
        %449 = vmatprep.subr.bf16.mxu0 0
        %450 = vmatpush1.bf16.msra.mxu0 0
        %451 = vmatprep.mubr.bf16.mxu0 0
        %452 = vmatmul.mubr.bf16.gmra.mrb[0].mxu0 %v369
        %v453 = vpop.f32.mrb[0].mxu0
        %v454 = vadd.f32 0.0, %v453
        %v455 = vpop.f32.mrb[0].mxu0
        %v456 = vpop.f32.mrb[0].mxu0
        %v457 = vadd.f32 0.0, %v456
        %v458 = vpop.f32.mrb[0].mxu0
        %459 = vdwg.mxu0
        %v460 = vadd.f32 %v345, %v454
        %v461 = vadd.f32 %v346, %v457
        %462 = vst [vmem:[#allocation2] sm:$0xff] %v460
        %463 = vst [vmem:[#allocation2 + $0x8] sm:$0xff] %v461
        %p464 = scmp.eq.s32.totalorder %s22, 2
        // Predicated region
        $region82: #{_lambda_.56} parent=72 // pred_check
          %p465 = pneg %p464
        $region83: #{_lambda_.56} parent=72 // pred_check_branch
          %467 = sbr.rel (%p465) target = $region85
        $region84: #{_lambda_.56} parent=72 // pred_region
          %v468 = vld [vmem:[#allocation2] sm:$0xff]
          %v469 = vld [vmem:[#allocation2 + $0x8] sm:$0xff]
          %v470 = vld [vmem:[%s325] sm:$0x1]
          %v472 = vlaneseq
          %v473 = vshrl.u32 %v472, 7
          %v474 = vsub.s32 0, %v473
          %v475 = vrot.slane %v470, %v474
          %v477 = vmul.f32 %v468, %v475
          %v478 = vmul.f32 %v469, %v475
          %v479 = vld [vmem:[%s328] sm:$0x1]
          %v481 = vlaneseq
          %v482 = vshrl.u32 %v481, 7
          %v483 = vsub.s32 0, %v482
          %v484 = vrot.slane %v479, %v483
          %v486 = vadd.f32 %v477, %v484
          %v487 = vadd.f32 %v478, %v484
          %v488 = vpack.c.bf16 %v487, %v486
          %v490 = vunpack.c.l.b16 %v488
          %v491 = vunpack.c.h.b16 %v488
          %v492 = vpack.c.b16 %v490, %v490
          %v493 = vpack.c.b16 %v491, %v491
          %496 = vst [vmem:[%s336] sm:$0xf] %v492
          %497 = vst [vmem:[%s336 + $0x4] sm:$0xf] %v493
        $region85: #{_lambda_.56} parent=72 // pred_fallthru
          _
        %s498 = smul.u32 2, %s20
        %p499 = scmp.lt.s32.totalorder %s498, 1
        %s500 = scalar_select %p499, %s498, 1
        %p501 = scmp.lt.s32.totalorder %s21, 0
        %s502 = scalar_select %p501, %s21, 0
        %s503 = sadd.s32 %s502, %s500
        %s504 = smul.addr %s503, 4
        %s505 = scalar_lea.vmem %s4, %s504
        // Predicated region
        $region86: #{_lambda_.56} parent=72 // pred_check
          %p506 = pneg %p162
        $region87: #{_lambda_.56} parent=72 // pred_check_branch
          %508 = sbr.rel (%p506) target = $region89
        $region88: #{_lambda_.56} parent=72 // pred_region
          %s509 = smul.u32 2, %s20
        $region89: #{_lambda_.56} parent=72 // pred_fallthru
          _
        // Predicated region
        $region90: #{_lambda_.56} parent=72 // pred_check
          %p510 = pneg %p162
        $region91: #{_lambda_.56} parent=72 // pred_check_branch
          %512 = sbr.rel (%p510) target = $region93
        $region92: #{_lambda_.56} parent=72 // pred_region
          %s513 = smul.u32 2, %s20
          %p514 = scmp.lt.s32.totalorder %s513, 1
          %s515 = scalar_select %p514, %s513, 1
          %p516 = scmp.lt.s32.totalorder %s21, 0
          %s517 = scalar_select %p516, %s21, 0
          %s518 = sadd.s32 %s517, %s515
          %s519 = smul.addr %s518, 4
          %s520 = scalar_lea.vmem %s4, %s519
        $region93: #{_lambda_.56} parent=72 // pred_fallthru
          _
      $region73: #{_lambda_.56} parent=5 // pred_fallthru
        _
      %p521 = scmp.le.s32.totalorder 2, %s10
      // Predicated region
      $region94: #{_lambda_.56} parent=5 // pred_check
        %p522 = pneg %p521
      $region95: #{_lambda_.56} parent=5 // pred_check_branch
        %524 = sbr.rel (%p522) target = $region97
      $region96: #{_lambda_.56} parent=5 // pred_region
        %s525 = ssub.s32 %s10, 2
      $region97: #{_lambda_.56} parent=5 // pred_fallthru
        _
    $region6: #{_lambda_.56} parent=1 // loop_footer
      %s14 = sadd.s32 1, %s10
    $region7: #{_lambda_.56} parent=1 // loop_footer_branch
      %9 = sbr.rel target = $region3
    $region8: #{_lambda_.56} parent=1 // loop_exit
      _

// kernel: _lambda_.57
$region0: #{_lambda_.57}
  #allocation0 [shape = 'u32[]', space=smem, size = 0x4, offset = 0x4, fixed_abs, tag = 'smem constant byte address 0x4 - core index']
  #allocation1 [shape = 'u32[144,128]{1,0:T(1,128)}', space=vmem, size = 0x12000, scoped, tag = 'internal scratch']
  #allocation2 [shape = 'f32[16,128]{1,0:T(8,128)}', space=vmem, size = 0x2000, scoped, tag = 'scratch operand']
  %s0 = inlined_call_operand.vmem [shape: bf16[16,128], index: 0, kind: input, shape index: {}]
  %s1 = inlined_call_operand.vmem [shape: bf16[128,128], index: 1, kind: input, shape index: {}]
  %s2 = inlined_call_operand.vmem [shape: f32[1,128], index: 2, kind: input, shape index: {}]
  %s3 = inlined_call_operand.vmem [shape: f32[1,128], index: 3, kind: input, shape index: {}]
  %s4 = inlined_call_operand.vmem [shape: bf16[16,128], index: 4, kind: output, shape index: {}]
  %s5 = sld [smem:[#allocation0]]
  $region34: #{_lambda_.57} parent=0
    _
  %s7 = ssub.s32 1, %s5
  %s8 = scalar_select 0, %s7, %s5
  // Predicated region
  $region2: #{_lambda_.57} parent=0 // pred_check
    _
  $region3: #{_lambda_.57} parent=0 // pred_check_branch
    %10 = sbr.rel (0) target = $region5
  $region4: #{_lambda_.57} parent=0 // pred_region
    _
  $region5: #{_lambda_.57} parent=0 // pred_fallthru
    _
  // Predicated region
  $region6: #{_lambda_.57} parent=0 // pred_check
    _
  $region7: #{_lambda_.57} parent=0 // pred_check_branch
    %12 = sbr.rel (0) target = $region9
  $region8: #{_lambda_.57} parent=0 // pred_region
    _
  $region9: #{_lambda_.57} parent=0 // pred_fallthru
    _
  // Predicated region
  $region10: #{_lambda_.57} parent=0 // pred_check
    _
  $region11: #{_lambda_.57} parent=0 // pred_check_branch
    %14 = sbr.rel (0) target = $region13
  $region12: #{_lambda_.57} parent=0 // pred_region
    _
  $region13: #{_lambda_.57} parent=0 // pred_fallthru
    _
  // Predicated region
  $region14: #{_lambda_.57} parent=0 // pred_check
    _
  $region15: #{_lambda_.57} parent=0 // pred_check_branch
    %16 = sbr.rel (0) target = $region17
  $region16: #{_lambda_.57} parent=0 // pred_region
    _
  $region17: #{_lambda_.57} parent=0 // pred_fallthru
    _
  %p18 = scmp.eq.s32.totalorder 0, 0
  // Predicated region
  $region18: #{_lambda_.57} parent=0 // pred_check
    %p19 = pneg %p18
  $region19: #{_lambda_.57} parent=0 // pred_check_branch
    %21 = sbr.rel (%p19) target = $region21
  $region20: #{_lambda_.57} parent=0 // pred_region
    %22 = vst [vmem:[#allocation2] sm:$0xff] 0.0
    %23 = vst [vmem:[#allocation2 + $0x8] sm:$0xff] 0.0
  $region21: #{_lambda_.57} parent=0 // pred_fallthru
    _
  %v24 = vld [vmem:[#allocation2] sm:$0xff]
  %v25 = vld [vmem:[#allocation2 + $0x8] sm:$0xff]
  %v26 = vld [vmem:[%s0] sm:$0xf]
  %v27 = vld [vmem:[%s0 + $0x4] sm:$0xf]
  %v28 = vld [vmem:[%s1] sm:$0xf]
  %v29 = vld [vmem:[%s1 + $0x4] sm:$0xf]
  %v30 = vld [vmem:[%s1 + $0x8] sm:$0xf]
  %v31 = vld [vmem:[%s1 + $0xc] sm:$0xf]
  %v32 = vld [vmem:[%s1 + $0x10] sm:$0xf]
  %v33 = vld [vmem:[%s1 + $0x14] sm:$0xf]
  %v34 = vld [vmem:[%s1 + $0x18] sm:$0xf]
  %v35 = vld [vmem:[%s1 + $0x1c] sm:$0xf]
  %v36 = vld [vmem:[%s1 + $0x20] sm:$0xf]
  %v37 = vld [vmem:[%s1 + $0x24] sm:$0xf]
  %v38 = vld [vmem:[%s1 + $0x28] sm:$0xf]
  %v39 = vld [vmem:[%s1 + $0x2c] sm:$0xf]
  %v40 = vld [vmem:[%s1 + $0x30] sm:$0xf]
  %v41 = vld [vmem:[%s1 + $0x34] sm:$0xf]
  %v42 = vld [vmem:[%s1 + $0x38] sm:$0xf]
  %v43 = vld [vmem:[%s1 + $0x3c] sm:$0xf]
  %v46 = vunpack.c.l.b16 %v26
  %v47 = vunpack.c.l.b16 %v27
  %v48 = vpack.c.b16 %v47, %v46
  %v66 = vunpack.c.l.b16 %v28
  %v67 = vunpack.c.l.b16 %v29
  %v68 = vunpack.c.l.b16 %v30
  %v69 = vunpack.c.l.b16 %v31
  %v70 = vunpack.c.l.b16 %v32
  %v71 = vunpack.c.l.b16 %v33
  %v72 = vunpack.c.l.b16 %v34
  %v73 = vunpack.c.l.b16 %v35
  %v74 = vunpack.c.l.b16 %v36
  %v75 = vunpack.c.l.b16 %v37
  %v76 = vunpack.c.l.b16 %v38
  %v77 = vunpack.c.l.b16 %v39
  %v78 = vunpack.c.l.b16 %v40
  %v79 = vunpack.c.l.b16 %v41
  %v80 = vunpack.c.l.b16 %v42
  %v81 = vunpack.c.l.b16 %v43
  %v82 = vpack.c.b16 %v67, %v66
  %v83 = vpack.c.b16 %v69, %v68
  %v84 = vpack.c.b16 %v71, %v70
  %v85 = vpack.c.b16 %v73, %v72
  %v86 = vpack.c.b16 %v75, %v74
  %v87 = vpack.c.b16 %v77, %v76
  %v88 = vpack.c.b16 %v79, %v78
  %v89 = vpack.c.b16 %v81, %v80
  %98 = vmatprep.subr.bf16.mxu0 0
  %99 = vmatpush1.bf16.msra.mxu0 %v82
  %100 = vmatprep.subr.bf16.mxu0 0
  %101 = vmatpush1.bf16.msra.mxu0 %v83
  %102 = vmatprep.subr.bf16.mxu0 0
  %103 = vmatpush1.bf16.msra.mxu0 %v84
  %104 = vmatprep.subr.bf16.mxu0 0
  %105 = vmatpush1.bf16.msra.mxu0 %v85
  %106 = vmatprep.subr.bf16.mxu0 0
  %107 = vmatpush1.bf16.msra.mxu0 %v86
  %108 = vmatprep.subr.bf16.mxu0 0
  %109 = vmatpush1.bf16.msra.mxu0 %v87
  %110 = vmatprep.subr.bf16.mxu0 0
  %111 = vmatpush1.bf16.msra.mxu0 %v88
  %112 = vmatprep.subr.bf16.mxu0 0
  %113 = vmatpush1.bf16.msra.mxu0 %v89
  %114 = vmatprep.subr.bf16.mxu0 0
  %115 = vmatpush1.bf16.msra.mxu0 0
  %116 = vmatprep.subr.bf16.mxu0 0
  %117 = vmatpush1.bf16.msra.mxu0 0
  %118 = vmatprep.subr.bf16.mxu0 0
  %119 = vmatpush1.bf16.msra.mxu0 0
  %120 = vmatprep.subr.bf16.mxu0 0
  %121 = vmatpush1.bf16.msra.mxu0 0
  %122 = vmatprep.subr.bf16.mxu0 0
  %123 = vmatpush1.bf16.msra.mxu0 0
  %124 = vmatprep.subr.bf16.mxu0 0
  %125 = vmatpush1.bf16.msra.mxu0 0
  %126 = vmatprep.subr.bf16.mxu0 0
  %127 = vmatpush1.bf16.msra.mxu0 0
  %128 = vmatprep.subr.bf16.mxu0 0
  %129 = vmatpush1.bf16.msra.mxu0 0
  %130 = vmatprep.mubr.bf16.mxu0 0
  %131 = vmatmul.mubr.bf16.gmra.mrb[0].mxu0 %v48
  %v132 = vpop.f32.mrb[0].mxu0
  %v133 = vadd.f32 0.0, %v132
  %v134 = vpop.f32.mrb[0].mxu0
  %v135 = vpop.f32.mrb[0].mxu0
  %v136 = vadd.f32 0.0, %v135
  %v137 = vpop.f32.mrb[0].mxu0
  %138 = vdwg.mxu0
  %v139 = vadd.f32 %v24, %v133
  %v140 = vadd.f32 %v25, %v136
  %141 = vst [vmem:[#allocation2] sm:$0xff] %v139
  %142 = vst [vmem:[#allocation2 + $0x8] sm:$0xff] %v140
  // Predicated region
  $region22: #{_lambda_.57} parent=0 // pred_check
    %p143 = pneg %p18
  $region23: #{_lambda_.57} parent=0 // pred_check_branch
    %145 = sbr.rel (%p143) target = $region25
  $region24: #{_lambda_.57} parent=0 // pred_region
    %v146 = vld [vmem:[#allocation2] sm:$0xff]
    %v147 = vld [vmem:[#allocation2 + $0x8] sm:$0xff]
    %v148 = vld [vmem:[%s2] sm:$0x1]
    %v150 = vlaneseq
    %v151 = vshrl.u32 %v150, 7
    %v152 = vsub.s32 0, %v151
    %v153 = vrot.slane %v148, %v152
    %v155 = vmul.f32 %v146, %v153
    %v156 = vmul.f32 %v147, %v153
    %v157 = vld [vmem:[%s3] sm:$0x1]
    %v159 = vlaneseq
    %v160 = vshrl.u32 %v159, 7
    %v161 = vsub.s32 0, %v160
    %v162 = vrot.slane %v157, %v161
    %v164 = vadd.f32 %v155, %v162
    %v165 = vadd.f32 %v156, %v162
    %v166 = vpack.c.bf16 %v165, %v164
    %v168 = vunpack.c.l.b16 %v166
    %v169 = vunpack.c.h.b16 %v166
    %v170 = vpack.c.b16 %v168, %v168
    %v171 = vpack.c.b16 %v169, %v169
    %174 = vst [vmem:[%s4] sm:$0xf] %v170
    %175 = vst [vmem:[%s4 + $0x4] sm:$0xf] %v171
  $region25: #{_lambda_.57} parent=0 // pred_fallthru
    _
  // Predicated region
  $region26: #{_lambda_.57} parent=0 // pred_check
    _
  $region27: #{_lambda_.57} parent=0 // pred_check_branch
    %177 = sbr.rel (0) target = $region29
  $region28: #{_lambda_.57} parent=0 // pred_region
    _
  $region29: #{_lambda_.57} parent=0 // pred_fallthru
    _
  // Predicated region
  $region30: #{_lambda_.57} parent=0 // pred_check
    _
  $region31: #{_lambda_.57} parent=0 // pred_check_branch
    %179 = sbr.rel (0) target = $region33
  $region32: #{_lambda_.57} parent=0 // pred_region
    _
  $region33: #{_lambda_.57} parent=0 // pred_fallthru
    _

// kernel: _lambda_.58
$region0: #{_lambda_.58}
  #allocation0 [shape = 'u32[]', space=smem, size = 0x4, offset = 0x4, fixed_abs, tag = 'smem constant byte address 0x4 - core index']
  #allocation1 [shape = 'u32[144,128]{1,0:T(1,128)}', space=vmem, size = 0x12000, scoped, tag = 'internal scratch']
  #allocation2 [shape = 'f32[16,128]{1,0:T(8,128)}', space=vmem, size = 0x2000, scoped, tag = 'scratch operand']
  %s0 = inlined_call_operand.vmem [shape: bf16[16,128], index: 0, kind: input, shape index: {}]
  %s1 = inlined_call_operand.vmem [shape: bf16[128,128], index: 1, kind: input, shape index: {}]
  %s2 = inlined_call_operand.vmem [shape: f32[1,128], index: 2, kind: input, shape index: {}]
  %s3 = inlined_call_operand.vmem [shape: f32[1,128], index: 3, kind: input, shape index: {}]
  %s4 = inlined_call_operand.vmem [shape: bf16[16,128], index: 4, kind: input, shape index: {}]
  %s5 = inlined_call_operand.vmem [shape: bf16[16,128], index: 5, kind: output, shape index: {}]
  %s6 = sld [smem:[#allocation0]]
  $region38: #{_lambda_.58} parent=0
    _
  %s8 = ssub.s32 1, %s6
  %s9 = scalar_select 0, %s8, %s6
  // Predicated region
  $region2: #{_lambda_.58} parent=0 // pred_check
    _
  $region3: #{_lambda_.58} parent=0 // pred_check_branch
    %11 = sbr.rel (0) target = $region5
  $region4: #{_lambda_.58} parent=0 // pred_region
    _
  $region5: #{_lambda_.58} parent=0 // pred_fallthru
    _
  // Predicated region
  $region6: #{_lambda_.58} parent=0 // pred_check
    _
  $region7: #{_lambda_.58} parent=0 // pred_check_branch
    %13 = sbr.rel (0) target = $region9
  $region8: #{_lambda_.58} parent=0 // pred_region
    _
  $region9: #{_lambda_.58} parent=0 // pred_fallthru
    _
  // Predicated region
  $region10: #{_lambda_.58} parent=0 // pred_check
    _
  $region11: #{_lambda_.58} parent=0 // pred_check_branch
    %15 = sbr.rel (0) target = $region13
  $region12: #{_lambda_.58} parent=0 // pred_region
    _
  $region13: #{_lambda_.58} parent=0 // pred_fallthru
    _
  // Predicated region
  $region14: #{_lambda_.58} parent=0 // pred_check
    _
  $region15: #{_lambda_.58} parent=0 // pred_check_branch
    %17 = sbr.rel (0) target = $region17
  $region16: #{_lambda_.58} parent=0 // pred_region
    _
  $region17: #{_lambda_.58} parent=0 // pred_fallthru
    _
  // Predicated region
  $region18: #{_lambda_.58} parent=0 // pred_check
    _
  $region19: #{_lambda_.58} parent=0 // pred_check_branch
    %19 = sbr.rel (0) target = $region21
  $region20: #{_lambda_.58} parent=0 // pred_region
    _
  $region21: #{_lambda_.58} parent=0 // pred_fallthru
    _
  %p21 = scmp.eq.s32.totalorder 0, 0
  // Predicated region
  $region22: #{_lambda_.58} parent=0 // pred_check
    %p22 = pneg %p21
  $region23: #{_lambda_.58} parent=0 // pred_check_branch
    %24 = sbr.rel (%p22) target = $region25
  $region24: #{_lambda_.58} parent=0 // pred_region
    %25 = vst [vmem:[#allocation2] sm:$0xff] 0.0
    %26 = vst [vmem:[#allocation2 + $0x8] sm:$0xff] 0.0
  $region25: #{_lambda_.58} parent=0 // pred_fallthru
    _
  %v27 = vld [vmem:[#allocation2] sm:$0xff]
  %v28 = vld [vmem:[#allocation2 + $0x8] sm:$0xff]
  %v29 = vld [vmem:[%s0] sm:$0xf]
  %v30 = vld [vmem:[%s0 + $0x4] sm:$0xf]
  %v31 = vld [vmem:[%s1] sm:$0xf]
  %v32 = vld [vmem:[%s1 + $0x4] sm:$0xf]
  %v33 = vld [vmem:[%s1 + $0x8] sm:$0xf]
  %v34 = vld [vmem:[%s1 + $0xc] sm:$0xf]
  %v35 = vld [vmem:[%s1 + $0x10] sm:$0xf]
  %v36 = vld [vmem:[%s1 + $0x14] sm:$0xf]
  %v37 = vld [vmem:[%s1 + $0x18] sm:$0xf]
  %v38 = vld [vmem:[%s1 + $0x1c] sm:$0xf]
  %v39 = vld [vmem:[%s1 + $0x20] sm:$0xf]
  %v40 = vld [vmem:[%s1 + $0x24] sm:$0xf]
  %v41 = vld [vmem:[%s1 + $0x28] sm:$0xf]
  %v42 = vld [vmem:[%s1 + $0x2c] sm:$0xf]
  %v43 = vld [vmem:[%s1 + $0x30] sm:$0xf]
  %v44 = vld [vmem:[%s1 + $0x34] sm:$0xf]
  %v45 = vld [vmem:[%s1 + $0x38] sm:$0xf]
  %v46 = vld [vmem:[%s1 + $0x3c] sm:$0xf]
  %v49 = vunpack.c.l.b16 %v29
  %v50 = vunpack.c.l.b16 %v30
  %v51 = vpack.c.b16 %v50, %v49
  %v69 = vunpack.c.l.b16 %v31
  %v70 = vunpack.c.l.b16 %v32
  %v71 = vunpack.c.l.b16 %v33
  %v72 = vunpack.c.l.b16 %v34
  %v73 = vunpack.c.l.b16 %v35
  %v74 = vunpack.c.l.b16 %v36
  %v75 = vunpack.c.l.b16 %v37
  %v76 = vunpack.c.l.b16 %v38
  %v77 = vunpack.c.l.b16 %v39
  %v78 = vunpack.c.l.b16 %v40
  %v79 = vunpack.c.l.b16 %v41
  %v80 = vunpack.c.l.b16 %v42
  %v81 = vunpack.c.l.b16 %v43
  %v82 = vunpack.c.l.b16 %v44
  %v83 = vunpack.c.l.b16 %v45
  %v84 = vunpack.c.l.b16 %v46
  %v85 = vpack.c.b16 %v70, %v69
  %v86 = vpack.c.b16 %v72, %v71
  %v87 = vpack.c.b16 %v74, %v73
  %v88 = vpack.c.b16 %v76, %v75
  %v89 = vpack.c.b16 %v78, %v77
  %v90 = vpack.c.b16 %v80, %v79
  %v91 = vpack.c.b16 %v82, %v81
  %v92 = vpack.c.b16 %v84, %v83
  %101 = vmatprep.subr.bf16.mxu0 0
  %102 = vmatpush1.bf16.msra.mxu0 %v85
  %103 = vmatprep.subr.bf16.mxu0 0
  %104 = vmatpush1.bf16.msra.mxu0 %v86
  %105 = vmatprep.subr.bf16.mxu0 0
  %106 = vmatpush1.bf16.msra.mxu0 %v87
  %107 = vmatprep.subr.bf16.mxu0 0
  %108 = vmatpush1.bf16.msra.mxu0 %v88
  %109 = vmatprep.subr.bf16.mxu0 0
  %110 = vmatpush1.bf16.msra.mxu0 %v89
  %111 = vmatprep.subr.bf16.mxu0 0
  %112 = vmatpush1.bf16.msra.mxu0 %v90
  %113 = vmatprep.subr.bf16.mxu0 0
  %114 = vmatpush1.bf16.msra.mxu0 %v91
  %115 = vmatprep.subr.bf16.mxu0 0
  %116 = vmatpush1.bf16.msra.mxu0 %v92
  %117 = vmatprep.subr.bf16.mxu0 0
  %118 = vmatpush1.bf16.msra.mxu0 0
  %119 = vmatprep.subr.bf16.mxu0 0
  %120 = vmatpush1.bf16.msra.mxu0 0
  %121 = vmatprep.subr.bf16.mxu0 0
  %122 = vmatpush1.bf16.msra.mxu0 0
  %123 = vmatprep.subr.bf16.mxu0 0
  %124 = vmatpush1.bf16.msra.mxu0 0
  %125 = vmatprep.subr.bf16.mxu0 0
  %126 = vmatpush1.bf16.msra.mxu0 0
  %127 = vmatprep.subr.bf16.mxu0 0
  %128 = vmatpush1.bf16.msra.mxu0 0
  %129 = vmatprep.subr.bf16.mxu0 0
  %130 = vmatpush1.bf16.msra.mxu0 0
  %131 = vmatprep.subr.bf16.mxu0 0
  %132 = vmatpush1.bf16.msra.mxu0 0
  %133 = vmatprep.mubr.bf16.mxu0 0
  %134 = vmatmul.mubr.bf16.gmra.mrb[0].mxu0 %v51
  %v135 = vpop.f32.mrb[0].mxu0
  %v136 = vadd.f32 0.0, %v135
  %v137 = vpop.f32.mrb[0].mxu0
  %v138 = vpop.f32.mrb[0].mxu0
  %v139 = vadd.f32 0.0, %v138
  %v140 = vpop.f32.mrb[0].mxu0
  %141 = vdwg.mxu0
  %v142 = vadd.f32 %v27, %v136
  %v143 = vadd.f32 %v28, %v139
  %144 = vst [vmem:[#allocation2] sm:$0xff] %v142
  %145 = vst [vmem:[#allocation2 + $0x8] sm:$0xff] %v143
  // Predicated region
  $region26: #{_lambda_.58} parent=0 // pred_check
    %p146 = pneg %p21
  $region27: #{_lambda_.58} parent=0 // pred_check_branch
    %148 = sbr.rel (%p146) target = $region29
  $region28: #{_lambda_.58} parent=0 // pred_region
    %v149 = vld [vmem:[#allocation2] sm:$0xff]
    %v150 = vld [vmem:[#allocation2 + $0x8] sm:$0xff]
    %v151 = vld [vmem:[%s2] sm:$0x1]
    %v153 = vlaneseq
    %v154 = vshrl.u32 %v153, 7
    %v155 = vsub.s32 0, %v154
    %v156 = vrot.slane %v151, %v155
    %v158 = vmul.f32 %v149, %v156
    %v159 = vmul.f32 %v150, %v156
    %v160 = vld [vmem:[%s3] sm:$0x1]
    %v162 = vlaneseq
    %v163 = vshrl.u32 %v162, 7
    %v164 = vsub.s32 0, %v163
    %v165 = vrot.slane %v160, %v164
    %v167 = vadd.f32 %v158, %v165
    %v168 = vadd.f32 %v159, %v165
    %v169 = vld [vmem:[%s4] sm:$0xf]
    %v170 = vld [vmem:[%s4 + $0x4] sm:$0xf]
    %v171 = vunpack.c.l.bf16 %v169
    %v172 = vunpack.c.l.bf16 %v170
    %v173 = vadd.f32 %v167, %v171
    %v174 = vadd.f32 %v168, %v172
    %v175 = vmax.f32 %v173, 0.0
    %v176 = vmax.f32 %v174, 0.0
    %v177 = vpack.c.bf16 %v176, %v175
    %v179 = vunpack.c.l.b16 %v177
    %v180 = vunpack.c.h.b16 %v177
    %v181 = vpack.c.b16 %v179, %v179
    %v182 = vpack.c.b16 %v180, %v180
    %185 = vst [vmem:[%s5] sm:$0xf] %v181
    %186 = vst [vmem:[%s5 + $0x4] sm:$0xf] %v182
  $region29: #{_lambda_.58} parent=0 // pred_fallthru
    _
  // Predicated region
  $region30: #{_lambda_.58} parent=0 // pred_check
    _
  $region31: #{_lambda_.58} parent=0 // pred_check_branch
    %188 = sbr.rel (0) target = $region33
  $region32: #{_lambda_.58} parent=0 // pred_region
    _
  $region33: #{_lambda_.58} parent=0 // pred_fallthru
    _
  // Predicated region
  $region34: #{_lambda_.58} parent=0 // pred_check
    _
  $region35: #{_lambda_.58} parent=0 // pred_check_branch
    %190 = sbr.rel (0) target = $region37
  $region36: #{_lambda_.58} parent=0 // pred_region
    _
  $region37: #{_lambda_.58} parent=0 // pred_fallthru
    _

// kernel: _lambda_.65
$region0: #{_lambda_.65}
  #allocation0 [shape = 'u32[]', space=smem, size = 0x4, offset = 0x4, fixed_abs, tag = 'smem constant byte address 0x4 - core index']
  #allocation1 [shape = 'u32[144,128]{1,0:T(1,128)}', space=vmem, size = 0x12000, scoped, tag = 'internal scratch']
  %s0 = inlined_call_operand.vmem [shape: bf16[8,4,128], index: 0, kind: input, shape index: {}]
  %s1 = inlined_call_operand.vmem [shape: bf16[128,512], index: 1, kind: input, shape index: {}]
  %s2 = inlined_call_operand.vmem [shape: f32[1,512], index: 2, kind: input, shape index: {}]
  %s3 = inlined_call_operand.vmem [shape: bf16[512,256], index: 3, kind: input, shape index: {}]
  %s4 = inlined_call_operand.vmem [shape: f32[1,256], index: 4, kind: input, shape index: {}]
  %s5 = inlined_call_operand.vmem [shape: bf16[256,128], index: 5, kind: input, shape index: {}]
  %s6 = inlined_call_operand.vmem [shape: f32[1,128], index: 6, kind: input, shape index: {}]
  %s7 = inlined_call_operand.vmem [shape: f32[8,128], index: 7, kind: output, shape index: {}]
  %s8 = sld [smem:[#allocation0]]
  $region38: #{_lambda_.65} parent=0
    _
  %s10 = ssub.s32 1, %s8
  %s11 = scalar_select 0, %s10, %s8
  // Predicated region
  $region2: #{_lambda_.65} parent=0 // pred_check
    _
  $region3: #{_lambda_.65} parent=0 // pred_check_branch
    %13 = sbr.rel (0) target = $region5
  $region4: #{_lambda_.65} parent=0 // pred_region
    _
  $region5: #{_lambda_.65} parent=0 // pred_fallthru
    _
  // Predicated region
  $region6: #{_lambda_.65} parent=0 // pred_check
    _
  $region7: #{_lambda_.65} parent=0 // pred_check_branch
    %15 = sbr.rel (0) target = $region9
  $region8: #{_lambda_.65} parent=0 // pred_region
    _
  $region9: #{_lambda_.65} parent=0 // pred_fallthru
    _
  // Predicated region
  $region10: #{_lambda_.65} parent=0 // pred_check
    _
  $region11: #{_lambda_.65} parent=0 // pred_check_branch
    %17 = sbr.rel (0) target = $region13
  $region12: #{_lambda_.65} parent=0 // pred_region
    _
  $region13: #{_lambda_.65} parent=0 // pred_fallthru
    _
  // Predicated region
  $region14: #{_lambda_.65} parent=0 // pred_check
    _
  $region15: #{_lambda_.65} parent=0 // pred_check_branch
    %19 = sbr.rel (0) target = $region17
  $region16: #{_lambda_.65} parent=0 // pred_region
    _
  $region17: #{_lambda_.65} parent=0 // pred_fallthru
    _
  // Predicated region
  $region18: #{_lambda_.65} parent=0 // pred_check
    _
  $region19: #{_lambda_.65} parent=0 // pred_check_branch
    %21 = sbr.rel (0) target = $region21
  $region20: #{_lambda_.65} parent=0 // pred_region
    _
  $region21: #{_lambda_.65} parent=0 // pred_fallthru
    _
  // Predicated region
  $region22: #{_lambda_.65} parent=0 // pred_check
    _
  $region23: #{_lambda_.65} parent=0 // pred_check_branch
    %23 = sbr.rel (0) target = $region25
  $region24: #{_lambda_.65} parent=0 // pred_region
    _
  $region25: #{_lambda_.65} parent=0 // pred_fallthru
    _
  // Predicated region
  $region26: #{_lambda_.65} parent=0 // pred_check
    _
  $region27: #{_lambda_.65} parent=0 // pred_check_branch
    %25 = sbr.rel (0) target = $region29
  $region28: #{_lambda_.65} parent=0 // pred_region
    _
  $region29: #{_lambda_.65} parent=0 // pred_fallthru
    _
  %v27 = vld [vmem:[%s0] sm:$0x3]
  %v28 = vld [vmem:[%s0 + $0x2] sm:$0x3]
  %v29 = vld [vmem:[%s0 + $0x4] sm:$0x3]
  %v30 = vld [vmem:[%s0 + $0x6] sm:$0x3]
  %v31 = vld [vmem:[%s0 + $0x8] sm:$0x3]
  %v32 = vld [vmem:[%s0 + $0xa] sm:$0x3]
  %v33 = vld [vmem:[%s0 + $0xc] sm:$0x3]
  %v34 = vld [vmem:[%s0 + $0xe] sm:$0x3]
  %v35 = vunpack.c.l.bf16 %v27
  %v36 = vunpack.c.l.bf16 %v28
  %v37 = vunpack.c.l.bf16 %v29
  %v38 = vunpack.c.l.bf16 %v30
  %v39 = vunpack.c.l.bf16 %v31
  %v40 = vunpack.c.l.bf16 %v32
  %v41 = vunpack.c.l.bf16 %v33
  %v42 = vunpack.c.l.bf16 %v34
  %vm43 = vcmask 1043456
  %v44 = vsel %vm43, %v35, 0.0
  %v45 = vrot.slane %v44, 4
  %v46 = vadd.f32 %v44, %v45
  %v47 = vrot.slane %v46, 2
  %v48 = vadd.f32 %v46, %v47
  %v49 = vrot.slane %v48, 1
  %v50 = vadd.f32 %v48, %v49
  %v51 = vsel %vm43, %v36, 0.0
  %v52 = vrot.slane %v51, 4
  %v53 = vadd.f32 %v51, %v52
  %v54 = vrot.slane %v53, 2
  %v55 = vadd.f32 %v53, %v54
  %v56 = vrot.slane %v55, 1
  %v57 = vadd.f32 %v55, %v56
  %v58 = vsel %vm43, %v37, 0.0
  %v59 = vrot.slane %v58, 4
  %v60 = vadd.f32 %v58, %v59
  %v61 = vrot.slane %v60, 2
  %v62 = vadd.f32 %v60, %v61
  %v63 = vrot.slane %v62, 1
  %v64 = vadd.f32 %v62, %v63
  %v65 = vsel %vm43, %v38, 0.0
  %v66 = vrot.slane %v65, 4
  %v67 = vadd.f32 %v65, %v66
  %v68 = vrot.slane %v67, 2
  %v69 = vadd.f32 %v67, %v68
  %v70 = vrot.slane %v69, 1
  %v71 = vadd.f32 %v69, %v70
  %v72 = vsel %vm43, %v39, 0.0
  %v73 = vrot.slane %v72, 4
  %v74 = vadd.f32 %v72, %v73
  %v75 = vrot.slane %v74, 2
  %v76 = vadd.f32 %v74, %v75
  %v77 = vrot.slane %v76, 1
  %v78 = vadd.f32 %v76, %v77
  %v79 = vsel %vm43, %v40, 0.0
  %v80 = vrot.slane %v79, 4
  %v81 = vadd.f32 %v79, %v80
  %v82 = vrot.slane %v81, 2
  %v83 = vadd.f32 %v81, %v82
  %v84 = vrot.slane %v83, 1
  %v85 = vadd.f32 %v83, %v84
  %v86 = vsel %vm43, %v41, 0.0
  %v87 = vrot.slane %v86, 4
  %v88 = vadd.f32 %v86, %v87
  %v89 = vrot.slane %v88, 2
  %v90 = vadd.f32 %v88, %v89
  %v91 = vrot.slane %v90, 1
  %v92 = vadd.f32 %v90, %v91
  %v93 = vsel %vm43, %v42, 0.0
  %v94 = vrot.slane %v93, 4
  %v95 = vadd.f32 %v93, %v94
  %v96 = vrot.slane %v95, 2
  %v97 = vadd.f32 %v95, %v96
  %v98 = vrot.slane %v97, 1
  %v99 = vadd.f32 %v97, %v98
  %v100 = vrcp.pop 4.0
  %v101 = vmul.f32 %v50, %v100
  %v102 = vmul.f32 %v57, %v100
  %v103 = vmul.f32 %v64, %v100
  %v104 = vmul.f32 %v71, %v100
  %v105 = vmul.f32 %v78, %v100
  %v106 = vmul.f32 %v85, %v100
  %v107 = vmul.f32 %v92, %v100
  %v108 = vmul.f32 %v99, %v100
  %v109 = vpack.c.bf16 %v101, %v101
  %v110 = vpack.c.bf16 %v102, %v102
  %v111 = vpack.c.bf16 %v103, %v103
  %v112 = vpack.c.bf16 %v104, %v104
  %v113 = vpack.c.bf16 %v105, %v105
  %v114 = vpack.c.bf16 %v106, %v106
  %v115 = vpack.c.bf16 %v107, %v107
  %v116 = vpack.c.bf16 %v108, %v108
  %v117 = vld [vmem:[%s1] sm:$0xff]
  %v118 = vld [vmem:[%s1 + $0x8] sm:$0xff]
  %v119 = vld [vmem:[%s1 + $0x10] sm:$0xff]
  %v120 = vld [vmem:[%s1 + $0x18] sm:$0xff]
  %v121 = vld [vmem:[%s1 + $0x20] sm:$0xff]
  %v122 = vld [vmem:[%s1 + $0x28] sm:$0xff]
  %v123 = vld [vmem:[%s1 + $0x30] sm:$0xff]
  %v124 = vld [vmem:[%s1 + $0x38] sm:$0xff]
  %v125 = vld [vmem:[%s1 + $0x40] sm:$0xff]
  %v126 = vld [vmem:[%s1 + $0x48] sm:$0xff]
  %v127 = vld [vmem:[%s1 + $0x50] sm:$0xff]
  %v128 = vld [vmem:[%s1 + $0x58] sm:$0xff]
  %v129 = vld [vmem:[%s1 + $0x60] sm:$0xff]
  %v130 = vld [vmem:[%s1 + $0x68] sm:$0xff]
  %v131 = vld [vmem:[%s1 + $0x70] sm:$0xff]
  %v132 = vld [vmem:[%s1 + $0x78] sm:$0xff]
  %v133 = vld [vmem:[%s1 + $0x80] sm:$0xff]
  %v134 = vld [vmem:[%s1 + $0x88] sm:$0xff]
  %v135 = vld [vmem:[%s1 + $0x90] sm:$0xff]
  %v136 = vld [vmem:[%s1 + $0x98] sm:$0xff]
  %v137 = vld [vmem:[%s1 + $0xa0] sm:$0xff]
  %v138 = vld [vmem:[%s1 + $0xa8] sm:$0xff]
  %v139 = vld [vmem:[%s1 + $0xb0] sm:$0xff]
  %v140 = vld [vmem:[%s1 + $0xb8] sm:$0xff]
  %v141 = vld [vmem:[%s1 + $0xc0] sm:$0xff]
  %v142 = vld [vmem:[%s1 + $0xc8] sm:$0xff]
  %v143 = vld [vmem:[%s1 + $0xd0] sm:$0xff]
  %v144 = vld [vmem:[%s1 + $0xd8] sm:$0xff]
  %v145 = vld [vmem:[%s1 + $0xe0] sm:$0xff]
  %v146 = vld [vmem:[%s1 + $0xe8] sm:$0xff]
  %v147 = vld [vmem:[%s1 + $0xf0] sm:$0xff]
  %v148 = vld [vmem:[%s1 + $0xf8] sm:$0xff]
  %v149 = vld [vmem:[%s2] sm:$0xf]
  %v151 = vlaneseq
  %v152 = vshrl.u32 %v151, 7
  %v153 = vsub.s32 0, %v152
  %v154 = vrot.slane %v149, %v153
  %v155 = vlaneseq
  %v156 = vshrl.u32 %v155, 7
  %v157 = vsub.s32 1, %v156
  %v158 = vrot.slane %v149, %v157
  %v159 = vlaneseq
  %v160 = vshrl.u32 %v159, 7
  %v161 = vsub.s32 2, %v160
  %v162 = vrot.slane %v149, %v161
  %v163 = vlaneseq
  %v164 = vshrl.u32 %v163, 7
  %v165 = vsub.s32 3, %v164
  %v166 = vrot.slane %v149, %v165
  %v179 = vunpack.c.l.b16 %v109
  %v180 = vunpack.c.l.b16 %v110
  %v181 = vunpack.c.l.b16 %v111
  %v182 = vunpack.c.l.b16 %v112
  %v183 = vunpack.c.l.b16 %v113
  %v184 = vunpack.c.l.b16 %v114
  %v185 = vunpack.c.l.b16 %v115
  %v186 = vunpack.c.l.b16 %v116
  %vm187 = vcmask 1041409
  %v188 = vsel %vm187, %v180, %v179
  %vm189 = vcmask 1042434
  %v190 = vsel %vm189, %v181, %v188
  %vm191 = vcmask 1043459
  %v192 = vsel %vm191, %v182, %v190
  %vm193 = vcmask 1044484
  %v194 = vsel %vm193, %v183, %v192
  %vm195 = vcmask 1045509
  %v196 = vsel %vm195, %v184, %v194
  %vm197 = vcmask 1046534
  %v198 = vsel %vm197, %v185, %v196
  %vm199 = vcmask 1047559
  %v200 = vsel %vm199, %v186, %v198
  %v201 = vpack.c.b16 %v200, %v200
  %v235 = vunpack.c.l.b16 %v117
  %v236 = vunpack.c.h.b16 %v117
  %v237 = vunpack.c.l.b16 %v118
  %v238 = vunpack.c.h.b16 %v118
  %v239 = vunpack.c.l.b16 %v119
  %v240 = vunpack.c.h.b16 %v119
  %v241 = vunpack.c.l.b16 %v120
  %v242 = vunpack.c.h.b16 %v120
  %v243 = vunpack.c.l.b16 %v121
  %v244 = vunpack.c.h.b16 %v121
  %v245 = vunpack.c.l.b16 %v122
  %v246 = vunpack.c.h.b16 %v122
  %v247 = vunpack.c.l.b16 %v123
  %v248 = vunpack.c.h.b16 %v123
  %v249 = vunpack.c.l.b16 %v124
  %v250 = vunpack.c.h.b16 %v124
  %v251 = vunpack.c.l.b16 %v125
  %v252 = vunpack.c.h.b16 %v125
  %v253 = vunpack.c.l.b16 %v126
  %v254 = vunpack.c.h.b16 %v126
  %v255 = vunpack.c.l.b16 %v127
  %v256 = vunpack.c.h.b16 %v127
  %v257 = vunpack.c.l.b16 %v128
  %v258 = vunpack.c.h.b16 %v128
  %v259 = vunpack.c.l.b16 %v129
  %v260 = vunpack.c.h.b16 %v129
  %v261 = vunpack.c.l.b16 %v130
  %v262 = vunpack.c.h.b16 %v130
  %v263 = vunpack.c.l.b16 %v131
  %v264 = vunpack.c.h.b16 %v131
  %v265 = vunpack.c.l.b16 %v132
  %v266 = vunpack.c.h.b16 %v132
  %v267 = vunpack.c.l.b16 %v133
  %v268 = vunpack.c.h.b16 %v133
  %v269 = vunpack.c.l.b16 %v134
  %v270 = vunpack.c.h.b16 %v134
  %v271 = vunpack.c.l.b16 %v135
  %v272 = vunpack.c.h.b16 %v135
  %v273 = vunpack.c.l.b16 %v136
  %v274 = vunpack.c.h.b16 %v136
  %v275 = vunpack.c.l.b16 %v137
  %v276 = vunpack.c.h.b16 %v137
  %v277 = vunpack.c.l.b16 %v138
  %v278 = vunpack.c.h.b16 %v138
  %v279 = vunpack.c.l.b16 %v139
  %v280 = vunpack.c.h.b16 %v139
  %v281 = vunpack.c.l.b16 %v140
  %v282 = vunpack.c.h.b16 %v140
  %v283 = vunpack.c.l.b16 %v141
  %v284 = vunpack.c.h.b16 %v141
  %v285 = vunpack.c.l.b16 %v142
  %v286 = vunpack.c.h.b16 %v142
  %v287 = vunpack.c.l.b16 %v143
  %v288 = vunpack.c.h.b16 %v143
  %v289 = vunpack.c.l.b16 %v144
  %v290 = vunpack.c.h.b16 %v144
  %v291 = vunpack.c.l.b16 %v145
  %v292 = vunpack.c.h.b16 %v145
  %v293 = vunpack.c.l.b16 %v146
  %v294 = vunpack.c.h.b16 %v146
  %v295 = vunpack.c.l.b16 %v147
  %v296 = vunpack.c.h.b16 %v147
  %v297 = vunpack.c.l.b16 %v148
  %v298 = vunpack.c.h.b16 %v148
  %v299 = vpack.c.b16 %v239, %v235
  %v300 = vpack.c.b16 %v240, %v236
  %v301 = vpack.c.b16 %v241, %v237
  %v302 = vpack.c.b16 %v242, %v238
  %v303 = vpack.c.b16 %v247, %v243
  %v304 = vpack.c.b16 %v248, %v244
  %v305 = vpack.c.b16 %v249, %v245
  %v306 = vpack.c.b16 %v250, %v246
  %v307 = vpack.c.b16 %v255, %v251
  %v308 = vpack.c.b16 %v256, %v252
  %v309 = vpack.c.b16 %v257, %v253
  %v310 = vpack.c.b16 %v258, %v254
  %v311 = vpack.c.b16 %v263, %v259
  %v312 = vpack.c.b16 %v264, %v260
  %v313 = vpack.c.b16 %v265, %v261
  %v314 = vpack.c.b16 %v266, %v262
  %v315 = vpack.c.b16 %v271, %v267
  %v316 = vpack.c.b16 %v272, %v268
  %v317 = vpack.c.b16 %v273, %v269
  %v318 = vpack.c.b16 %v274, %v270
  %v319 = vpack.c.b16 %v279, %v275
  %v320 = vpack.c.b16 %v280, %v276
  %v321 = vpack.c.b16 %v281, %v277
  %v322 = vpack.c.b16 %v282, %v278
  %v323 = vpack.c.b16 %v287, %v283
  %v324 = vpack.c.b16 %v288, %v284
  %v325 = vpack.c.b16 %v289, %v285
  %v326 = vpack.c.b16 %v290, %v286
  %v327 = vpack.c.b16 %v295, %v291
  %v328 = vpack.c.b16 %v296, %v292
  %v329 = vpack.c.b16 %v297, %v293
  %v330 = vpack.c.b16 %v298, %v294
  %363 = vmatprep.subr.bf16.mxu0 %v300
  %364 = vmatpush1.bf16.msra.mxu0 %v299
  %365 = vmatprep.subr.bf16.mxu0 %v304
  %366 = vmatpush1.bf16.msra.mxu0 %v303
  %367 = vmatprep.subr.bf16.mxu0 %v308
  %368 = vmatpush1.bf16.msra.mxu0 %v307
  %369 = vmatprep.subr.bf16.mxu0 %v312
  %370 = vmatpush1.bf16.msra.mxu0 %v311
  %371 = vmatprep.subr.bf16.mxu0 %v316
  %372 = vmatpush1.bf16.msra.mxu0 %v315
  %373 = vmatprep.subr.bf16.mxu0 %v320
  %374 = vmatpush1.bf16.msra.mxu0 %v319
  %375 = vmatprep.subr.bf16.mxu0 %v324
  %376 = vmatpush1.bf16.msra.mxu0 %v323
  %377 = vmatprep.subr.bf16.mxu0 %v328
  %378 = vmatpush1.bf16.msra.mxu0 %v327
  %379 = vmatprep.subr.bf16.mxu0 0
  %380 = vmatpush1.bf16.msra.mxu0 0
  %381 = vmatprep.subr.bf16.mxu0 0
  %382 = vmatpush1.bf16.msra.mxu0 0
  %383 = vmatprep.subr.bf16.mxu0 0
  %384 = vmatpush1.bf16.msra.mxu0 0
  %385 = vmatprep.subr.bf16.mxu0 0
  %386 = vmatpush1.bf16.msra.mxu0 0
  %387 = vmatprep.subr.bf16.mxu0 0
  %388 = vmatpush1.bf16.msra.mxu0 0
  %389 = vmatprep.subr.bf16.mxu0 0
  %390 = vmatpush1.bf16.msra.mxu0 0
  %391 = vmatprep.subr.bf16.mxu0 0
  %392 = vmatpush1.bf16.msra.mxu0 0
  %393 = vmatprep.subr.bf16.mxu0 0
  %394 = vmatpush1.bf16.msra.mxu0 0
  %395 = vmatprep.mubr.bf16.mxu0 0
  %396 = vmatmul.mubr.bf16.gmra.mrb[0].mxu0 %v201
  %v397 = vpop.f32.mrb[0].mxu0
  %v398 = vadd.f32 %v154, %v397
  %v399 = vpop.f32.mrb[0].mxu0
  %v400 = vadd.f32 %v158, %v399
  %v401 = vpop.f32.mrb[0].mxu0
  %v402 = vpop.f32.mrb[0].mxu0
  %403 = vdwg.mxu0
  %404 = vmatprep.subr.bf16.mxu0 %v302
  %405 = vmatpush1.bf16.msra.mxu0 %v301
  %406 = vmatprep.subr.bf16.mxu0 %v306
  %407 = vmatpush1.bf16.msra.mxu0 %v305
  %408 = vmatprep.subr.bf16.mxu0 %v310
  %409 = vmatpush1.bf16.msra.mxu0 %v309
  %410 = vmatprep.subr.bf16.mxu0 %v314
  %411 = vmatpush1.bf16.msra.mxu0 %v313
  %412 = vmatprep.subr.bf16.mxu0 %v318
  %413 = vmatpush1.bf16.msra.mxu0 %v317
  %414 = vmatprep.subr.bf16.mxu0 %v322
  %415 = vmatpush1.bf16.msra.mxu0 %v321
  %416 = vmatprep.subr.bf16.mxu0 %v326
  %417 = vmatpush1.bf16.msra.mxu0 %v325
  %418 = vmatprep.subr.bf16.mxu0 %v330
  %419 = vmatpush1.bf16.msra.mxu0 %v329
  %420 = vmatprep.subr.bf16.mxu0 0
  %421 = vmatpush1.bf16.msra.mxu0 0
  %422 = vmatprep.subr.bf16.mxu0 0
  %423 = vmatpush1.bf16.msra.mxu0 0
  %424 = vmatprep.subr.bf16.mxu0 0
  %425 = vmatpush1.bf16.msra.mxu0 0
  %426 = vmatprep.subr.bf16.mxu0 0
  %427 = vmatpush1.bf16.msra.mxu0 0
  %428 = vmatprep.subr.bf16.mxu0 0
  %429 = vmatpush1.bf16.msra.mxu0 0
  %430 = vmatprep.subr.bf16.mxu0 0
  %431 = vmatpush1.bf16.msra.mxu0 0
  %432 = vmatprep.subr.bf16.mxu0 0
  %433 = vmatpush1.bf16.msra.mxu0 0
  %434 = vmatprep.subr.bf16.mxu0 0
  %435 = vmatpush1.bf16.msra.mxu0 0
  %436 = vmatprep.mubr.bf16.mxu0 0
  %437 = vmatmul.mubr.bf16.gmra.mrb[0].mxu0 %v201
  %v438 = vpop.f32.mrb[0].mxu0
  %v439 = vadd.f32 %v162, %v438
  %v440 = vpop.f32.mrb[0].mxu0
  %v441 = vadd.f32 %v166, %v440
  %v442 = vpop.f32.mrb[0].mxu0
  %v443 = vpop.f32.mrb[0].mxu0
  %444 = vdwg.mxu0
  %vm445 = vcmp.ge.f32.partialorder %v398, 0.0
  %vm446 = vcmp.ge.f32.partialorder %v400, 0.0
  %vm447 = vcmp.ge.f32.partialorder %v439, 0.0
  %vm448 = vcmp.ge.f32.partialorder %v441, 0.0
  %v449 = vmul.f32 %v398, 0.01
  %v450 = vmul.f32 %v400, 0.01
  %v451 = vmul.f32 %v439, 0.01
  %v452 = vmul.f32 %v441, 0.01
  %v453 = vsel %vm445, %v398, %v449
  %v454 = vsel %vm446, %v400, %v450
  %v455 = vsel %vm447, %v439, %v451
  %v456 = vsel %vm448, %v441, %v452
  %v457 = vpack.c.bf16 %v453, %v453
  %v458 = vpack.c.bf16 %v454, %v454
  %v459 = vpack.c.bf16 %v455, %v455
  %v460 = vpack.c.bf16 %v456, %v456
  %v461 = vld [vmem:[%s3] sm:$0xff]
  %v462 = vld [vmem:[%s3 + $0x8] sm:$0xff]
  %v463 = vld [vmem:[%s3 + $0x10] sm:$0xff]
  %v464 = vld [vmem:[%s3 + $0x18] sm:$0xff]
  %v465 = vld [vmem:[%s3 + $0x20] sm:$0xff]
  %v466 = vld [vmem:[%s3 + $0x28] sm:$0xff]
  %v467 = vld [vmem:[%s3 + $0x30] sm:$0xff]
  %v468 = vld [vmem:[%s3 + $0x38] sm:$0xff]
  %v469 = vld [vmem:[%s3 + $0x40] sm:$0xff]
  %v470 = vld [vmem:[%s3 + $0x48] sm:$0xff]
  %v471 = vld [vmem:[%s3 + $0x50] sm:$0xff]
  %v472 = vld [vmem:[%s3 + $0x58] sm:$0xff]
  %v473 = vld [vmem:[%s3 + $0x60] sm:$0xff]
  %v474 = vld [vmem:[%s3 + $0x68] sm:$0xff]
  %v475 = vld [vmem:[%s3 + $0x70] sm:$0xff]
  %v476 = vld [vmem:[%s3 + $0x78] sm:$0xff]
  %v477 = vld [vmem:[%s3 + $0x80] sm:$0xff]
  %v478 = vld [vmem:[%s3 + $0x88] sm:$0xff]
  %v479 = vld [vmem:[%s3 + $0x90] sm:$0xff]
  %v480 = vld [vmem:[%s3 + $0x98] sm:$0xff]
  %v481 = vld [vmem:[%s3 + $0xa0] sm:$0xff]
  %v482 = vld [vmem:[%s3 + $0xa8] sm:$0xff]
  %v483 = vld [vmem:[%s3 + $0xb0] sm:$0xff]
  %v484 = vld [vmem:[%s3 + $0xb8] sm:$0xff]
  %v485 = vld [vmem:[%s3 + $0xc0] sm:$0xff]
  %v486 = vld [vmem:[%s3 + $0xc8] sm:$0xff]
  %v487 = vld [vmem:[%s3 + $0xd0] sm:$0xff]
  %v488 = vld [vmem:[%s3 + $0xd8] sm:$0xff]
  %v489 = vld [vmem:[%s3 + $0xe0] sm:$0xff]
  %v490 = vld [vmem:[%s3 + $0xe8] sm:$0xff]
  %v491 = vld [vmem:[%s3 + $0xf0] sm:$0xff]
  %v492 = vld [vmem:[%s3 + $0xf8] sm:$0xff]
  %v493 = vld [vmem:[%s3 + $0x100] sm:$0xff]
  %v494 = vld [vmem:[%s3 + $0x108] sm:$0xff]
  %v495 = vld [vmem:[%s3 + $0x110] sm:$0xff]
  %v496 = vld [vmem:[%s3 + $0x118] sm:$0xff]
  %v497 = vld [vmem:[%s3 + $0x120] sm:$0xff]
  %v498 = vld [vmem:[%s3 + $0x128] sm:$0xff]
  %v499 = vld [vmem:[%s3 + $0x130] sm:$0xff]
  %v500 = vld [vmem:[%s3 + $0x138] sm:$0xff]
  %v501 = vld [vmem:[%s3 + $0x140] sm:$0xff]
  %v502 = vld [vmem:[%s3 + $0x148] sm:$0xff]
  %v503 = vld [vmem:[%s3 + $0x150] sm:$0xff]
  %v504 = vld [vmem:[%s3 + $0x158] sm:$0xff]
  %v505 = vld [vmem:[%s3 + $0x160] sm:$0xff]
  %v506 = vld [vmem:[%s3 + $0x168] sm:$0xff]
  %v507 = vld [vmem:[%s3 + $0x170] sm:$0xff]
  %v508 = vld [vmem:[%s3 + $0x178] sm:$0xff]
  %v509 = vld [vmem:[%s3 + $0x180] sm:$0xff]
  %v510 = vld [vmem:[%s3 + $0x188] sm:$0xff]
  %v511 = vld [vmem:[%s3 + $0x190] sm:$0xff]
  %v512 = vld [vmem:[%s3 + $0x198] sm:$0xff]
  %v513 = vld [vmem:[%s3 + $0x1a0] sm:$0xff]
  %v514 = vld [vmem:[%s3 + $0x1a8] sm:$0xff]
  %v515 = vld [vmem:[%s3 + $0x1b0] sm:$0xff]
  %v516 = vld [vmem:[%s3 + $0x1b8] sm:$0xff]
  %v517 = vld [vmem:[%s3 + $0x1c0] sm:$0xff]
  %v518 = vld [vmem:[%s3 + $0x1c8] sm:$0xff]
  %v519 = vld [vmem:[%s3 + $0x1d0] sm:$0xff]
  %v520 = vld [vmem:[%s3 + $0x1d8] sm:$0xff]
  %v521 = vld [vmem:[%s3 + $0x1e0] sm:$0xff]
  %v522 = vld [vmem:[%s3 + $0x1e8] sm:$0xff]
  %v523 = vld [vmem:[%s3 + $0x1f0] sm:$0xff]
  %v524 = vld [vmem:[%s3 + $0x1f8] sm:$0xff]
  %v525 = vld [vmem:[%s4] sm:$0x3]
  %v527 = vlaneseq
  %v528 = vshrl.u32 %v527, 7
  %v529 = vsub.s32 0, %v528
  %v530 = vrot.slane %v525, %v529
  %v531 = vlaneseq
  %v532 = vshrl.u32 %v531, 7
  %v533 = vsub.s32 1, %v532
  %v534 = vrot.slane %v525, %v533
  %v601 = vunpack.c.l.b16 %v461
  %v602 = vunpack.c.h.b16 %v461
  %v603 = vunpack.c.l.b16 %v462
  %v604 = vunpack.c.h.b16 %v462
  %v605 = vunpack.c.l.b16 %v463
  %v606 = vunpack.c.h.b16 %v463
  %v607 = vunpack.c.l.b16 %v464
  %v608 = vunpack.c.h.b16 %v464
  %v609 = vunpack.c.l.b16 %v465
  %v610 = vunpack.c.h.b16 %v465
  %v611 = vunpack.c.l.b16 %v466
  %v612 = vunpack.c.h.b16 %v466
  %v613 = vunpack.c.l.b16 %v467
  %v614 = vunpack.c.h.b16 %v467
  %v615 = vunpack.c.l.b16 %v468
  %v616 = vunpack.c.h.b16 %v468
  %v617 = vunpack.c.l.b16 %v469
  %v618 = vunpack.c.h.b16 %v469
  %v619 = vunpack.c.l.b16 %v470
  %v620 = vunpack.c.h.b16 %v470
  %v621 = vunpack.c.l.b16 %v471
  %v622 = vunpack.c.h.b16 %v471
  %v623 = vunpack.c.l.b16 %v472
  %v624 = vunpack.c.h.b16 %v472
  %v625 = vunpack.c.l.b16 %v473
  %v626 = vunpack.c.h.b16 %v473
  %v627 = vunpack.c.l.b16 %v474
  %v628 = vunpack.c.h.b16 %v474
  %v629 = vunpack.c.l.b16 %v475
  %v630 = vunpack.c.h.b16 %v475
  %v631 = vunpack.c.l.b16 %v476
  %v632 = vunpack.c.h.b16 %v476
  %v633 = vunpack.c.l.b16 %v477
  %v634 = vunpack.c.h.b16 %v477
  %v635 = vunpack.c.l.b16 %v478
  %v636 = vunpack.c.h.b16 %v478
  %v637 = vunpack.c.l.b16 %v479
  %v638 = vunpack.c.h.b16 %v479
  %v639 = vunpack.c.l.b16 %v480
  %v640 = vunpack.c.h.b16 %v480
  %v641 = vunpack.c.l.b16 %v481
  %v642 = vunpack.c.h.b16 %v481
  %v643 = vunpack.c.l.b16 %v482
  %v644 = vunpack.c.h.b16 %v482
  %v645 = vunpack.c.l.b16 %v483
  %v646 = vunpack.c.h.b16 %v483
  %v647 = vunpack.c.l.b16 %v484
  %v648 = vunpack.c.h.b16 %v484
  %v649 = vunpack.c.l.b16 %v485
  %v650 = vunpack.c.h.b16 %v485
  %v651 = vunpack.c.l.b16 %v486
  %v652 = vunpack.c.h.b16 %v486
  %v653 = vunpack.c.l.b16 %v487
  %v654 = vunpack.c.h.b16 %v487
  %v655 = vunpack.c.l.b16 %v488
  %v656 = vunpack.c.h.b16 %v488
  %v657 = vunpack.c.l.b16 %v489
  %v658 = vunpack.c.h.b16 %v489
  %v659 = vunpack.c.l.b16 %v490
  %v660 = vunpack.c.h.b16 %v490
  %v661 = vunpack.c.l.b16 %v491
  %v662 = vunpack.c.h.b16 %v491
  %v663 = vunpack.c.l.b16 %v492
  %v664 = vunpack.c.h.b16 %v492
  %v665 = vunpack.c.l.b16 %v493
  %v666 = vunpack.c.h.b16 %v493
  %v667 = vunpack.c.l.b16 %v494
  %v668 = vunpack.c.h.b16 %v494
  %v669 = vunpack.c.l.b16 %v495
  %v670 = vunpack.c.h.b16 %v495
  %v671 = vunpack.c.l.b16 %v496
  %v672 = vunpack.c.h.b16 %v496
  %v673 = vunpack.c.l.b16 %v497
  %v674 = vunpack.c.h.b16 %v497
  %v675 = vunpack.c.l.b16 %v498
  %v676 = vunpack.c.h.b16 %v498
  %v677 = vunpack.c.l.b16 %v499
  %v678 = vunpack.c.h.b16 %v499
  %v679 = vunpack.c.l.b16 %v500
  %v680 = vunpack.c.h.b16 %v500
  %v681 = vunpack.c.l.b16 %v501
  %v682 = vunpack.c.h.b16 %v501
  %v683 = vunpack.c.l.b16 %v502
  %v684 = vunpack.c.h.b16 %v502
  %v685 = vunpack.c.l.b16 %v503
  %v686 = vunpack.c.h.b16 %v503
  %v687 = vunpack.c.l.b16 %v504
  %v688 = vunpack.c.h.b16 %v504
  %v689 = vunpack.c.l.b16 %v505
  %v690 = vunpack.c.h.b16 %v505
  %v691 = vunpack.c.l.b16 %v506
  %v692 = vunpack.c.h.b16 %v506
  %v693 = vunpack.c.l.b16 %v507
  %v694 = vunpack.c.h.b16 %v507
  %v695 = vunpack.c.l.b16 %v508
  %v696 = vunpack.c.h.b16 %v508
  %v697 = vunpack.c.l.b16 %v509
  %v698 = vunpack.c.h.b16 %v509
  %v699 = vunpack.c.l.b16 %v510
  %v700 = vunpack.c.h.b16 %v510
  %v701 = vunpack.c.l.b16 %v511
  %v702 = vunpack.c.h.b16 %v511
  %v703 = vunpack.c.l.b16 %v512
  %v704 = vunpack.c.h.b16 %v512
  %v705 = vunpack.c.l.b16 %v513
  %v706 = vunpack.c.h.b16 %v513
  %v707 = vunpack.c.l.b16 %v514
  %v708 = vunpack.c.h.b16 %v514
  %v709 = vunpack.c.l.b16 %v515
  %v710 = vunpack.c.h.b16 %v515
  %v711 = vunpack.c.l.b16 %v516
  %v712 = vunpack.c.h.b16 %v516
  %v713 = vunpack.c.l.b16 %v517
  %v714 = vunpack.c.h.b16 %v517
  %v715 = vunpack.c.l.b16 %v518
  %v716 = vunpack.c.h.b16 %v518
  %v717 = vunpack.c.l.b16 %v519
  %v718 = vunpack.c.h.b16 %v519
  %v719 = vunpack.c.l.b16 %v520
  %v720 = vunpack.c.h.b16 %v520
  %v721 = vunpack.c.l.b16 %v521
  %v722 = vunpack.c.h.b16 %v521
  %v723 = vunpack.c.l.b16 %v522
  %v724 = vunpack.c.h.b16 %v522
  %v725 = vunpack.c.l.b16 %v523
  %v726 = vunpack.c.h.b16 %v523
  %v727 = vunpack.c.l.b16 %v524
  %v728 = vunpack.c.h.b16 %v524
  %v729 = vpack.c.b16 %v603, %v601
  %v730 = vpack.c.b16 %v604, %v602
  %v731 = vpack.c.b16 %v607, %v605
  %v732 = vpack.c.b16 %v608, %v606
  %v733 = vpack.c.b16 %v611, %v609
  %v734 = vpack.c.b16 %v612, %v610
  %v735 = vpack.c.b16 %v615, %v613
  %v736 = vpack.c.b16 %v616, %v614
  %v737 = vpack.c.b16 %v619, %v617
  %v738 = vpack.c.b16 %v620, %v618
  %v739 = vpack.c.b16 %v623, %v621
  %v740 = vpack.c.b16 %v624, %v622
  %v741 = vpack.c.b16 %v627, %v625
  %v742 = vpack.c.b16 %v628, %v626
  %v743 = vpack.c.b16 %v631, %v629
  %v744 = vpack.c.b16 %v632, %v630
  %v745 = vpack.c.b16 %v635, %v633
  %v746 = vpack.c.b16 %v636, %v634
  %v747 = vpack.c.b16 %v639, %v637
  %v748 = vpack.c.b16 %v640, %v638
  %v749 = vpack.c.b16 %v643, %v641
  %v750 = vpack.c.b16 %v644, %v642
  %v751 = vpack.c.b16 %v647, %v645
  %v752 = vpack.c.b16 %v648, %v646
  %v753 = vpack.c.b16 %v651, %v649
  %v754 = vpack.c.b16 %v652, %v650
  %v755 = vpack.c.b16 %v655, %v653
  %v756 = vpack.c.b16 %v656, %v654
  %v757 = vpack.c.b16 %v659, %v657
  %v758 = vpack.c.b16 %v660, %v658
  %v759 = vpack.c.b16 %v663, %v661
  %v760 = vpack.c.b16 %v664, %v662
  %v761 = vpack.c.b16 %v667, %v665
  %v762 = vpack.c.b16 %v668, %v666
  %v763 = vpack.c.b16 %v671, %v669
  %v764 = vpack.c.b16 %v672, %v670
  %v765 = vpack.c.b16 %v675, %v673
  %v766 = vpack.c.b16 %v676, %v674
  %v767 = vpack.c.b16 %v679, %v677
  %v768 = vpack.c.b16 %v680, %v678
  %v769 = vpack.c.b16 %v683, %v681
  %v770 = vpack.c.b16 %v684, %v682
  %v771 = vpack.c.b16 %v687, %v685
  %v772 = vpack.c.b16 %v688, %v686
  %v773 = vpack.c.b16 %v691, %v689
  %v774 = vpack.c.b16 %v692, %v690
  %v775 = vpack.c.b16 %v695, %v693
  %v776 = vpack.c.b16 %v696, %v694
  %v777 = vpack.c.b16 %v699, %v697
  %v778 = vpack.c.b16 %v700, %v698
  %v779 = vpack.c.b16 %v703, %v701
  %v780 = vpack.c.b16 %v704, %v702
  %v781 = vpack.c.b16 %v707, %v705
  %v782 = vpack.c.b16 %v708, %v706
  %v783 = vpack.c.b16 %v711, %v709
  %v784 = vpack.c.b16 %v712, %v710
  %v785 = vpack.c.b16 %v715, %v713
  %v786 = vpack.c.b16 %v716, %v714
  %v787 = vpack.c.b16 %v719, %v717
  %v788 = vpack.c.b16 %v720, %v718
  %v789 = vpack.c.b16 %v723, %v721
  %v790 = vpack.c.b16 %v724, %v722
  %v791 = vpack.c.b16 %v727, %v725
  %v792 = vpack.c.b16 %v728, %v726
  %857 = vmatprep.subr.bf16.mxu0 %v730
  %858 = vmatpush1.bf16.msra.mxu0 %v729
  %859 = vmatprep.subr.bf16.mxu0 %v732
  %860 = vmatpush1.bf16.msra.mxu0 %v731
  %861 = vmatprep.subr.bf16.mxu0 %v734
  %862 = vmatpush1.bf16.msra.mxu0 %v733
  %863 = vmatprep.subr.bf16.mxu0 %v736
  %864 = vmatpush1.bf16.msra.mxu0 %v735
  %865 = vmatprep.subr.bf16.mxu0 %v738
  %866 = vmatpush1.bf16.msra.mxu0 %v737
  %867 = vmatprep.subr.bf16.mxu0 %v740
  %868 = vmatpush1.bf16.msra.mxu0 %v739
  %869 = vmatprep.subr.bf16.mxu0 %v742
  %870 = vmatpush1.bf16.msra.mxu0 %v741
  %871 = vmatprep.subr.bf16.mxu0 %v744
  %872 = vmatpush1.bf16.msra.mxu0 %v743
  %873 = vmatprep.subr.bf16.mxu0 %v746
  %874 = vmatpush1.bf16.msra.mxu0 %v745
  %875 = vmatprep.subr.bf16.mxu0 %v748
  %876 = vmatpush1.bf16.msra.mxu0 %v747
  %877 = vmatprep.subr.bf16.mxu0 %v750
  %878 = vmatpush1.bf16.msra.mxu0 %v749
  %879 = vmatprep.subr.bf16.mxu0 %v752
  %880 = vmatpush1.bf16.msra.mxu0 %v751
  %881 = vmatprep.subr.bf16.mxu0 %v754
  %882 = vmatpush1.bf16.msra.mxu0 %v753
  %883 = vmatprep.subr.bf16.mxu0 %v756
  %884 = vmatpush1.bf16.msra.mxu0 %v755
  %885 = vmatprep.subr.bf16.mxu0 %v758
  %886 = vmatpush1.bf16.msra.mxu0 %v757
  %887 = vmatprep.subr.bf16.mxu0 %v760
  %888 = vmatpush1.bf16.msra.mxu0 %v759
  %889 = vmatprep.mubr.bf16.mxu0 %v458
  %890 = vmatmul.mubr.bf16.gmra.mrb[0].mxu0 %v457
  %v891 = vpop.f32.mrb[0].mxu0
  %v892 = vadd.f32 %v530, %v891
  %v893 = vpop.f32.mrb[0].mxu0
  %v894 = vadd.f32 %v534, %v893
  %v895 = vpop.f32.mrb[0].mxu0
  %v896 = vpop.f32.mrb[0].mxu0
  %897 = vdwg.mxu0
  %898 = vmatprep.subr.bf16.mxu0 %v762
  %899 = vmatpush1.bf16.msra.mxu0 %v761
  %900 = vmatprep.subr.bf16.mxu0 %v764
  %901 = vmatpush1.bf16.msra.mxu0 %v763
  %902 = vmatprep.subr.bf16.mxu0 %v766
  %903 = vmatpush1.bf16.msra.mxu0 %v765
  %904 = vmatprep.subr.bf16.mxu0 %v768
  %905 = vmatpush1.bf16.msra.mxu0 %v767
  %906 = vmatprep.subr.bf16.mxu0 %v770
  %907 = vmatpush1.bf16.msra.mxu0 %v769
  %908 = vmatprep.subr.bf16.mxu0 %v772
  %909 = vmatpush1.bf16.msra.mxu0 %v771
  %910 = vmatprep.subr.bf16.mxu0 %v774
  %911 = vmatpush1.bf16.msra.mxu0 %v773
  %912 = vmatprep.subr.bf16.mxu0 %v776
  %913 = vmatpush1.bf16.msra.mxu0 %v775
  %914 = vmatprep.subr.bf16.mxu0 %v778
  %915 = vmatpush1.bf16.msra.mxu0 %v777
  %916 = vmatprep.subr.bf16.mxu0 %v780
  %917 = vmatpush1.bf16.msra.mxu0 %v779
  %918 = vmatprep.subr.bf16.mxu0 %v782
  %919 = vmatpush1.bf16.msra.mxu0 %v781
  %920 = vmatprep.subr.bf16.mxu0 %v784
  %921 = vmatpush1.bf16.msra.mxu0 %v783
  %922 = vmatprep.subr.bf16.mxu0 %v786
  %923 = vmatpush1.bf16.msra.mxu0 %v785
  %924 = vmatprep.subr.bf16.mxu0 %v788
  %925 = vmatpush1.bf16.msra.mxu0 %v787
  %926 = vmatprep.subr.bf16.mxu0 %v790
  %927 = vmatpush1.bf16.msra.mxu0 %v789
  %928 = vmatprep.subr.bf16.mxu0 %v792
  %929 = vmatpush1.bf16.msra.mxu0 %v791
  %930 = vmatprep.mubr.bf16.mxu0 %v460
  %931 = vmatmul.mubr.bf16.gmra.mrb[0].mxu0 %v459
  %v932 = vpop.f32.mrb[0].mxu0
  %v933 = vadd.f32 %v892, %v932
  %v934 = vpop.f32.mrb[0].mxu0
  %v935 = vadd.f32 %v894, %v934
  %v936 = vpop.f32.mrb[0].mxu0
  %v937 = vpop.f32.mrb[0].mxu0
  %938 = vdwg.mxu0
  %vm939 = vcmp.ge.f32.partialorder %v933, 0.0
  %vm940 = vcmp.ge.f32.partialorder %v935, 0.0
  %v941 = vmul.f32 %v933, 0.01
  %v942 = vmul.f32 %v935, 0.01
  %v943 = vsel %vm939, %v933, %v941
  %v944 = vsel %vm940, %v935, %v942
  %v945 = vpack.c.bf16 %v943, %v943
  %v946 = vpack.c.bf16 %v944, %v944
  %v947 = vld [vmem:[%s5] sm:$0xf]
  %v948 = vld [vmem:[%s5 + $0x4] sm:$0xf]
  %v949 = vld [vmem:[%s5 + $0x8] sm:$0xf]
  %v950 = vld [vmem:[%s5 + $0xc] sm:$0xf]
  %v951 = vld [vmem:[%s5 + $0x10] sm:$0xf]
  %v952 = vld [vmem:[%s5 + $0x14] sm:$0xf]
  %v953 = vld [vmem:[%s5 + $0x18] sm:$0xf]
  %v954 = vld [vmem:[%s5 + $0x1c] sm:$0xf]
  %v955 = vld [vmem:[%s5 + $0x20] sm:$0xf]
  %v956 = vld [vmem:[%s5 + $0x24] sm:$0xf]
  %v957 = vld [vmem:[%s5 + $0x28] sm:$0xf]
  %v958 = vld [vmem:[%s5 + $0x2c] sm:$0xf]
  %v959 = vld [vmem:[%s5 + $0x30] sm:$0xf]
  %v960 = vld [vmem:[%s5 + $0x34] sm:$0xf]
  %v961 = vld [vmem:[%s5 + $0x38] sm:$0xf]
  %v962 = vld [vmem:[%s5 + $0x3c] sm:$0xf]
  %v963 = vld [vmem:[%s5 + $0x40] sm:$0xf]
  %v964 = vld [vmem:[%s5 + $0x44] sm:$0xf]
  %v965 = vld [vmem:[%s5 + $0x48] sm:$0xf]
  %v966 = vld [vmem:[%s5 + $0x4c] sm:$0xf]
  %v967 = vld [vmem:[%s5 + $0x50] sm:$0xf]
  %v968 = vld [vmem:[%s5 + $0x54] sm:$0xf]
  %v969 = vld [vmem:[%s5 + $0x58] sm:$0xf]
  %v970 = vld [vmem:[%s5 + $0x5c] sm:$0xf]
  %v971 = vld [vmem:[%s5 + $0x60] sm:$0xf]
  %v972 = vld [vmem:[%s5 + $0x64] sm:$0xf]
  %v973 = vld [vmem:[%s5 + $0x68] sm:$0xf]
  %v974 = vld [vmem:[%s5 + $0x6c] sm:$0xf]
  %v975 = vld [vmem:[%s5 + $0x70] sm:$0xf]
  %v976 = vld [vmem:[%s5 + $0x74] sm:$0xf]
  %v977 = vld [vmem:[%s5 + $0x78] sm:$0xf]
  %v978 = vld [vmem:[%s5 + $0x7c] sm:$0xf]
  %v979 = vld [vmem:[%s6] sm:$0x1]
  %v981 = vlaneseq
  %v982 = vshrl.u32 %v981, 7
  %v983 = vsub.s32 0, %v982
  %v984 = vrot.slane %v979, %v983
  %v1018 = vunpack.c.l.b16 %v947
  %v1019 = vunpack.c.l.b16 %v948
  %v1020 = vunpack.c.l.b16 %v949
  %v1021 = vunpack.c.l.b16 %v950
  %v1022 = vunpack.c.l.b16 %v951
  %v1023 = vunpack.c.l.b16 %v952
  %v1024 = vunpack.c.l.b16 %v953
  %v1025 = vunpack.c.l.b16 %v954
  %v1026 = vunpack.c.l.b16 %v955
  %v1027 = vunpack.c.l.b16 %v956
  %v1028 = vunpack.c.l.b16 %v957
  %v1029 = vunpack.c.l.b16 %v958
  %v1030 = vunpack.c.l.b16 %v959
  %v1031 = vunpack.c.l.b16 %v960
  %v1032 = vunpack.c.l.b16 %v961
  %v1033 = vunpack.c.l.b16 %v962
  %v1034 = vunpack.c.l.b16 %v963
  %v1035 = vunpack.c.l.b16 %v964
  %v1036 = vunpack.c.l.b16 %v965
  %v1037 = vunpack.c.l.b16 %v966
  %v1038 = vunpack.c.l.b16 %v967
  %v1039 = vunpack.c.l.b16 %v968
  %v1040 = vunpack.c.l.b16 %v969
  %v1041 = vunpack.c.l.b16 %v970
  %v1042 = vunpack.c.l.b16 %v971
  %v1043 = vunpack.c.l.b16 %v972
  %v1044 = vunpack.c.l.b16 %v973
  %v1045 = vunpack.c.l.b16 %v974
  %v1046 = vunpack.c.l.b16 %v975
  %v1047 = vunpack.c.l.b16 %v976
  %v1048 = vunpack.c.l.b16 %v977
  %v1049 = vunpack.c.l.b16 %v978
  %v1050 = vpack.c.b16 %v1019, %v1018
  %v1051 = vpack.c.b16 %v1021, %v1020
  %v1052 = vpack.c.b16 %v1023, %v1022
  %v1053 = vpack.c.b16 %v1025, %v1024
  %v1054 = vpack.c.b16 %v1027, %v1026
  %v1055 = vpack.c.b16 %v1029, %v1028
  %v1056 = vpack.c.b16 %v1031, %v1030
  %v1057 = vpack.c.b16 %v1033, %v1032
  %v1058 = vpack.c.b16 %v1035, %v1034
  %v1059 = vpack.c.b16 %v1037, %v1036
  %v1060 = vpack.c.b16 %v1039, %v1038
  %v1061 = vpack.c.b16 %v1041, %v1040
  %v1062 = vpack.c.b16 %v1043, %v1042
  %v1063 = vpack.c.b16 %v1045, %v1044
  %v1064 = vpack.c.b16 %v1047, %v1046
  %v1065 = vpack.c.b16 %v1049, %v1048
  %1082 = vmatprep.subr.bf16.mxu0 0
  %1083 = vmatpush1.bf16.msra.mxu0 %v1050
  %1084 = vmatprep.subr.bf16.mxu0 0
  %1085 = vmatpush1.bf16.msra.mxu0 %v1051
  %1086 = vmatprep.subr.bf16.mxu0 0
  %1087 = vmatpush1.bf16.msra.mxu0 %v1052
  %1088 = vmatprep.subr.bf16.mxu0 0
  %1089 = vmatpush1.bf16.msra.mxu0 %v1053
  %1090 = vmatprep.subr.bf16.mxu0 0
  %1091 = vmatpush1.bf16.msra.mxu0 %v1054
  %1092 = vmatprep.subr.bf16.mxu0 0
  %1093 = vmatpush1.bf16.msra.mxu0 %v1055
  %1094 = vmatprep.subr.bf16.mxu0 0
  %1095 = vmatpush1.bf16.msra.mxu0 %v1056
  %1096 = vmatprep.subr.bf16.mxu0 0
  %1097 = vmatpush1.bf16.msra.mxu0 %v1057
  %1098 = vmatprep.subr.bf16.mxu0 0
  %1099 = vmatpush1.bf16.msra.mxu0 %v1058
  %1100 = vmatprep.subr.bf16.mxu0 0
  %1101 = vmatpush1.bf16.msra.mxu0 %v1059
  %1102 = vmatprep.subr.bf16.mxu0 0
  %1103 = vmatpush1.bf16.msra.mxu0 %v1060
  %1104 = vmatprep.subr.bf16.mxu0 0
  %1105 = vmatpush1.bf16.msra.mxu0 %v1061
  %1106 = vmatprep.subr.bf16.mxu0 0
  %1107 = vmatpush1.bf16.msra.mxu0 %v1062
  %1108 = vmatprep.subr.bf16.mxu0 0
  %1109 = vmatpush1.bf16.msra.mxu0 %v1063
  %1110 = vmatprep.subr.bf16.mxu0 0
  %1111 = vmatpush1.bf16.msra.mxu0 %v1064
  %1112 = vmatprep.subr.bf16.mxu0 0
  %1113 = vmatpush1.bf16.msra.mxu0 %v1065
  %1114 = vmatprep.mubr.bf16.mxu0 %v946
  %1115 = vmatmul.mubr.bf16.gmra.mrb[0].mxu0 %v945
  %v1116 = vpop.f32.mrb[0].mxu0
  %v1117 = vadd.f32 %v984, %v1116
  %v1118 = vpop.f32.mrb[0].mxu0
  %v1119 = vpop.f32.mrb[0].mxu0
  %v1120 = vpop.f32.mrb[0].mxu0
  %1121 = vdwg.mxu0
  %1122 = vst [vmem:[%s7] sm:$0xff] %v1117
  // Predicated region
  $region30: #{_lambda_.65} parent=0 // pred_check
    _
  $region31: #{_lambda_.65} parent=0 // pred_check_branch
    %1124 = sbr.rel (0) target = $region33
  $region32: #{_lambda_.65} parent=0 // pred_region
    _
  $region33: #{_lambda_.65} parent=0 // pred_fallthru
    _
  // Predicated region
  $region34: #{_lambda_.65} parent=0 // pred_check
    _
  $region35: #{_lambda_.65} parent=0 // pred_check_branch
    %1126 = sbr.rel (0) target = $region37
  $region36: #{_lambda_.65} parent=0 // pred_region
    _
  $region37: #{_lambda_.65} parent=0 // pred_fallthru
    _

</llo_original>
